<compile_context>
chip_gen: v6e
topology: v6e:2x2x1
jax: 0.10.0
libtpu: 0.0.40
codegen_flags: <defaults>
</compile_context>

<pallas_src>
import math
import functools

import jax
import jax.numpy as jnp
from jax.experimental import pallas as pl
from jax.experimental.pallas import tpu as pltpu


def _layer_norm(x, gamma, beta, eps=1e-5):
    mu = jnp.mean(x, axis=-1, keepdims=True)
    xc = x - mu
    var = jnp.mean(xc * xc, axis=-1, keepdims=True)
    return xc * jax.lax.rsqrt(var + eps) * gamma + beta


def full_decoder_kernel(z_ref, tgt_ref, bias_ref,
                        wqkv_s_ref, bqkv_s_ref, wo_s_ref, bo_s_ref,
                        wq_c_ref, bq_c_ref, wkv_c_ref, bkv_c_ref,
                        wo_c_ref, bo_c_ref,
                        w1_ref, b1_ref, w2_ref, b2_ref,
                        ln_g_ref, ln_b_ref,
                        lin1_w_ref, lin1_b_ref, lin2_w_ref, lin2_b_ref,
                        out_ref, x_scr,
                        *, num_heads, d_k, S, S_enc, D):
    H = num_heads
    f32, bf16 = jnp.float32, jnp.bfloat16
    l = pl.program_id(1)
    last_layer = pl.num_programs(1) - 1

    def mm(a_bf16, w_bf16, b_f32):
        # bf16 MXU operands (weights pre-cast at pack time), f32 accumulation.
        return jnp.dot(a_bf16, w_bf16, preferred_element_type=f32) + b_f32

    def split_heads(m_bf16):
        # [Sx, D] -> [H, Sx, d_k].  Static lane slices stacked along a new
        # leading dim (layout only); the heads are then contracted with ONE
        # leading-batch-dim einsum instead of per-head matmuls.
        return jnp.stack([m_bf16[:, h * d_k:(h + 1) * d_k] for h in range(H)],
                         axis=0)

    def combine_heads(ctx_f32):
        # [H, Sq, d_k] -> [Sq, D]  (head-major columns == torch combine_heads).
        return jnp.concatenate([ctx_f32[h] for h in range(H)], axis=-1)

    def attend(q_h, k_h, v_h, add_bias):
        # q_h: [H, Sq, dk]; k_h, v_h: [H, Sk, dk]  (all bf16).
        # 1/sqrt(d_k) is already folded into the Q projection weights.
        s = jnp.einsum('hqd,hkd->hqk', q_h, k_h, preferred_element_type=f32)
        if add_bias is not None:
            s = s + add_bias[None]                       # additive mask bias
        m = jnp.max(s, axis=-1, keepdims=True)
        e = jnp.exp(s - m)
        p = e * pl.reciprocal(jnp.sum(e, axis=-1, keepdims=True), approx=True)
        ctx = jnp.einsum('hqk,hkd->hqd', p.astype(bf16), v_h,
                         preferred_element_type=f32)
        return combine_heads(ctx)                        # [Sq, D] f32

    # ---- FullDecoder.ln1 : only on the first layer step of this batch item ----
    @pl.when(l == 0)
    def _():
        t = tgt_ref[...].astype(bf16)                    # [S, 4]
        x_scr[...] = mm(t, lin1_w_ref[...], lin1_b_ref[...])

    x = x_scr[...]                                       # [S, D] f32 (carried)
    gam = ln_g_ref[...]                                  # [3, 1, D]
    bet = ln_b_ref[...]
    bias = bias_ref[...]                                 # [S, S]: 0 keep / -1e9 mask

    # ---- self-attention (fused QKV projection, causal mask) ----
    xb = x.astype(bf16)
    qkv = mm(xb, wqkv_s_ref[...], bqkv_s_ref[...])       # [S, 3D] f32
    qkvb = qkv.astype(bf16)
    q_h = split_heads(qkvb[:, 0 * D:1 * D])
    k_h = split_heads(qkvb[:, 1 * D:2 * D])
    v_h = split_heads(qkvb[:, 2 * D:3 * D])
    ctx = attend(q_h, k_h, v_h, bias)
    attn = mm(ctx.astype(bf16), wo_s_ref[...], bo_s_ref[...])
    # dropout == identity at inference
    x = _layer_norm(x + attn, gam[0], bet[0])

    # ---- cross-attention against z||meta (shared; never broadcast over batch) ----
    xb = x.astype(bf16)
    q = mm(xb, wq_c_ref[...], bq_c_ref[...])             # [S, D]
    kv = mm(z_ref[...], wkv_c_ref[...], bkv_c_ref[...])  # [S_enc, 2D]
    kvb = kv.astype(bf16)
    q_h = split_heads(q.astype(bf16))
    k_h = split_heads(kvb[:, 0:D])
    v_h = split_heads(kvb[:, D:2 * D])
    ctx = attend(q_h, k_h, v_h, None)
    attn = mm(ctx.astype(bf16), wo_c_ref[...], bo_c_ref[...])
    x = _layer_norm(x + attn, gam[1], bet[1])

    # ---- position-wise feed-forward ----
    xb = x.astype(bf16)
    h1 = jnp.maximum(mm(xb, w1_ref[...], b1_ref[...]), 0.0)
    ff = mm(h1.astype(bf16), w2_ref[...], b2_ref[...])
    x = _layer_norm(x + ff, gam[2], bet[2])

    x_scr[...] = x                                       # carry to next layer

    # ---- FullDecoder.ln2 : only on the final layer step ----
    @pl.when(l == last_layer)
    def _():
        out = mm(x.astype(bf16), lin2_w_ref[...], lin2_b_ref[...])   # [S, 4]
        out_ref[...] = out.astype(out_ref.dtype)


def _pack_params(params, num_heads):
    """PyTorch-layout params -> pre-transposed / fused / layer-stacked arrays.

    Weight matrices are stored bf16 (MXU operands, half the DMA bytes);
    biases and LayerNorm affine params stay f32.
    """
    D = params["ln1"]["w"].shape[0]
    d_k = D // num_heads
    q_scale = 1.0 / math.sqrt(d_k)                       # folded into Q weights
    bf16, f32 = jnp.bfloat16, jnp.float32

    def stack(fn, dtype):
        return jnp.stack([fn(L) for L in params["layers"]], axis=0).astype(dtype)

    wqkv_s = stack(lambda L: jnp.concatenate(
        [L["self_attn"]["wq"].T * q_scale,
         L["self_attn"]["wk"].T,
         L["self_attn"]["wv"].T], axis=1), bf16)                          # [L, D, 3D]
    bqkv_s = stack(lambda L: jnp.concatenate(
        [L["self_attn"]["bq"] * q_scale,
         L["self_attn"]["bk"],
         L["self_attn"]["bv"]])[None, :], f32)                            # [L, 1, 3D]
    wo_s = stack(lambda L: L["self_attn"]["wo"].T, bf16)                  # [L, D, D]
    bo_s = stack(lambda L: L["self_attn"]["bo"][None, :], f32)            # [L, 1, D]

    wq_c = stack(lambda L: L["cross_attn"]["wq"].T * q_scale, bf16)       # [L, D, D]
    bq_c = stack(lambda L: (L["cross_attn"]["bq"] * q_scale)[None, :], f32)
    wkv_c = stack(lambda L: jnp.concatenate(
        [L["cross_attn"]["wk"].T, L["cross_attn"]["wv"].T], axis=1), bf16)  # [L, D, 2D]
    bkv_c = stack(lambda L: jnp.concatenate(
        [L["cross_attn"]["bk"], L["cross_attn"]["bv"]])[None, :], f32)      # [L, 1, 2D]
    wo_c = stack(lambda L: L["cross_attn"]["wo"].T, bf16)                 # [L, D, D]
    bo_c = stack(lambda L: L["cross_attn"]["bo"][None, :], f32)           # [L, 1, D]

    w1 = stack(lambda L: L["ffn"]["w1"].T, bf16)                          # [L, D, Dff]
    b1 = stack(lambda L: L["ffn"]["b1"][None, :], f32)                    # [L, 1, Dff]
    w2 = stack(lambda L: L["ffn"]["w2"].T, bf16)                          # [L, Dff, D]
    b2 = stack(lambda L: L["ffn"]["b2"][None, :], f32)                    # [L, 1, D]

    ln_g = stack(lambda L: jnp.stack(
        [L["norm1"]["g"][None, :], L["norm2"]["g"][None, :],
         L["norm3"]["g"][None, :]], axis=0), f32)                         # [L, 3, 1, D]
    ln_b = stack(lambda L: jnp.stack(
        [L["norm1"]["b"][None, :], L["norm2"]["b"][None, :],
         L["norm3"]["b"][None, :]], axis=0), f32)                         # [L, 3, 1, D]

    lin1_w = params["ln1"]["w"].T.astype(bf16)                            # [4, D]
    lin1_b = params["ln1"]["b"][None, :].astype(f32)                      # [1, D]
    lin2_w = params["ln2"]["w"].T.astype(bf16)                            # [D, 4]
    lin2_b = params["ln2"]["b"][None, :].astype(f32)                      # [1, 4]

    return (wqkv_s, bqkv_s, wo_s, bo_s, wq_c, bq_c, wkv_c, bkv_c, wo_c, bo_c,
            w1, b1, w2, b2, ln_g, ln_b, lin1_w, lin1_b, lin2_w, lin2_b)


def full_decoder_forward(z, tgt, meta_features, tgt_mask, params, *, num_heads):
    B, S, _ = tgt.shape
    D = params["ln1"]["w"].shape[0]
    num_layers = len(params["layers"])
    d_k = D // num_heads
    d_ff = params["layers"][0]["ffn"]["w1"].shape[0]

    # FullDecoder: z = cat([z, meta.unsqueeze(0)], -1) — shared by the batch.
    z_cat = jnp.concatenate([z[0], meta_features], axis=-1)               # [S_enc, D]
    S_enc = z_cat.shape[0]
    assert z_cat.shape[1] == D, "d_z + d_meta must equal d_model"
    z_cat = z_cat.astype(jnp.bfloat16)            # MXU operand; halves DMA bytes

    # Additive mask bias (keep -> 0, mask -> -1e9): one VPU add per layer.
    bias = (tgt_mask.astype(jnp.float32) - 1.0) * 1e9

    packed = _pack_params(params, num_heads)

    kernel = functools.partial(full_decoder_kernel, num_heads=num_heads,
                               d_k=d_k, S=S, S_enc=S_enc, D=D)

    def layer_spec(shape):        # per-layer weight slice, streamed over grid axis 1
        return pl.BlockSpec((None,) + shape, lambda b, l: (l,) + (0,) * len(shape))

    def fixed_spec(shape):        # same block every step -> stays VMEM-resident
        return pl.BlockSpec(shape, lambda b, l: (0,) * len(shape))

    in_specs = [
        fixed_spec((S_enc, D)),                                   # z_cat
        pl.BlockSpec((None, S, 4), lambda b, l: (b, 0, 0)),       # tgt (per batch)
        fixed_spec((S, S)),                                       # mask bias
        layer_spec((D, 3 * D)), layer_spec((1, 3 * D)),           # wqkv_s, bqkv_s
        layer_spec((D, D)),     layer_spec((1, D)),               # wo_s, bo_s
        layer_spec((D, D)),     layer_spec((1, D)),               # wq_c, bq_c
        layer_spec((D, 2 * D)), layer_spec((1, 2 * D)),           # wkv_c, bkv_c
        layer_spec((D, D)),     layer_spec((1, D)),               # wo_c, bo_c
        layer_spec((D, d_ff)),  layer_spec((1, d_ff)),            # w1, b1
        layer_spec((d_ff, D)),  layer_spec((1, D)),               # w2, b2
        layer_spec((3, 1, D)),  layer_spec((3, 1, D)),            # ln_g, ln_b
        fixed_spec((4, D)), fixed_spec((1, D)),                   # lin1_w, lin1_b
        fixed_spec((D, 4)), fixed_spec((1, 4)),                   # lin2_w, lin2_b
    ]
    out_spec = pl.BlockSpec((None, S, 4), lambda b, l: (b, 0, 0))

    # Advisory cost estimate + VMEM limit sized to the actual footprint.
    flops_layer = (2 * S * D * 3 * D + 4 * S * S * D + 2 * S * D * D          # self
                   + 2 * S * D * D + 4 * S_enc * D * D + 4 * S * S_enc * D
                   + 2 * S * D * D                                            # cross
                   + 4 * S * D * d_ff)                                        # ffn
    flops = int(B * (num_layers * flops_layer + 4 * S * 4 * D))
    transcendentals = int(B * num_layers * num_heads * S * (S + S_enc))
    args = (z_cat, tgt, bias) + packed
    in_bytes = int(sum(a.size * a.dtype.itemsize for a in args))
    bytes_accessed = int(B * in_bytes + B * S * 4 * 4)
    vmem_limit = int(min(100 * 1024 * 1024, max(8 * 1024 * 1024, 8 * in_bytes)))

    return pl.pallas_call(
        kernel,
        out_shape=jax.ShapeDtypeStruct((B, S, 4), tgt.dtype),
        grid_spec=pltpu.PrefetchScalarGridSpec(
            num_scalar_prefetch=0,
            grid=(B, num_layers),
            in_specs=in_specs,
            out_specs=out_spec,
            scratch_shapes=[pltpu.VMEM((S, D), jnp.float32)]),   # carried activation
        compiler_params=pltpu.CompilerParams(
            dimension_semantics=("parallel", "arbitrary"),
            vmem_limit_bytes=vmem_limit),
        cost_estimate=pl.CostEstimate(flops=flops,
                                      transcendentals=transcendentals,
                                      bytes_accessed=bytes_accessed),
    )(z_cat, tgt, bias, *packed)


def reference_full_decoder(z, tgt, meta_features, tgt_mask, params, *, num_heads):
    """Plain-JAX reference with the PyTorch module's semantics (mirrors the
    kernel's bf16-operand / f32-accumulate MXU policy for tight comparison)."""
    D = params["ln1"]["w"].shape[0]
    H = num_heads
    d_k = D // H
    B, S, _ = tgt.shape
    bf16, f32 = jnp.bfloat16, jnp.float32

    def mm(a, b):
        return jnp.dot(a.astype(bf16), b.astype(bf16), preferred_element_type=f32)

    def linear(x, w, b):                       # nn.Linear: y = x W^T + b
        return mm(x, w.T) + b

    def layer_norm(x, g, beta, eps=1e-5):
        mu = jnp.mean(x, axis=-1, keepdims=True)
        var = jnp.mean(jnp.square(x - mu), axis=-1, keepdims=True)
        return (x - mu) / jnp.sqrt(var + eps) * g + beta

    def mha(Q, K, V, p, mask):
        Sq = Q.shape[1]

        def split(x):
            return x.reshape(B, -1, H, d_k).transpose(0, 2, 1, 3)

        q = split(linear(Q, p["wq"], p["bq"]))
        k = split(linear(K, p["wk"], p["bk"]))
        v = split(linear(V, p["wv"], p["bv"]))
        scores = jnp.einsum('bhqd,bhkd->bhqk', q.astype(bf16), k.astype(bf16),
                            preferred_element_type=f32) / math.sqrt(d_k)
        if mask is not None:
            scores = jnp.where(mask[None, None] == 0, -1e9, scores)
        probs = jax.nn.softmax(scores, axis=-1)
        ctx = jnp.einsum('bhqk,bhkd->bhqd', probs.astype(bf16), v.astype(bf16),
                         preferred_element_type=f32)
        ctx = ctx.transpose(0, 2, 1, 3).reshape(B, Sq, D)
        return linear(ctx, p["wo"], p["bo"])

    # FullDecoder.forward
    z_cat = jnp.concatenate([z, meta_features[None]], axis=-1)   # [1, S_enc, D]
    enc = jnp.broadcast_to(z_cat, (B,) + z_cat.shape[1:])
    x = linear(tgt, params["ln1"]["w"], params["ln1"]["b"])

    for L in params["layers"]:
        x = layer_norm(x + mha(x, x, x, L["self_attn"], tgt_mask),
                       L["norm1"]["g"], L["norm1"]["b"])
        x = layer_norm(x + mha(x, enc, enc, L["cross_attn"], None),
                       L["norm2"]["g"], L["norm2"]["b"])
        h = jnp.maximum(linear(x, L["ffn"]["w1"], L["ffn"]["b1"]), 0.0)
        x = layer_norm(x + linear(h, L["ffn"]["w2"], L["ffn"]["b2"]),
                       L["norm3"]["g"], L["norm3"]["b"])

    return linear(x, params["ln2"]["w"], params["ln2"]["b"])


if __name__ == "__main__":
    d_model, num_heads, num_layers, d_ff = 32, 4, 2, 64
    B, S_tgt, S_enc = 2, 8, 16
    d_meta = 4
    d_z = d_model - d_meta                      # cat(z, meta) must equal d_model

    key = jax.random.PRNGKey(0)
    kit = iter(jax.random.split(key, 128))

    def uniform(k, shape, fan_in):
        lim = 1.0 / math.sqrt(fan_in)
        return jax.random.uniform(k, shape, jnp.float32, -lim, lim)

    def linear_params(d_in, d_out):             # PyTorch layout: weight [out, in]
        return uniform(next(kit), (d_out, d_in), d_in), uniform(next(kit), (d_out,), d_in)

    def mha_params():
        wq, bq = linear_params(d_model, d_model)
        wk, bk = linear_params(d_model, d_model)
        wv, bv = linear_params(d_model, d_model)
        wo, bo = linear_params(d_model, d_model)
        return dict(wq=wq, bq=bq, wk=wk, bk=bk, wv=wv, bv=bv, wo=wo, bo=bo)

    def norm_params():                          # randomized affine to exercise gamma/beta
        g = 1.0 + 0.1 * jax.random.normal(next(kit), (d_model,), jnp.float32)
        b = 0.1 * jax.random.normal(next(kit), (d_model,), jnp.float32)
        return dict(g=g, b=b)

    layers = []
    for _ in range(num_layers):
        w1, b1 = linear_params(d_model, d_ff)
        w2, b2 = linear_params(d_ff, d_model)
        layers.append(dict(self_attn=mha_params(), cross_attn=mha_params(),
                           ffn=dict(w1=w1, b1=b1, w2=w2, b2=b2),
                           norm1=norm_params(), norm2=norm_params(),
                           norm3=norm_params()))

    ln1_w, ln1_b = linear_params(4, d_model)
    ln2_w, ln2_b = linear_params(d_model, 4)
    params = dict(layers=layers, ln1=dict(w=ln1_w, b=ln1_b),
                  ln2=dict(w=ln2_w, b=ln2_b))

    z = jax.random.normal(next(kit), (1, S_enc, d_z), jnp.float32)
    meta = jax.random.normal(next(kit), (S_enc, d_meta), jnp.float32)
    tgt = jax.random.normal(next(kit), (B, S_tgt, 4), jnp.float32)
    tgt_mask = jnp.tril(jnp.ones((S_tgt, S_tgt), jnp.float32))   # causal decoder mask

    out = full_decoder_forward(z, tgt, meta, tgt_mask, params, num_heads=num_heads)
    out = jax.block_until_ready(out)

    ref = reference_full_decoder(z, tgt, meta, tgt_mask, params, num_heads=num_heads)
    assert out.shape == (B, S_tgt, 4)
    err = jnp.max(jnp.abs(out - ref))
    assert jnp.allclose(out, ref, atol=2e-2, rtol=2e-2), f"max abs err = {err}"
    print("KERNEL_OK")
</pallas_src>

<mosaic_0001>
module attributes {stable_mosaic.version = 11 : i64} {
  func.func @full_decoder_kernel(%arg0: i32, %arg1: i32, %arg2: memref<16x32xbf16, #tpu.memory_space<vmem>>, %arg3: memref<1x8x4xf32, #tpu.memory_space<vmem>>, %arg4: memref<8x8xf32, #tpu.memory_space<vmem>>, %arg5: memref<1x32x96xbf16, #tpu.memory_space<vmem>>, %arg6: memref<1x1x96xf32, #tpu.memory_space<vmem>>, %arg7: memref<1x32x32xbf16, #tpu.memory_space<vmem>>, %arg8: memref<1x1x32xf32, #tpu.memory_space<vmem>>, %arg9: memref<1x32x32xbf16, #tpu.memory_space<vmem>>, %arg10: memref<1x1x32xf32, #tpu.memory_space<vmem>>, %arg11: memref<1x32x64xbf16, #tpu.memory_space<vmem>>, %arg12: memref<1x1x64xf32, #tpu.memory_space<vmem>>, %arg13: memref<1x32x32xbf16, #tpu.memory_space<vmem>>, %arg14: memref<1x1x32xf32, #tpu.memory_space<vmem>>, %arg15: memref<1x32x64xbf16, #tpu.memory_space<vmem>>, %arg16: memref<1x1x64xf32, #tpu.memory_space<vmem>>, %arg17: memref<1x64x32xbf16, #tpu.memory_space<vmem>>, %arg18: memref<1x1x32xf32, #tpu.memory_space<vmem>>, %arg19: memref<1x3x1x32xf32, #tpu.memory_space<vmem>>, %arg20: memref<1x3x1x32xf32, #tpu.memory_space<vmem>>, %arg21: memref<4x32xbf16, #tpu.memory_space<vmem>>, %arg22: memref<1x32xf32, #tpu.memory_space<vmem>>, %arg23: memref<32x4xbf16, #tpu.memory_space<vmem>>, %arg24: memref<1x4xf32, #tpu.memory_space<vmem>>, %arg25: memref<1x8x4xf32, #tpu.memory_space<vmem>>, %arg26: memref<8x32xf32, #tpu.memory_space<vmem>>) attributes {dimension_semantics = [#tpu.dimension_semantics<parallel>, #tpu.dimension_semantics<arbitrary>], iteration_bounds = array<i64: 2, 2>, scalar_prefetch = 0 : i64, scratch_operands = 1 : i64, tpu.core_type = #tpu.core_type<tc>, window_params = [{pipeline_mode = #tpu.pipeline_mode<synchronous>, transform_indices = @transform_0, window_bounds = array<i64: 16, 32>}, {transform_indices = @transform_1, window_bounds = array<i64: 1, 8, 4>}, {pipeline_mode = #tpu.pipeline_mode<synchronous>, transform_indices = @transform_2, window_bounds = array<i64: 8, 8>}, {transform_indices = @transform_3, window_bounds = array<i64: 1, 32, 96>}, {transform_indices = @transform_4, window_bounds = array<i64: 1, 1, 96>}, {transform_indices = @transform_5, window_bounds = array<i64: 1, 32, 32>}, {transform_indices = @transform_6, window_bounds = array<i64: 1, 1, 32>}, {transform_indices = @transform_7, window_bounds = array<i64: 1, 32, 32>}, {transform_indices = @transform_8, window_bounds = array<i64: 1, 1, 32>}, {transform_indices = @transform_9, window_bounds = array<i64: 1, 32, 64>}, {transform_indices = @transform_10, window_bounds = array<i64: 1, 1, 64>}, {transform_indices = @transform_11, window_bounds = array<i64: 1, 32, 32>}, {transform_indices = @transform_12, window_bounds = array<i64: 1, 1, 32>}, {transform_indices = @transform_13, window_bounds = array<i64: 1, 32, 64>}, {transform_indices = @transform_14, window_bounds = array<i64: 1, 1, 64>}, {transform_indices = @transform_15, window_bounds = array<i64: 1, 64, 32>}, {transform_indices = @transform_16, window_bounds = array<i64: 1, 1, 32>}, {transform_indices = @transform_17, window_bounds = array<i64: 1, 3, 1, 32>}, {transform_indices = @transform_18, window_bounds = array<i64: 1, 3, 1, 32>}, {pipeline_mode = #tpu.pipeline_mode<synchronous>, transform_indices = @transform_19, window_bounds = array<i64: 4, 32>}, {pipeline_mode = #tpu.pipeline_mode<synchronous>, transform_indices = @transform_20, window_bounds = array<i64: 1, 32>}, {pipeline_mode = #tpu.pipeline_mode<synchronous>, transform_indices = @transform_21, window_bounds = array<i64: 32, 4>}, {pipeline_mode = #tpu.pipeline_mode<synchronous>, transform_indices = @transform_22, window_bounds = array<i64: 1, 4>}, {transform_indices = @transform_23, window_bounds = array<i64: 1, 8, 4>}]} {
    %c0_i32 = arith.constant 0 : i32
    %0 = arith.cmpi eq, %arg1, %c0_i32 : i32
    %1 = arith.extui %0 : i1 to i32
    %c0_i32_0 = arith.constant 0 : i32
    %2 = arith.cmpi ne, %1, %c0_i32_0 : i32
    scf.if %2 {
      %c0_89 = arith.constant 0 : index
      %c0_90 = arith.constant 0 : index
      %c0_91 = arith.constant 0 : index
      %255 = vector.load %arg3[%c0_89, %c0_90, %c0_91] : memref<1x8x4xf32, #tpu.memory_space<vmem>>, vector<1x8x4xf32>
      %256 = vector.shape_cast %255 : vector<1x8x4xf32> to vector<8x4xf32>
      %257 = arith.truncf %256 : vector<8x4xf32> to vector<8x4xbf16>
      %c0_92 = arith.constant 0 : index
      %c0_93 = arith.constant 0 : index
      %258 = vector.load %arg21[%c0_92, %c0_93] : memref<4x32xbf16, #tpu.memory_space<vmem>>, vector<4x32xbf16>
      %c0_94 = arith.constant 0 : index
      %c0_95 = arith.constant 0 : index
      %259 = vector.load %arg22[%c0_94, %c0_95] : memref<1x32xf32, #tpu.memory_space<vmem>>, vector<1x32xf32>
      %cst_96 = arith.constant dense<0.000000e+00> : vector<8x32xf32>
      %260 = tpu.matmul %257, %258, %cst_96 {dimension_numbers = #tpu.dot_dimension_numbers<[1], [0], [0], [1], [0, 0, 1, 1], [], []>} : vector<8x4xbf16>, vector<4x32xbf16>, vector<8x32xf32> -> vector<8x32xf32>
      %261 = vector.broadcast %259 : vector<1x32xf32> to vector<8x32xf32>
      %262 = arith.addf %260, %261 : vector<8x32xf32>
      %c0_97 = arith.constant 0 : index
      %c0_98 = arith.constant 0 : index
      %263 = vector.load %arg26[%c0_97, %c0_98] : memref<8x32xf32, #tpu.memory_space<vmem>>, vector<8x32xf32>
      tpu.vector_store %arg26[%c0_97, %c0_98], %262 {strides = array<i32>} : memref<8x32xf32, #tpu.memory_space<vmem>>, vector<8x32xf32>,
    } else {
    }
    %c0 = arith.constant 0 : index
    %c0_1 = arith.constant 0 : index
    %3 = vector.load %arg26[%c0, %c0_1] : memref<8x32xf32, #tpu.memory_space<vmem>>, vector<8x32xf32>
    %c0_2 = arith.constant 0 : index
    %c0_3 = arith.constant 0 : index
    %c0_4 = arith.constant 0 : index
    %c0_5 = arith.constant 0 : index
    %4 = vector.load %arg19[%c0_2, %c0_3, %c0_4, %c0_5] : memref<1x3x1x32xf32, #tpu.memory_space<vmem>>, vector<1x3x1x32xf32>
    %5 = vector.shape_cast %4 : vector<1x3x1x32xf32> to vector<3x1x32xf32>
    %c0_6 = arith.constant 0 : index
    %c0_7 = arith.constant 0 : index
    %c0_8 = arith.constant 0 : index
    %c0_9 = arith.constant 0 : index
    %6 = vector.load %arg20[%c0_6, %c0_7, %c0_8, %c0_9] : memref<1x3x1x32xf32, #tpu.memory_space<vmem>>, vector<1x3x1x32xf32>
    %7 = vector.shape_cast %6 : vector<1x3x1x32xf32> to vector<3x1x32xf32>
    %c0_10 = arith.constant 0 : index
    %c0_11 = arith.constant 0 : index
    %8 = vector.load %arg4[%c0_10, %c0_11] : memref<8x8xf32, #tpu.memory_space<vmem>>, vector<8x8xf32>
    %9 = arith.truncf %3 : vector<8x32xf32> to vector<8x32xbf16>
    %c0_12 = arith.constant 0 : index
    %c0_13 = arith.constant 0 : index
    %c0_14 = arith.constant 0 : index
    %10 = vector.load %arg5[%c0_12, %c0_13, %c0_14] : memref<1x32x96xbf16, #tpu.memory_space<vmem>>, vector<1x32x96xbf16>
    %11 = vector.shape_cast %10 : vector<1x32x96xbf16> to vector<32x96xbf16>
    %c0_15 = arith.constant 0 : index
    %c0_16 = arith.constant 0 : index
    %c0_17 = arith.constant 0 : index
    %12 = vector.load %arg6[%c0_15, %c0_16, %c0_17] : memref<1x1x96xf32, #tpu.memory_space<vmem>>, vector<1x1x96xf32>
    %13 = vector.shape_cast %12 : vector<1x1x96xf32> to vector<1x96xf32>
    %cst = arith.constant dense<0.000000e+00> : vector<8x96xf32>
    %14 = tpu.matmul %9, %11, %cst {dimension_numbers = #tpu.dot_dimension_numbers<[1], [0], [0], [1], [0, 0, 1, 1], [], []>} : vector<8x32xbf16>, vector<32x96xbf16>, vector<8x96xf32> -> vector<8x96xf32>
    %15 = vector.broadcast %13 : vector<1x96xf32> to vector<8x96xf32>
    %16 = arith.addf %14, %15 : vector<8x96xf32>
    %17 = arith.truncf %16 : vector<8x96xf32> to vector<8x96xbf16>
    %18 = vector.extract_strided_slice %17 {offsets = [0, 0], sizes = [8, 32], strides = [1, 1]} : vector<8x96xbf16> to vector<8x32xbf16>
    %19 = vector.extract_strided_slice %18 {offsets = [0, 0], sizes = [8, 8], strides = [1, 1]} : vector<8x32xbf16> to vector<8x8xbf16>
    %20 = vector.extract_strided_slice %18 {offsets = [0, 8], sizes = [8, 8], strides = [1, 1]} : vector<8x32xbf16> to vector<8x8xbf16>
    %21 = vector.extract_strided_slice %18 {offsets = [0, 16], sizes = [8, 8], strides = [1, 1]} : vector<8x32xbf16> to vector<8x8xbf16>
    %22 = vector.extract_strided_slice %18 {offsets = [0, 24], sizes = [8, 8], strides = [1, 1]} : vector<8x32xbf16> to vector<8x8xbf16>
    %23 = vector.shape_cast %19 : vector<8x8xbf16> to vector<1x8x8xbf16>
    %24 = vector.shape_cast %20 : vector<8x8xbf16> to vector<1x8x8xbf16>
    %25 = vector.shape_cast %21 : vector<8x8xbf16> to vector<1x8x8xbf16>
    %26 = vector.shape_cast %22 : vector<8x8xbf16> to vector<1x8x8xbf16>
    %27 = tpu.concatenate %23, %24, %25, %26 in 0 : vector<1x8x8xbf16>, vector<1x8x8xbf16>, vector<1x8x8xbf16>, vector<1x8x8xbf16> -> vector<4x8x8xbf16>
    %28 = vector.extract_strided_slice %17 {offsets = [0, 32], sizes = [8, 32], strides = [1, 1]} : vector<8x96xbf16> to vector<8x32xbf16>
    %29 = vector.extract_strided_slice %28 {offsets = [0, 0], sizes = [8, 8], strides = [1, 1]} : vector<8x32xbf16> to vector<8x8xbf16>
    %30 = vector.extract_strided_slice %28 {offsets = [0, 8], sizes = [8, 8], strides = [1, 1]} : vector<8x32xbf16> to vector<8x8xbf16>
    %31 = vector.extract_strided_slice %28 {offsets = [0, 16], sizes = [8, 8], strides = [1, 1]} : vector<8x32xbf16> to vector<8x8xbf16>
    %32 = vector.extract_strided_slice %28 {offsets = [0, 24], sizes = [8, 8], strides = [1, 1]} : vector<8x32xbf16> to vector<8x8xbf16>
    %33 = vector.shape_cast %29 : vector<8x8xbf16> to vector<1x8x8xbf16>
    %34 = vector.shape_cast %30 : vector<8x8xbf16> to vector<1x8x8xbf16>
    %35 = vector.shape_cast %31 : vector<8x8xbf16> to vector<1x8x8xbf16>
    %36 = vector.shape_cast %32 : vector<8x8xbf16> to vector<1x8x8xbf16>
    %37 = tpu.concatenate %33, %34, %35, %36 in 0 : vector<1x8x8xbf16>, vector<1x8x8xbf16>, vector<1x8x8xbf16>, vector<1x8x8xbf16> -> vector<4x8x8xbf16>
    %38 = vector.extract_strided_slice %17 {offsets = [0, 64], sizes = [8, 32], strides = [1, 1]} : vector<8x96xbf16> to vector<8x32xbf16>
    %39 = vector.extract_strided_slice %38 {offsets = [0, 0], sizes = [8, 8], strides = [1, 1]} : vector<8x32xbf16> to vector<8x8xbf16>
    %40 = vector.extract_strided_slice %38 {offsets = [0, 8], sizes = [8, 8], strides = [1, 1]} : vector<8x32xbf16> to vector<8x8xbf16>
    %41 = vector.extract_strided_slice %38 {offsets = [0, 16], sizes = [8, 8], strides = [1, 1]} : vector<8x32xbf16> to vector<8x8xbf16>
    %42 = vector.extract_strided_slice %38 {offsets = [0, 24], sizes = [8, 8], strides = [1, 1]} : vector<8x32xbf16> to vector<8x8xbf16>
    %43 = vector.shape_cast %39 : vector<8x8xbf16> to vector<1x8x8xbf16>
    %44 = vector.shape_cast %40 : vector<8x8xbf16> to vector<1x8x8xbf16>
    %45 = vector.shape_cast %41 : vector<8x8xbf16> to vector<1x8x8xbf16>
    %46 = vector.shape_cast %42 : vector<8x8xbf16> to vector<1x8x8xbf16>
    %47 = tpu.concatenate %43, %44, %45, %46 in 0 : vector<1x8x8xbf16>, vector<1x8x8xbf16>, vector<1x8x8xbf16>, vector<1x8x8xbf16> -> vector<4x8x8xbf16>
    "tpu.trace_start"() <{level = 10 : i32, message = "hqd,hkd->hqk"}> : () -> ()
    %cst_18 = arith.constant dense<0.000000e+00> : vector<4x8x8xf32>
    %48 = tpu.matmul %27, %37, %cst_18 {dimension_numbers = #tpu.dot_dimension_numbers<[2], [2], [1], [1], [0, 0, 0, 1, 1, 1], [0], [0]>} : vector<4x8x8xbf16>, vector<4x8x8xbf16>, vector<4x8x8xf32> -> vector<4x8x8xf32>
    "tpu.trace_stop"() : () -> ()
    %49 = vector.shape_cast %8 : vector<8x8xf32> to vector<1x8x8xf32>
    %50 = vector.broadcast %49 : vector<1x8x8xf32> to vector<4x8x8xf32>
    %51 = arith.addf %48, %50 : vector<4x8x8xf32>
    %cst_19 = arith.constant dense<0xFF800000> : vector<4x8xf32>
    %52 = vector.multi_reduction <maximumf>, %51, %cst_19 [2] : vector<4x8x8xf32> to vector<4x8xf32>
    %53 = vector.shape_cast %52 : vector<4x8xf32> to vector<4x8x1xf32>
    %54 = vector.broadcast %53 : vector<4x8x1xf32> to vector<4x8x8xf32>
    %55 = arith.subf %51, %54 : vector<4x8x8xf32>
    %56 = math.exp %55 : vector<4x8x8xf32>
    %cst_20 = arith.constant dense<0.000000e+00> : vector<4x8xf32>
    %57 = vector.multi_reduction <add>, %56, %cst_20 [2] : vector<4x8x8xf32> to vector<4x8xf32>
    %58 = vector.shape_cast %57 : vector<4x8xf32> to vector<4x8x1xf32>
    %59 = tpu.reciprocal %58 {approx = true} : vector<4x8x1xf32> -> vector<4x8x1xf32>
    %60 = vector.broadcast %59 : vector<4x8x1xf32> to vector<4x8x8xf32>
    %61 = arith.mulf %56, %60 : vector<4x8x8xf32>
    %62 = arith.truncf %61 : vector<4x8x8xf32> to vector<4x8x8xbf16>
    "tpu.trace_start"() <{level = 10 : i32, message = "hqk,hkd->hqd"}> : () -> ()
    %cst_21 = arith.constant dense<0.000000e+00> : vector<4x8x8xf32>
    %63 = tpu.matmul %62, %47, %cst_21 {dimension_numbers = #tpu.dot_dimension_numbers<[2], [1], [1], [2], [0, 0, 0, 1, 1, 2], [0], [0]>} : vector<4x8x8xbf16>, vector<4x8x8xbf16>, vector<4x8x8xf32> -> vector<4x8x8xf32>
    "tpu.trace_stop"() : () -> ()
    %64 = vector.extract_strided_slice %63 {offsets = [0, 0, 0], sizes = [1, 8, 8], strides = [1, 1, 1]} : vector<4x8x8xf32> to vector<1x8x8xf32>
    %65 = vector.shape_cast %64 : vector<1x8x8xf32> to vector<8x8xf32>
    %66 = vector.extract_strided_slice %63 {offsets = [1, 0, 0], sizes = [1, 8, 8], strides = [1, 1, 1]} : vector<4x8x8xf32> to vector<1x8x8xf32>
    %67 = vector.shape_cast %66 : vector<1x8x8xf32> to vector<8x8xf32>
    %68 = vector.extract_strided_slice %63 {offsets = [2, 0, 0], sizes = [1, 8, 8], strides = [1, 1, 1]} : vector<4x8x8xf32> to vector<1x8x8xf32>
    %69 = vector.shape_cast %68 : vector<1x8x8xf32> to vector<8x8xf32>
    %70 = vector.extract_strided_slice %63 {offsets = [3, 0, 0], sizes = [1, 8, 8], strides = [1, 1, 1]} : vector<4x8x8xf32> to vector<1x8x8xf32>
    %71 = vector.shape_cast %70 : vector<1x8x8xf32> to vector<8x8xf32>
    %72 = tpu.concatenate %65, %67, %69, %71 in 1 : vector<8x8xf32>, vector<8x8xf32>, vector<8x8xf32>, vector<8x8xf32> -> vector<8x32xf32>
    %73 = arith.truncf %72 : vector<8x32xf32> to vector<8x32xbf16>
    %c0_22 = arith.constant 0 : index
    %c0_23 = arith.constant 0 : index
    %c0_24 = arith.constant 0 : index
    %74 = vector.load %arg7[%c0_22, %c0_23, %c0_24] : memref<1x32x32xbf16, #tpu.memory_space<vmem>>, vector<1x32x32xbf16>
    %75 = vector.shape_cast %74 : vector<1x32x32xbf16> to vector<32x32xbf16>
    %c0_25 = arith.constant 0 : index
    %c0_26 = arith.constant 0 : index
    %c0_27 = arith.constant 0 : index
    %76 = vector.load %arg8[%c0_25, %c0_26, %c0_27] : memref<1x1x32xf32, #tpu.memory_space<vmem>>, vector<1x1x32xf32>
    %77 = vector.shape_cast %76 : vector<1x1x32xf32> to vector<1x32xf32>
    %cst_28 = arith.constant dense<0.000000e+00> : vector<8x32xf32>
    %78 = tpu.matmul %73, %75, %cst_28 {dimension_numbers = #tpu.dot_dimension_numbers<[1], [0], [0], [1], [0, 0, 1, 1], [], []>} : vector<8x32xbf16>, vector<32x32xbf16>, vector<8x32xf32> -> vector<8x32xf32>
    %79 = vector.broadcast %77 : vector<1x32xf32> to vector<8x32xf32>
    %80 = arith.addf %78, %79 : vector<8x32xf32>
    %81 = arith.addf %3, %80 : vector<8x32xf32>
    %82 = vector.extract_strided_slice %5 {offsets = [0, 0, 0], sizes = [1, 1, 32], strides = [1, 1, 1]} : vector<3x1x32xf32> to vector<1x1x32xf32>
    %83 = vector.shape_cast %82 : vector<1x1x32xf32> to vector<1x32xf32>
    %84 = vector.extract_strided_slice %7 {offsets = [0, 0, 0], sizes = [1, 1, 32], strides = [1, 1, 1]} : vector<3x1x32xf32> to vector<1x1x32xf32>
    %85 = vector.shape_cast %84 : vector<1x1x32xf32> to vector<1x32xf32>
    %cst_29 = arith.constant dense<0.000000e+00> : vector<8xf32>
    %86 = vector.multi_reduction <add>, %81, %cst_29 [1] : vector<8x32xf32> to vector<8xf32>
    %87 = vector.shape_cast %86 : vector<8xf32> to vector<8x1xf32>
    %cst_30 = arith.constant 3.200000e+01 : f32
    %88 = vector.broadcast %cst_30 : f32 to vector<8x1xf32>
    %89 = arith.divf %87, %88 : vector<8x1xf32>
    %90 = vector.broadcast %89 : vector<8x1xf32> to vector<8x32xf32>
    %91 = arith.subf %81, %90 : vector<8x32xf32>
    %92 = arith.mulf %91, %91 : vector<8x32xf32>
    %cst_31 = arith.constant dense<0.000000e+00> : vector<8xf32>
    %93 = vector.multi_reduction <add>, %92, %cst_31 [1] : vector<8x32xf32> to vector<8xf32>
    %94 = vector.shape_cast %93 : vector<8xf32> to vector<8x1xf32>
    %cst_32 = arith.constant 3.200000e+01 : f32
    %95 = vector.broadcast %cst_32 : f32 to vector<8x1xf32>
    %96 = arith.divf %94, %95 : vector<8x1xf32>
    %cst_33 = arith.constant 9.99999974E-6 : f32
    %97 = vector.broadcast %cst_33 : f32 to vector<8x1xf32>
    %98 = arith.addf %96, %97 : vector<8x1xf32>
    %99 = math.rsqrt %98 : vector<8x1xf32>
    %100 = vector.broadcast %99 : vector<8x1xf32> to vector<8x32xf32>
    %101 = arith.mulf %91, %100 : vector<8x32xf32>
    %102 = vector.broadcast %83 : vector<1x32xf32> to vector<8x32xf32>
    %103 = arith.mulf %101, %102 : vector<8x32xf32>
    %104 = vector.broadcast %85 : vector<1x32xf32> to vector<8x32xf32>
    %105 = arith.addf %103, %104 : vector<8x32xf32>
    %106 = arith.truncf %105 : vector<8x32xf32> to vector<8x32xbf16>
    %c0_34 = arith.constant 0 : index
    %c0_35 = arith.constant 0 : index
    %c0_36 = arith.constant 0 : index
    %107 = vector.load %arg9[%c0_34, %c0_35, %c0_36] : memref<1x32x32xbf16, #tpu.memory_space<vmem>>, vector<1x32x32xbf16>
    %108 = vector.shape_cast %107 : vector<1x32x32xbf16> to vector<32x32xbf16>
    %c0_37 = arith.constant 0 : index
    %c0_38 = arith.constant 0 : index
    %c0_39 = arith.constant 0 : index
    %109 = vector.load %arg10[%c0_37, %c0_38, %c0_39] : memref<1x1x32xf32, #tpu.memory_space<vmem>>, vector<1x1x32xf32>
    %110 = vector.shape_cast %109 : vector<1x1x32xf32> to vector<1x32xf32>
    %cst_40 = arith.constant dense<0.000000e+00> : vector<8x32xf32>
    %111 = tpu.matmul %106, %108, %cst_40 {dimension_numbers = #tpu.dot_dimension_numbers<[1], [0], [0], [1], [0, 0, 1, 1], [], []>} : vector<8x32xbf16>, vector<32x32xbf16>, vector<8x32xf32> -> vector<8x32xf32>
    %112 = vector.broadcast %110 : vector<1x32xf32> to vector<8x32xf32>
    %113 = arith.addf %111, %112 : vector<8x32xf32>
    %c0_41 = arith.constant 0 : index
    %c0_42 = arith.constant 0 : index
    %114 = vector.load %arg2[%c0_41, %c0_42] : memref<16x32xbf16, #tpu.memory_space<vmem>>, vector<16x32xbf16>
    %c0_43 = arith.constant 0 : index
    %c0_44 = arith.constant 0 : index
    %c0_45 = arith.constant 0 : index
    %115 = vector.load %arg11[%c0_43, %c0_44, %c0_45] : memref<1x32x64xbf16, #tpu.memory_space<vmem>>, vector<1x32x64xbf16>
    %116 = vector.shape_cast %115 : vector<1x32x64xbf16> to vector<32x64xbf16>
    %c0_46 = arith.constant 0 : index
    %c0_47 = arith.constant 0 : index
    %c0_48 = arith.constant 0 : index
    %117 = vector.load %arg12[%c0_46, %c0_47, %c0_48] : memref<1x1x64xf32, #tpu.memory_space<vmem>>, vector<1x1x64xf32>
    %118 = vector.shape_cast %117 : vector<1x1x64xf32> to vector<1x64xf32>
    %cst_49 = arith.constant dense<0.000000e+00> : vector<16x64xf32>
    %119 = tpu.matmul %114, %116, %cst_49 {dimension_numbers = #tpu.dot_dimension_numbers<[1], [0], [0], [1], [0, 0, 1, 1], [], []>} : vector<16x32xbf16>, vector<32x64xbf16>, vector<16x64xf32> -> vector<16x64xf32>
    %120 = vector.broadcast %118 : vector<1x64xf32> to vector<16x64xf32>
    %121 = arith.addf %119, %120 : vector<16x64xf32>
    %122 = arith.truncf %121 : vector<16x64xf32> to vector<16x64xbf16>
    %123 = arith.truncf %113 : vector<8x32xf32> to vector<8x32xbf16>
    %124 = vector.extract_strided_slice %123 {offsets = [0, 0], sizes = [8, 8], strides = [1, 1]} : vector<8x32xbf16> to vector<8x8xbf16>
    %125 = vector.extract_strided_slice %123 {offsets = [0, 8], sizes = [8, 8], strides = [1, 1]} : vector<8x32xbf16> to vector<8x8xbf16>
    %126 = vector.extract_strided_slice %123 {offsets = [0, 16], sizes = [8, 8], strides = [1, 1]} : vector<8x32xbf16> to vector<8x8xbf16>
    %127 = vector.extract_strided_slice %123 {offsets = [0, 24], sizes = [8, 8], strides = [1, 1]} : vector<8x32xbf16> to vector<8x8xbf16>
    %128 = vector.shape_cast %124 : vector<8x8xbf16> to vector<1x8x8xbf16>
    %129 = vector.shape_cast %125 : vector<8x8xbf16> to vector<1x8x8xbf16>
    %130 = vector.shape_cast %126 : vector<8x8xbf16> to vector<1x8x8xbf16>
    %131 = vector.shape_cast %127 : vector<8x8xbf16> to vector<1x8x8xbf16>
    %132 = tpu.concatenate %128, %129, %130, %131 in 0 : vector<1x8x8xbf16>, vector<1x8x8xbf16>, vector<1x8x8xbf16>, vector<1x8x8xbf16> -> vector<4x8x8xbf16>
    %133 = vector.extract_strided_slice %122 {offsets = [0, 0], sizes = [16, 32], strides = [1, 1]} : vector<16x64xbf16> to vector<16x32xbf16>
    %134 = vector.extract_strided_slice %133 {offsets = [0, 0], sizes = [16, 8], strides = [1, 1]} : vector<16x32xbf16> to vector<16x8xbf16>
    %135 = vector.extract_strided_slice %133 {offsets = [0, 8], sizes = [16, 8], strides = [1, 1]} : vector<16x32xbf16> to vector<16x8xbf16>
    %136 = vector.extract_strided_slice %133 {offsets = [0, 16], sizes = [16, 8], strides = [1, 1]} : vector<16x32xbf16> to vector<16x8xbf16>
    %137 = vector.extract_strided_slice %133 {offsets = [0, 24], sizes = [16, 8], strides = [1, 1]} : vector<16x32xbf16> to vector<16x8xbf16>
    %138 = vector.shape_cast %134 : vector<16x8xbf16> to vector<1x16x8xbf16>
    %139 = vector.shape_cast %135 : vector<16x8xbf16> to vector<1x16x8xbf16>
    %140 = vector.shape_cast %136 : vector<16x8xbf16> to vector<1x16x8xbf16>
    %141 = vector.shape_cast %137 : vector<16x8xbf16> to vector<1x16x8xbf16>
    %142 = tpu.concatenate %138, %139, %140, %141 in 0 : vector<1x16x8xbf16>, vector<1x16x8xbf16>, vector<1x16x8xbf16>, vector<1x16x8xbf16> -> vector<4x16x8xbf16>
    %143 = vector.extract_strided_slice %122 {offsets = [0, 32], sizes = [16, 32], strides = [1, 1]} : vector<16x64xbf16> to vector<16x32xbf16>
    %144 = vector.extract_strided_slice %143 {offsets = [0, 0], sizes = [16, 8], strides = [1, 1]} : vector<16x32xbf16> to vector<16x8xbf16>
    %145 = vector.extract_strided_slice %143 {offsets = [0, 8], sizes = [16, 8], strides = [1, 1]} : vector<16x32xbf16> to vector<16x8xbf16>
    %146 = vector.extract_strided_slice %143 {offsets = [0, 16], sizes = [16, 8], strides = [1, 1]} : vector<16x32xbf16> to vector<16x8xbf16>
    %147 = vector.extract_strided_slice %143 {offsets = [0, 24], sizes = [16, 8], strides = [1, 1]} : vector<16x32xbf16> to vector<16x8xbf16>
    %148 = vector.shape_cast %144 : vector<16x8xbf16> to vector<1x16x8xbf16>
    %149 = vector.shape_cast %145 : vector<16x8xbf16> to vector<1x16x8xbf16>
    %150 = vector.shape_cast %146 : vector<16x8xbf16> to vector<1x16x8xbf16>
    %151 = vector.shape_cast %147 : vector<16x8xbf16> to vector<1x16x8xbf16>
    %152 = tpu.concatenate %148, %149, %150, %151 in 0 : vector<1x16x8xbf16>, vector<1x16x8xbf16>, vector<1x16x8xbf16>, vector<1x16x8xbf16> -> vector<4x16x8xbf16>
    "tpu.trace_start"() <{level = 10 : i32, message = "hqd,hkd->hqk"}> : () -> ()
    %cst_50 = arith.constant dense<0.000000e+00> : vector<4x8x16xf32>
    %153 = tpu.matmul %132, %142, %cst_50 {dimension_numbers = #tpu.dot_dimension_numbers<[2], [2], [1], [1], [0, 0, 0, 1, 1, 1], [0], [0]>} : vector<4x8x8xbf16>, vector<4x16x8xbf16>, vector<4x8x16xf32> -> vector<4x8x16xf32>
    "tpu.trace_stop"() : () -> ()
    %cst_51 = arith.constant dense<0xFF800000> : vector<4x8xf32>
    %154 = vector.multi_reduction <maximumf>, %153, %cst_51 [2] : vector<4x8x16xf32> to vector<4x8xf32>
    %155 = vector.shape_cast %154 : vector<4x8xf32> to vector<4x8x1xf32>
    %156 = vector.broadcast %155 : vector<4x8x1xf32> to vector<4x8x16xf32>
    %157 = arith.subf %153, %156 : vector<4x8x16xf32>
    %158 = math.exp %157 : vector<4x8x16xf32>
    %cst_52 = arith.constant dense<0.000000e+00> : vector<4x8xf32>
    %159 = vector.multi_reduction <add>, %158, %cst_52 [2] : vector<4x8x16xf32> to vector<4x8xf32>
    %160 = vector.shape_cast %159 : vector<4x8xf32> to vector<4x8x1xf32>
    %161 = tpu.reciprocal %160 {approx = true} : vector<4x8x1xf32> -> vector<4x8x1xf32>
    %162 = vector.broadcast %161 : vector<4x8x1xf32> to vector<4x8x16xf32>
    %163 = arith.mulf %158, %162 : vector<4x8x16xf32>
    %164 = arith.truncf %163 : vector<4x8x16xf32> to vector<4x8x16xbf16>
    "tpu.trace_start"() <{level = 10 : i32, message = "hqk,hkd->hqd"}> : () -> ()
    %cst_53 = arith.constant dense<0.000000e+00> : vector<4x8x8xf32>
    %165 = tpu.matmul %164, %152, %cst_53 {dimension_numbers = #tpu.dot_dimension_numbers<[2], [1], [1], [2], [0, 0, 0, 1, 1, 2], [0], [0]>} : vector<4x8x16xbf16>, vector<4x16x8xbf16>, vector<4x8x8xf32> -> vector<4x8x8xf32>
    "tpu.trace_stop"() : () -> ()
    %166 = vector.extract_strided_slice %165 {offsets = [0, 0, 0], sizes = [1, 8, 8], strides = [1, 1, 1]} : vector<4x8x8xf32> to vector<1x8x8xf32>
    %167 = vector.shape_cast %166 : vector<1x8x8xf32> to vector<8x8xf32>
    %168 = vector.extract_strided_slice %165 {offsets = [1, 0, 0], sizes = [1, 8, 8], strides = [1, 1, 1]} : vector<4x8x8xf32> to vector<1x8x8xf32>
    %169 = vector.shape_cast %168 : vector<1x8x8xf32> to vector<8x8xf32>
    %170 = vector.extract_strided_slice %165 {offsets = [2, 0, 0], sizes = [1, 8, 8], strides = [1, 1, 1]} : vector<4x8x8xf32> to vector<1x8x8xf32>
    %171 = vector.shape_cast %170 : vector<1x8x8xf32> to vector<8x8xf32>
    %172 = vector.extract_strided_slice %165 {offsets = [3, 0, 0], sizes = [1, 8, 8], strides = [1, 1, 1]} : vector<4x8x8xf32> to vector<1x8x8xf32>
    %173 = vector.shape_cast %172 : vector<1x8x8xf32> to vector<8x8xf32>
    %174 = tpu.concatenate %167, %169, %171, %173 in 1 : vector<8x8xf32>, vector<8x8xf32>, vector<8x8xf32>, vector<8x8xf32> -> vector<8x32xf32>
    %175 = arith.truncf %174 : vector<8x32xf32> to vector<8x32xbf16>
    %c0_54 = arith.constant 0 : index
    %c0_55 = arith.constant 0 : index
    %c0_56 = arith.constant 0 : index
    %176 = vector.load %arg13[%c0_54, %c0_55, %c0_56] : memref<1x32x32xbf16, #tpu.memory_space<vmem>>, vector<1x32x32xbf16>
    %177 = vector.shape_cast %176 : vector<1x32x32xbf16> to vector<32x32xbf16>
    %c0_57 = arith.constant 0 : index
    %c0_58 = arith.constant 0 : index
    %c0_59 = arith.constant 0 : index
    %178 = vector.load %arg14[%c0_57, %c0_58, %c0_59] : memref<1x1x32xf32, #tpu.memory_space<vmem>>, vector<1x1x32xf32>
    %179 = vector.shape_cast %178 : vector<1x1x32xf32> to vector<1x32xf32>
    %cst_60 = arith.constant dense<0.000000e+00> : vector<8x32xf32>
    %180 = tpu.matmul %175, %177, %cst_60 {dimension_numbers = #tpu.dot_dimension_numbers<[1], [0], [0], [1], [0, 0, 1, 1], [], []>} : vector<8x32xbf16>, vector<32x32xbf16>, vector<8x32xf32> -> vector<8x32xf32>
    %181 = vector.broadcast %179 : vector<1x32xf32> to vector<8x32xf32>
    %182 = arith.addf %180, %181 : vector<8x32xf32>
    %183 = arith.addf %105, %182 : vector<8x32xf32>
    %184 = vector.extract_strided_slice %5 {offsets = [1, 0, 0], sizes = [1, 1, 32], strides = [1, 1, 1]} : vector<3x1x32xf32> to vector<1x1x32xf32>
    %185 = vector.shape_cast %184 : vector<1x1x32xf32> to vector<1x32xf32>
    %186 = vector.extract_strided_slice %7 {offsets = [1, 0, 0], sizes = [1, 1, 32], strides = [1, 1, 1]} : vector<3x1x32xf32> to vector<1x1x32xf32>
    %187 = vector.shape_cast %186 : vector<1x1x32xf32> to vector<1x32xf32>
    %cst_61 = arith.constant dense<0.000000e+00> : vector<8xf32>
    %188 = vector.multi_reduction <add>, %183, %cst_61 [1] : vector<8x32xf32> to vector<8xf32>
    %189 = vector.shape_cast %188 : vector<8xf32> to vector<8x1xf32>
    %cst_62 = arith.constant 3.200000e+01 : f32
    %190 = vector.broadcast %cst_62 : f32 to vector<8x1xf32>
    %191 = arith.divf %189, %190 : vector<8x1xf32>
    %192 = vector.broadcast %191 : vector<8x1xf32> to vector<8x32xf32>
    %193 = arith.subf %183, %192 : vector<8x32xf32>
    %194 = arith.mulf %193, %193 : vector<8x32xf32>
    %cst_63 = arith.constant dense<0.000000e+00> : vector<8xf32>
    %195 = vector.multi_reduction <add>, %194, %cst_63 [1] : vector<8x32xf32> to vector<8xf32>
    %196 = vector.shape_cast %195 : vector<8xf32> to vector<8x1xf32>
    %cst_64 = arith.constant 3.200000e+01 : f32
    %197 = vector.broadcast %cst_64 : f32 to vector<8x1xf32>
    %198 = arith.divf %196, %197 : vector<8x1xf32>
    %cst_65 = arith.constant 9.99999974E-6 : f32
    %199 = vector.broadcast %cst_65 : f32 to vector<8x1xf32>
    %200 = arith.addf %198, %199 : vector<8x1xf32>
    %201 = math.rsqrt %200 : vector<8x1xf32>
    %202 = vector.broadcast %201 : vector<8x1xf32> to vector<8x32xf32>
    %203 = arith.mulf %193, %202 : vector<8x32xf32>
    %204 = vector.broadcast %185 : vector<1x32xf32> to vector<8x32xf32>
    %205 = arith.mulf %203, %204 : vector<8x32xf32>
    %206 = vector.broadcast %187 : vector<1x32xf32> to vector<8x32xf32>
    %207 = arith.addf %205, %206 : vector<8x32xf32>
    %208 = arith.truncf %207 : vector<8x32xf32> to vector<8x32xbf16>
    %c0_66 = arith.constant 0 : index
    %c0_67 = arith.constant 0 : index
    %c0_68 = arith.constant 0 : index
    %209 = vector.load %arg15[%c0_66, %c0_67, %c0_68] : memref<1x32x64xbf16, #tpu.memory_space<vmem>>, vector<1x32x64xbf16>
    %210 = vector.shape_cast %209 : vector<1x32x64xbf16> to vector<32x64xbf16>
    %c0_69 = arith.constant 0 : index
    %c0_70 = arith.constant 0 : index
    %c0_71 = arith.constant 0 : index
    %211 = vector.load %arg16[%c0_69, %c0_70, %c0_71] : memref<1x1x64xf32, #tpu.memory_space<vmem>>, vector<1x1x64xf32>
    %212 = vector.shape_cast %211 : vector<1x1x64xf32> to vector<1x64xf32>
    %cst_72 = arith.constant dense<0.000000e+00> : vector<8x64xf32>
    %213 = tpu.matmul %208, %210, %cst_72 {dimension_numbers = #tpu.dot_dimension_numbers<[1], [0], [0], [1], [0, 0, 1, 1], [], []>} : vector<8x32xbf16>, vector<32x64xbf16>, vector<8x64xf32> -> vector<8x64xf32>
    %214 = vector.broadcast %212 : vector<1x64xf32> to vector<8x64xf32>
    %215 = arith.addf %213, %214 : vector<8x64xf32>
    %cst_73 = arith.constant 0.000000e+00 : f32
    %216 = vector.broadcast %cst_73 : f32 to vector<8x64xf32>
    %217 = arith.maximumf %215, %216 : vector<8x64xf32>
    %218 = arith.truncf %217 : vector<8x64xf32> to vector<8x64xbf16>
    %c0_74 = arith.constant 0 : index
    %c0_75 = arith.constant 0 : index
    %c0_76 = arith.constant 0 : index
    %219 = vector.load %arg17[%c0_74, %c0_75, %c0_76] : memref<1x64x32xbf16, #tpu.memory_space<vmem>>, vector<1x64x32xbf16>
    %220 = vector.shape_cast %219 : vector<1x64x32xbf16> to vector<64x32xbf16>
    %c0_77 = arith.constant 0 : index
    %c0_78 = arith.constant 0 : index
    %c0_79 = arith.constant 0 : index
    %221 = vector.load %arg18[%c0_77, %c0_78, %c0_79] : memref<1x1x32xf32, #tpu.memory_space<vmem>>, vector<1x1x32xf32>
    %222 = vector.shape_cast %221 : vector<1x1x32xf32> to vector<1x32xf32>
    %cst_80 = arith.constant dense<0.000000e+00> : vector<8x32xf32>
    %223 = tpu.matmul %218, %220, %cst_80 {dimension_numbers = #tpu.dot_dimension_numbers<[1], [0], [0], [1], [0, 0, 1, 1], [], []>} : vector<8x64xbf16>, vector<64x32xbf16>, vector<8x32xf32> -> vector<8x32xf32>
    %224 = vector.broadcast %222 : vector<1x32xf32> to vector<8x32xf32>
    %225 = arith.addf %223, %224 : vector<8x32xf32>
    %226 = arith.addf %207, %225 : vector<8x32xf32>
    %227 = vector.extract_strided_slice %5 {offsets = [2, 0, 0], sizes = [1, 1, 32], strides = [1, 1, 1]} : vector<3x1x32xf32> to vector<1x1x32xf32>
    %228 = vector.shape_cast %227 : vector<1x1x32xf32> to vector<1x32xf32>
    %229 = vector.extract_strided_slice %7 {offsets = [2, 0, 0], sizes = [1, 1, 32], strides = [1, 1, 1]} : vector<3x1x32xf32> to vector<1x1x32xf32>
    %230 = vector.shape_cast %229 : vector<1x1x32xf32> to vector<1x32xf32>
    %cst_81 = arith.constant dense<0.000000e+00> : vector<8xf32>
    %231 = vector.multi_reduction <add>, %226, %cst_81 [1] : vector<8x32xf32> to vector<8xf32>
    %232 = vector.shape_cast %231 : vector<8xf32> to vector<8x1xf32>
    %cst_82 = arith.constant 3.200000e+01 : f32
    %233 = vector.broadcast %cst_82 : f32 to vector<8x1xf32>
    %234 = arith.divf %232, %233 : vector<8x1xf32>
    %235 = vector.broadcast %234 : vector<8x1xf32> to vector<8x32xf32>
    %236 = arith.subf %226, %235 : vector<8x32xf32>
    %237 = arith.mulf %236, %236 : vector<8x32xf32>
    %cst_83 = arith.constant dense<0.000000e+00> : vector<8xf32>
    %238 = vector.multi_reduction <add>, %237, %cst_83 [1] : vector<8x32xf32> to vector<8xf32>
    %239 = vector.shape_cast %238 : vector<8xf32> to vector<8x1xf32>
    %cst_84 = arith.constant 3.200000e+01 : f32
    %240 = vector.broadcast %cst_84 : f32 to vector<8x1xf32>
    %241 = arith.divf %239, %240 : vector<8x1xf32>
    %cst_85 = arith.constant 9.99999974E-6 : f32
    %242 = vector.broadcast %cst_85 : f32 to vector<8x1xf32>
    %243 = arith.addf %241, %242 : vector<8x1xf32>
    %244 = math.rsqrt %243 : vector<8x1xf32>
    %245 = vector.broadcast %244 : vector<8x1xf32> to vector<8x32xf32>
    %246 = arith.mulf %236, %245 : vector<8x32xf32>
    %247 = vector.broadcast %228 : vector<1x32xf32> to vector<8x32xf32>
    %248 = arith.mulf %246, %247 : vector<8x32xf32>
    %249 = vector.broadcast %230 : vector<1x32xf32> to vector<8x32xf32>
    %250 = arith.addf %248, %249 : vector<8x32xf32>
    %c0_86 = arith.constant 0 : index
    %c0_87 = arith.constant 0 : index
    %251 = vector.load %arg26[%c0_86, %c0_87] : memref<8x32xf32, #tpu.memory_space<vmem>>, vector<8x32xf32>
    tpu.vector_store %arg26[%c0_86, %c0_87], %250 {strides = array<i32>} : memref<8x32xf32, #tpu.memory_space<vmem>>, vector<8x32xf32>,
    %c1_i32 = arith.constant 1 : i32
    %252 = arith.cmpi eq, %arg1, %c1_i32 : i32
    %253 = arith.extui %252 : i1 to i32
    %c0_i32_88 = arith.constant 0 : i32
    %254 = arith.cmpi ne, %253, %c0_i32_88 : i32
    scf.if %254 {
      %255 = arith.truncf %250 : vector<8x32xf32> to vector<8x32xbf16>
      %c0_89 = arith.constant 0 : index
      %c0_90 = arith.constant 0 : index
      %256 = vector.load %arg23[%c0_89, %c0_90] : memref<32x4xbf16, #tpu.memory_space<vmem>>, vector<32x4xbf16>
      %c0_91 = arith.constant 0 : index
      %c0_92 = arith.constant 0 : index
      %257 = vector.load %arg24[%c0_91, %c0_92] : memref<1x4xf32, #tpu.memory_space<vmem>>, vector<1x4xf32>
      %cst_93 = arith.constant dense<0.000000e+00> : vector<8x4xf32>
      %258 = tpu.matmul %255, %256, %cst_93 {dimension_numbers = #tpu.dot_dimension_numbers<[1], [0], [0], [1], [0, 0, 1, 1], [], []>} : vector<8x32xbf16>, vector<32x4xbf16>, vector<8x4xf32> -> vector<8x4xf32>
      %259 = vector.broadcast %257 : vector<1x4xf32> to vector<8x4xf32>
      %260 = arith.addf %258, %259 : vector<8x4xf32>
      %c0_94 = arith.constant 0 : index
      %c0_95 = arith.constant 0 : index
      %c0_96 = arith.constant 0 : index
      %261 = vector.load %arg25[%c0_94, %c0_95, %c0_96] : memref<1x8x4xf32, #tpu.memory_space<vmem>>, vector<1x8x4xf32>
      %262 = vector.shape_cast %261 : vector<1x8x4xf32> to vector<8x4xf32>
      %263 = vector.shape_cast %260 : vector<8x4xf32> to vector<1x8x4xf32>
      tpu.vector_store %arg25[%c0_94, %c0_95, %c0_96], %263 {strides = array<i32>} : memref<1x8x4xf32, #tpu.memory_space<vmem>>, vector<1x8x4xf32>,
    } else {
    }
    return
  }
  func.func @transform_0(%arg0: i32, %arg1: i32) -> (i32, i32) {
    %c0_i32 = arith.constant 0 : i32
    %c0_i32_0 = arith.constant 0 : i32
    %c0_i32_1 = arith.constant 0 : i32
    return %c0_i32, %c0_i32_0 : i32, i32
  }
  func.func @transform_1(%arg0: i32, %arg1: i32) -> (i32, i32, i32) {
    %c0_i32 = arith.constant 0 : i32
    %c0_i32_0 = arith.constant 0 : i32
    %c0_i32_1 = arith.constant 0 : i32
    return %arg0, %c0_i32, %c0_i32_0 : i32, i32, i32
  }
  func.func @transform_2(%arg0: i32, %arg1: i32) -> (i32, i32) {
    %c0_i32 = arith.constant 0 : i32
    %c0_i32_0 = arith.constant 0 : i32
    %c0_i32_1 = arith.constant 0 : i32
    return %c0_i32, %c0_i32_0 : i32, i32
  }
  func.func @transform_3(%arg0: i32, %arg1: i32) -> (i32, i32, i32) {
    %c0_i32 = arith.constant 0 : i32
    %c0_i32_0 = arith.constant 0 : i32
    %c0_i32_1 = arith.constant 0 : i32
    return %arg1, %c0_i32, %c0_i32_0 : i32, i32, i32
  }
  func.func @transform_4(%arg0: i32, %arg1: i32) -> (i32, i32, i32) {
    %c0_i32 = arith.constant 0 : i32
    %c0_i32_0 = arith.constant 0 : i32
    %c0_i32_1 = arith.constant 0 : i32
    return %arg1, %c0_i32, %c0_i32_0 : i32, i32, i32
  }
  func.func @transform_5(%arg0: i32, %arg1: i32) -> (i32, i32, i32) {
    %c0_i32 = arith.constant 0 : i32
    %c0_i32_0 = arith.constant 0 : i32
    %c0_i32_1 = arith.constant 0 : i32
    return %arg1, %c0_i32, %c0_i32_0 : i32, i32, i32
  }
  func.func @transform_6(%arg0: i32, %arg1: i32) -> (i32, i32, i32) {
    %c0_i32 = arith.constant 0 : i32
    %c0_i32_0 = arith.constant 0 : i32
    %c0_i32_1 = arith.constant 0 : i32
    return %arg1, %c0_i32, %c0_i32_0 : i32, i32, i32
  }
  func.func @transform_7(%arg0: i32, %arg1: i32) -> (i32, i32, i32) {
    %c0_i32 = arith.constant 0 : i32
    %c0_i32_0 = arith.constant 0 : i32
    %c0_i32_1 = arith.constant 0 : i32
    return %arg1, %c0_i32, %c0_i32_0 : i32, i32, i32
  }
  func.func @transform_8(%arg0: i32, %arg1: i32) -> (i32, i32, i32) {
    %c0_i32 = arith.constant 0 : i32
    %c0_i32_0 = arith.constant 0 : i32
    %c0_i32_1 = arith.constant 0 : i32
    return %arg1, %c0_i32, %c0_i32_0 : i32, i32, i32
  }
  func.func @transform_9(%arg0: i32, %arg1: i32) -> (i32, i32, i32) {
    %c0_i32 = arith.constant 0 : i32
    %c0_i32_0 = arith.constant 0 : i32
    %c0_i32_1 = arith.constant 0 : i32
    return %arg1, %c0_i32, %c0_i32_0 : i32, i32, i32
  }
  func.func @transform_10(%arg0: i32, %arg1: i32) -> (i32, i32, i32) {
    %c0_i32 = arith.constant 0 : i32
    %c0_i32_0 = arith.constant 0 : i32
    %c0_i32_1 = arith.constant 0 : i32
    return %arg1, %c0_i32, %c0_i32_0 : i32, i32, i32
  }
  func.func @transform_11(%arg0: i32, %arg1: i32) -> (i32, i32, i32) {
    %c0_i32 = arith.constant 0 : i32
    %c0_i32_0 = arith.constant 0 : i32
    %c0_i32_1 = arith.constant 0 : i32
    return %arg1, %c0_i32, %c0_i32_0 : i32, i32, i32
  }
  func.func @transform_12(%arg0: i32, %arg1: i32) -> (i32, i32, i32) {
    %c0_i32 = arith.constant 0 : i32
    %c0_i32_0 = arith.constant 0 : i32
    %c0_i32_1 = arith.constant 0 : i32
    return %arg1, %c0_i32, %c0_i32_0 : i32, i32, i32
  }
  func.func @transform_13(%arg0: i32, %arg1: i32) -> (i32, i32, i32) {
    %c0_i32 = arith.constant 0 : i32
    %c0_i32_0 = arith.constant 0 : i32
    %c0_i32_1 = arith.constant 0 : i32
    return %arg1, %c0_i32, %c0_i32_0 : i32, i32, i32
  }
  func.func @transform_14(%arg0: i32, %arg1: i32) -> (i32, i32, i32) {
    %c0_i32 = arith.constant 0 : i32
    %c0_i32_0 = arith.constant 0 : i32
    %c0_i32_1 = arith.constant 0 : i32
    return %arg1, %c0_i32, %c0_i32_0 : i32, i32, i32
  }
  func.func @transform_15(%arg0: i32, %arg1: i32) -> (i32, i32, i32) {
    %c0_i32 = arith.constant 0 : i32
    %c0_i32_0 = arith.constant 0 : i32
    %c0_i32_1 = arith.constant 0 : i32
    return %arg1, %c0_i32, %c0_i32_0 : i32, i32, i32
  }
  func.func @transform_16(%arg0: i32, %arg1: i32) -> (i32, i32, i32) {
    %c0_i32 = arith.constant 0 : i32
    %c0_i32_0 = arith.constant 0 : i32
    %c0_i32_1 = arith.constant 0 : i32
    return %arg1, %c0_i32, %c0_i32_0 : i32, i32, i32
  }
  func.func @transform_17(%arg0: i32, %arg1: i32) -> (i32, i32, i32, i32) {
    %c0_i32 = arith.constant 0 : i32
    %c0_i32_0 = arith.constant 0 : i32
    %c0_i32_1 = arith.constant 0 : i32
    %c0_i32_2 = arith.constant 0 : i32
    return %arg1, %c0_i32, %c0_i32_0, %c0_i32_1 : i32, i32, i32, i32
  }
  func.func @transform_18(%arg0: i32, %arg1: i32) -> (i32, i32, i32, i32) {
    %c0_i32 = arith.constant 0 : i32
    %c0_i32_0 = arith.constant 0 : i32
    %c0_i32_1 = arith.constant 0 : i32
    %c0_i32_2 = arith.constant 0 : i32
    return %arg1, %c0_i32, %c0_i32_0, %c0_i32_1 : i32, i32, i32, i32
  }
  func.func @transform_19(%arg0: i32, %arg1: i32) -> (i32, i32) {
    %c0_i32 = arith.constant 0 : i32
    %c0_i32_0 = arith.constant 0 : i32
    %c0_i32_1 = arith.constant 0 : i32
    return %c0_i32, %c0_i32_0 : i32, i32
  }
  func.func @transform_20(%arg0: i32, %arg1: i32) -> (i32, i32) {
    %c0_i32 = arith.constant 0 : i32
    %c0_i32_0 = arith.constant 0 : i32
    %c0_i32_1 = arith.constant 0 : i32
    return %c0_i32, %c0_i32_0 : i32, i32
  }
  func.func @transform_21(%arg0: i32, %arg1: i32) -> (i32, i32) {
    %c0_i32 = arith.constant 0 : i32
    %c0_i32_0 = arith.constant 0 : i32
    %c0_i32_1 = arith.constant 0 : i32
    return %c0_i32, %c0_i32_0 : i32, i32
  }
  func.func @transform_22(%arg0: i32, %arg1: i32) -> (i32, i32) {
    %c0_i32 = arith.constant 0 : i32
    %c0_i32_0 = arith.constant 0 : i32
    %c0_i32_1 = arith.constant 0 : i32
    return %c0_i32, %c0_i32_0 : i32, i32
  }
  func.func @transform_23(%arg0: i32, %arg1: i32) -> (i32, i32, i32) {
    %c0_i32 = arith.constant 0 : i32
    %c0_i32_0 = arith.constant 0 : i32
    %c0_i32_1 = arith.constant 0 : i32
    return %arg0, %c0_i32, %c0_i32_0 : i32, i32, i32
  }
}

</mosaic_0001>

<llo_original>
// kernel: tpu_custom_call.1
$region0: #{tpu_custom_call.1}
  #allocation0 [shape = 'u32[]', space=smem, size = 0x4, offset = 0x4, fixed_abs, tag = 'smem constant byte address 0x4 - core index']
  #allocation1 [shape = 'u32[144,128]{1,0:T(1,128)}', space=vmem, size = 0x12000, scoped, tag = 'internal scratch']
  #allocation2 [shape = 'f32[8,32]{1,0:T(8,128)}', space=vmem, size = 0x1000, scoped, tag = 'scratch operand']
  %s0 = inlined_call_operand.hbm [shape: bf16[16,32], index: 0, kind: input, shape index: {}]
  %s1 = inlined_call_operand.vmem [shape: f32[2,8,4], index: 1, kind: input, shape index: {}]
  %s2 = inlined_call_operand.hbm [shape: f32[8,8], index: 2, kind: input, shape index: {}]
  %s3 = inlined_call_operand.vmem [shape: bf16[2,32,96], index: 3, kind: input, shape index: {}]
  %s4 = inlined_call_operand.hbm [shape: f32[2,1,96], index: 4, kind: input, shape index: {}]
  %s5 = inlined_call_operand.vmem [shape: bf16[2,32,32], index: 5, kind: input, shape index: {}]
  %s6 = inlined_call_operand.hbm [shape: f32[2,1,32], index: 6, kind: input, shape index: {}]
  %s7 = inlined_call_operand.vmem [shape: bf16[2,32,32], index: 7, kind: input, shape index: {}]
  %s8 = inlined_call_operand.hbm [shape: f32[2,1,32], index: 8, kind: input, shape index: {}]
  %s9 = inlined_call_operand.vmem [shape: bf16[2,32,64], index: 9, kind: input, shape index: {}]
  %s10 = inlined_call_operand.hbm [shape: f32[2,1,64], index: 10, kind: input, shape index: {}]
  %s11 = inlined_call_operand.hbm [shape: bf16[2,32,32], index: 11, kind: input, shape index: {}]
  %s12 = inlined_call_operand.hbm [shape: f32[2,1,32], index: 12, kind: input, shape index: {}]
  %s13 = inlined_call_operand.vmem [shape: bf16[2,32,64], index: 13, kind: input, shape index: {}]
  %s14 = inlined_call_operand.hbm [shape: f32[2,1,64], index: 14, kind: input, shape index: {}]
  %s15 = inlined_call_operand.vmem [shape: bf16[2,64,32], index: 15, kind: input, shape index: {}]
  %s16 = inlined_call_operand.hbm [shape: f32[2,1,32], index: 16, kind: input, shape index: {}]
  %s17 = inlined_call_operand.vmem [shape: f32[2,3,1,32], index: 17, kind: input, shape index: {}]
  %s18 = inlined_call_operand.hbm [shape: f32[2,3,1,32], index: 18, kind: input, shape index: {}]
  %s19 = inlined_call_operand.vmem [shape: bf16[4,32], index: 19, kind: input, shape index: {}]
  %s20 = inlined_call_operand.vmem [shape: f32[1,32], index: 20, kind: input, shape index: {}]
  %s21 = inlined_call_operand.vmem [shape: bf16[32,4], index: 21, kind: input, shape index: {}]
  %s22 = inlined_call_operand.vmem [shape: f32[1,4], index: 22, kind: input, shape index: {}]
  %s23 = inlined_call_operand.vmem [shape: f32[2,8,4], index: 23, kind: output, shape index: {}]
  %s24 = sld [smem:[#allocation0]]
  $region177: #{tpu_custom_call.1} parent=0
    _
  %s26 = ssub.s32 1, %s24
  %s27 = scalar_select 0, %s26, %s24
  $region1: #{tpu_custom_call.1} parent=0
    #allocation3 [shape = 'u8[4096]{0}', space=vmem, size = 0x1000, scoped, tag = 'input window, operand 0, single buffered']
    #allocation4 [shape = 's32[2]{0}', space=sflag, size = 0x8, scoped, tag = 'scoped memory for tpu_custom_call.1']
    #allocation5 [shape = 'u8[4096]{0}', space=vmem, size = 0x1000, scoped, tag = 'input window, operand 2, single buffered']
    #allocation6 [shape = 's32[1]{0}', space=sflag, size = 0x4, scoped, tag = 'scoped memory for tpu_custom_call.1']
    #allocation7 [shape = 'u8[1024]{0}', space=vmem, size = 0x400, scoped, tag = 'input window, operand 4']
    #allocation8 [shape = 'u8[1024]{0}', space=vmem, size = 0x400, scoped, tag = 'input window, operand 6']
    #allocation9 [shape = 'u8[1024]{0}', space=vmem, size = 0x400, scoped, tag = 'input window, operand 8']
    #allocation10 [shape = 'u8[1024]{0}', space=vmem, size = 0x400, scoped, tag = 'input window, operand 10']
    #allocation11 [shape = 'u8[16384]{0}', space=vmem, size = 0x4000, scoped, tag = 'input window, operand 11']
    #allocation12 [shape = 'u8[1024]{0}', space=vmem, size = 0x400, scoped, tag = 'input window, operand 12']
    #allocation13 [shape = 'u8[1024]{0}', space=vmem, size = 0x400, scoped, tag = 'input window, operand 14']
    #allocation14 [shape = 'u8[1024]{0}', space=vmem, size = 0x400, scoped, tag = 'input window, operand 16']
    #allocation15 [shape = 'u8[3072]{0}', space=vmem, size = 0xc00, scoped, tag = 'input window, operand 18']
    %28 = vsyncpa [#allocation4], 0
    %29 = vsyncpa [#allocation6], 0
    loop: start=0, step=1, limit=6
    $region2: #{tpu_custom_call.1} parent=1 // loop_pre_header
      _
    $region3: #{tpu_custom_call.1} parent=1 // loop_header
      %s31 = sphi 0, %s35
      %p32 = scmp.ge.s32.totalorder %s31, 6
      %s38 = sphi 0, %s50
      %s39 = sphi 0, %s46
      %s40 = sphi 0, %s38
      %s41 = sphi 0, %s39
      %s42 = sphi 0, %s40
      %s43 = sphi 0, %s41
      %s51 = sphi 0, %s51
      %s53 = sphi 0, %s51
      %s54 = sphi 0, %s53
      %s68 = sphi 0, %s54
      %s74 = sphi 0, %s76
      %s77 = sphi 0, %s74
      %s78 = sphi 0, %s77
      %s94 = sphi 0, %s78
      %s98 = sphi 0, %s98
      %s100 = sphi 0, %s98
      %s101 = sphi 0, %s100
      %s115 = sphi 0, %s101
      %s121 = sphi 0, %s123
      %s124 = sphi 0, %s121
      %s125 = sphi 0, %s124
      %s141 = sphi 0, %s125
      %s147 = sphi 0, %s149
      %s150 = sphi 0, %s147
      %s151 = sphi 0, %s150
      %s167 = sphi 0, %s151
      %s173 = sphi 0, %s175
      %s176 = sphi 0, %s173
      %s177 = sphi 0, %s176
      %s193 = sphi 0, %s177
      %s199 = sphi 0, %s201
      %s202 = sphi 0, %s199
      %s203 = sphi 0, %s202
      %s219 = sphi 0, %s203
      %s225 = sphi 0, %s227
      %s228 = sphi 0, %s225
      %s229 = sphi 0, %s228
      %s245 = sphi 0, %s229
      %s251 = sphi 0, %s253
      %s254 = sphi 0, %s251
      %s255 = sphi 0, %s254
      %s271 = sphi 0, %s255
      %s277 = sphi 0, %s279
      %s280 = sphi 0, %s277
      %s281 = sphi 0, %s280
      %s297 = sphi 0, %s281
      %s303 = sphi 0, %s305
      %s306 = sphi 0, %s303
      %s307 = sphi 0, %s306
      %s323 = sphi 0, %s307
      %s329 = sphi 0, %s331
      %s332 = sphi 0, %s329
      %s333 = sphi 0, %s332
      %s349 = sphi 0, %s333
      %s355 = sphi 0, %s357
      %s358 = sphi 0, %s355
      %s359 = sphi 0, %s358
      %s375 = sphi 0, %s359
      %s381 = sphi 0, %s383
      %s384 = sphi 0, %s381
      %s385 = sphi 0, %s384
      %s401 = sphi 0, %s385
      %s407 = sphi 0, %s409
      %s410 = sphi 0, %s407
      %s411 = sphi 0, %s410
      %s427 = sphi 0, %s411
      %s433 = sphi 0, %s435
      %s436 = sphi 0, %s433
      %s437 = sphi 0, %s436
      %s453 = sphi 0, %s437
      %s459 = sphi 0, %s461
      %s462 = sphi 0, %s459
      %s463 = sphi 0, %s462
      %s479 = sphi 0, %s463
      %s485 = sphi 0, %s487
      %s488 = sphi 0, %s485
      %s489 = sphi 0, %s488
      %s505 = sphi 0, %s489
      %s511 = sphi 0, %s513
      %s514 = sphi 0, %s511
      %s515 = sphi 0, %s514
      %s531 = sphi 0, %s515
      %s535 = sphi 0, %s535
      %s537 = sphi 0, %s535
      %s538 = sphi 0, %s537
      %s552 = sphi 0, %s538
      %s556 = sphi 0, %s556
      %s558 = sphi 0, %s556
      %s559 = sphi 0, %s558
      %s573 = sphi 0, %s559
      %s577 = sphi 0, %s577
      %s579 = sphi 0, %s577
      %s580 = sphi 0, %s579
      %s594 = sphi 0, %s580
      %s598 = sphi 0, %s598
      %s600 = sphi 0, %s598
      %s601 = sphi 0, %s600
      %s615 = sphi 0, %s601
      %s621 = sphi 0, %s623
      %s624 = sphi 0, %s621
      %s625 = sphi 0, %s624
      %s641 = sphi 0, %s625
    $region4: #{tpu_custom_call.1} parent=1 // loop_header_branch
      %34 = sbr.rel (%p32) target = $region8
    $region5: #{tpu_custom_call.1} parent=1 // loop_body
      %s36 = ssub.s32 %s31, 1
      %s37 = ssub.s32 %s31, 2
      %s44 = sadd.s32 1, %s39
      %p45 = scmp.ge.s32.totalorder %s44, 2
      %s46 = scalar_select %p45, 0, %s44
      %s47 = sadd.s32 1, %s38
      %s48 = scalar_select %p45, %s47, %s38
      %p49 = scmp.ge.s32.totalorder %s48, 2
      %s50 = scalar_select %p49, 0, %s48
      %s52 = sadd.s32 %s51, 1
      %p55 = scmp.eq.s32.totalorder %s31, 3
      %p56 = scmp.ne.s32.totalorder %s51, %s53
      %p57 = scmp.eq.s32.totalorder %s31, 0
      %p58 = por %p56, %p57
      %p59 = scmp.ne.s32.totalorder %s51, %s53
      %p60 = scmp.eq.s32.totalorder %s36, 3
      %p61 = por %p59, %p60
      %p62 = scmp.ne.s32.totalorder %s53, %s54
      %p63 = scmp.eq.s32.totalorder %s36, 0
      %p64 = por %p62, %p63
      %p65 = scmp.ne.s32.totalorder %s53, %s54
      %p66 = scmp.eq.s32.totalorder %s37, 3
      %p67 = por %p65, %p66
      %p69 = scmp.ne.s32.totalorder %s54, %s68
      %p70 = scmp.eq.s32.totalorder %s37, 0
      %p71 = por %p69, %p70
      %s72 = ssub.s32 %s38, %s50
      %p73 = scmp.eq.s32.totalorder %s72, 0
      %s75 = sadd.s32 %s74, 1
      %s76 = scalar_select %p73, %s74, %s75
      %p79 = pneg %p73
      %p80 = scmp.eq.s32.totalorder %s31, 3
      %p81 = por %p79, %p80
      %p82 = scmp.ne.s32.totalorder %s74, %s77
      %p83 = scmp.eq.s32.totalorder %s31, 0
      %p84 = por %p82, %p83
      %p85 = scmp.ne.s32.totalorder %s74, %s77
      %p86 = scmp.eq.s32.totalorder %s36, 3
      %p87 = por %p85, %p86
      %p88 = scmp.ne.s32.totalorder %s77, %s78
      %p89 = scmp.eq.s32.totalorder %s36, 0
      %p90 = por %p88, %p89
      %p91 = scmp.ne.s32.totalorder %s77, %s78
      %p92 = scmp.eq.s32.totalorder %s37, 3
      %p93 = por %p91, %p92
      %p95 = scmp.ne.s32.totalorder %s78, %s94
      %p96 = scmp.eq.s32.totalorder %s37, 0
      %p97 = por %p95, %p96
      %s99 = sadd.s32 %s98, 1
      %p102 = scmp.eq.s32.totalorder %s31, 3
      %p103 = scmp.ne.s32.totalorder %s98, %s100
      %p104 = scmp.eq.s32.totalorder %s31, 0
      %p105 = por %p103, %p104
      %p106 = scmp.ne.s32.totalorder %s98, %s100
      %p107 = scmp.eq.s32.totalorder %s36, 3
      %p108 = por %p106, %p107
      %p109 = scmp.ne.s32.totalorder %s100, %s101
      %p110 = scmp.eq.s32.totalorder %s36, 0
      %p111 = por %p109, %p110
      %p112 = scmp.ne.s32.totalorder %s100, %s101
      %p113 = scmp.eq.s32.totalorder %s37, 3
      %p114 = por %p112, %p113
      %p116 = scmp.ne.s32.totalorder %s101, %s115
      %p117 = scmp.eq.s32.totalorder %s37, 0
      %p118 = por %p116, %p117
      %s119 = ssub.s32 %s39, %s46
      %p120 = scmp.eq.s32.totalorder %s119, 0
      %s122 = sadd.s32 %s121, 1
      %s123 = scalar_select %p120, %s121, %s122
      %p126 = pneg %p120
      %p127 = scmp.eq.s32.totalorder %s31, 3
      %p128 = por %p126, %p127
      %p129 = scmp.ne.s32.totalorder %s121, %s124
      %p130 = scmp.eq.s32.totalorder %s31, 0
      %p131 = por %p129, %p130
      %p132 = scmp.ne.s32.totalorder %s121, %s124
      %p133 = scmp.eq.s32.totalorder %s36, 3
      %p134 = por %p132, %p133
      %p135 = scmp.ne.s32.totalorder %s124, %s125
      %p136 = scmp.eq.s32.totalorder %s36, 0
      %p137 = por %p135, %p136
      %p138 = scmp.ne.s32.totalorder %s124, %s125
      %p139 = scmp.eq.s32.totalorder %s37, 3
      %p140 = por %p138, %p139
      %p142 = scmp.ne.s32.totalorder %s125, %s141
      %p143 = scmp.eq.s32.totalorder %s37, 0
      %p144 = por %p142, %p143
      %s145 = ssub.s32 %s39, %s46
      %p146 = scmp.eq.s32.totalorder %s145, 0
      %s148 = sadd.s32 %s147, 1
      %s149 = scalar_select %p146, %s147, %s148
      %p152 = pneg %p146
      %p153 = scmp.eq.s32.totalorder %s31, 3
      %p154 = por %p152, %p153
      %p155 = scmp.ne.s32.totalorder %s147, %s150
      %p156 = scmp.eq.s32.totalorder %s31, 0
      %p157 = por %p155, %p156
      %p158 = scmp.ne.s32.totalorder %s147, %s150
      %p159 = scmp.eq.s32.totalorder %s36, 3
      %p160 = por %p158, %p159
      %p161 = scmp.ne.s32.totalorder %s150, %s151
      %p162 = scmp.eq.s32.totalorder %s36, 0
      %p163 = por %p161, %p162
      %p164 = scmp.ne.s32.totalorder %s150, %s151
      %p165 = scmp.eq.s32.totalorder %s37, 3
      %p166 = por %p164, %p165
      %p168 = scmp.ne.s32.totalorder %s151, %s167
      %p169 = scmp.eq.s32.totalorder %s37, 0
      %p170 = por %p168, %p169
      %s171 = ssub.s32 %s39, %s46
      %p172 = scmp.eq.s32.totalorder %s171, 0
      %s174 = sadd.s32 %s173, 1
      %s175 = scalar_select %p172, %s173, %s174
      %p178 = pneg %p172
      %p179 = scmp.eq.s32.totalorder %s31, 3
      %p180 = por %p178, %p179
      %p181 = scmp.ne.s32.totalorder %s173, %s176
      %p182 = scmp.eq.s32.totalorder %s31, 0
      %p183 = por %p181, %p182
      %p184 = scmp.ne.s32.totalorder %s173, %s176
      %p185 = scmp.eq.s32.totalorder %s36, 3
      %p186 = por %p184, %p185
      %p187 = scmp.ne.s32.totalorder %s176, %s177
      %p188 = scmp.eq.s32.totalorder %s36, 0
      %p189 = por %p187, %p188
      %p190 = scmp.ne.s32.totalorder %s176, %s177
      %p191 = scmp.eq.s32.totalorder %s37, 3
      %p192 = por %p190, %p191
      %p194 = scmp.ne.s32.totalorder %s177, %s193
      %p195 = scmp.eq.s32.totalorder %s37, 0
      %p196 = por %p194, %p195
      %s197 = ssub.s32 %s39, %s46
      %p198 = scmp.eq.s32.totalorder %s197, 0
      %s200 = sadd.s32 %s199, 1
      %s201 = scalar_select %p198, %s199, %s200
      %p204 = pneg %p198
      %p205 = scmp.eq.s32.totalorder %s31, 3
      %p206 = por %p204, %p205
      %p207 = scmp.ne.s32.totalorder %s199, %s202
      %p208 = scmp.eq.s32.totalorder %s31, 0
      %p209 = por %p207, %p208
      %p210 = scmp.ne.s32.totalorder %s199, %s202
      %p211 = scmp.eq.s32.totalorder %s36, 3
      %p212 = por %p210, %p211
      %p213 = scmp.ne.s32.totalorder %s202, %s203
      %p214 = scmp.eq.s32.totalorder %s36, 0
      %p215 = por %p213, %p214
      %p216 = scmp.ne.s32.totalorder %s202, %s203
      %p217 = scmp.eq.s32.totalorder %s37, 3
      %p218 = por %p216, %p217
      %p220 = scmp.ne.s32.totalorder %s203, %s219
      %p221 = scmp.eq.s32.totalorder %s37, 0
      %p222 = por %p220, %p221
      %s223 = ssub.s32 %s39, %s46
      %p224 = scmp.eq.s32.totalorder %s223, 0
      %s226 = sadd.s32 %s225, 1
      %s227 = scalar_select %p224, %s225, %s226
      %p230 = pneg %p224
      %p231 = scmp.eq.s32.totalorder %s31, 3
      %p232 = por %p230, %p231
      %p233 = scmp.ne.s32.totalorder %s225, %s228
      %p234 = scmp.eq.s32.totalorder %s31, 0
      %p235 = por %p233, %p234
      %p236 = scmp.ne.s32.totalorder %s225, %s228
      %p237 = scmp.eq.s32.totalorder %s36, 3
      %p238 = por %p236, %p237
      %p239 = scmp.ne.s32.totalorder %s228, %s229
      %p240 = scmp.eq.s32.totalorder %s36, 0
      %p241 = por %p239, %p240
      %p242 = scmp.ne.s32.totalorder %s228, %s229
      %p243 = scmp.eq.s32.totalorder %s37, 3
      %p244 = por %p242, %p243
      %p246 = scmp.ne.s32.totalorder %s229, %s245
      %p247 = scmp.eq.s32.totalorder %s37, 0
      %p248 = por %p246, %p247
      %s249 = ssub.s32 %s39, %s46
      %p250 = scmp.eq.s32.totalorder %s249, 0
      %s252 = sadd.s32 %s251, 1
      %s253 = scalar_select %p250, %s251, %s252
      %p256 = pneg %p250
      %p257 = scmp.eq.s32.totalorder %s31, 3
      %p258 = por %p256, %p257
      %p259 = scmp.ne.s32.totalorder %s251, %s254
      %p260 = scmp.eq.s32.totalorder %s31, 0
      %p261 = por %p259, %p260
      %p262 = scmp.ne.s32.totalorder %s251, %s254
      %p263 = scmp.eq.s32.totalorder %s36, 3
      %p264 = por %p262, %p263
      %p265 = scmp.ne.s32.totalorder %s254, %s255
      %p266 = scmp.eq.s32.totalorder %s36, 0
      %p267 = por %p265, %p266
      %p268 = scmp.ne.s32.totalorder %s254, %s255
      %p269 = scmp.eq.s32.totalorder %s37, 3
      %p270 = por %p268, %p269
      %p272 = scmp.ne.s32.totalorder %s255, %s271
      %p273 = scmp.eq.s32.totalorder %s37, 0
      %p274 = por %p272, %p273
      %s275 = ssub.s32 %s39, %s46
      %p276 = scmp.eq.s32.totalorder %s275, 0
      %s278 = sadd.s32 %s277, 1
      %s279 = scalar_select %p276, %s277, %s278
      %p282 = pneg %p276
      %p283 = scmp.eq.s32.totalorder %s31, 3
      %p284 = por %p282, %p283
      %p285 = scmp.ne.s32.totalorder %s277, %s280
      %p286 = scmp.eq.s32.totalorder %s31, 0
      %p287 = por %p285, %p286
      %p288 = scmp.ne.s32.totalorder %s277, %s280
      %p289 = scmp.eq.s32.totalorder %s36, 3
      %p290 = por %p288, %p289
      %p291 = scmp.ne.s32.totalorder %s280, %s281
      %p292 = scmp.eq.s32.totalorder %s36, 0
      %p293 = por %p291, %p292
      %p294 = scmp.ne.s32.totalorder %s280, %s281
      %p295 = scmp.eq.s32.totalorder %s37, 3
      %p296 = por %p294, %p295
      %p298 = scmp.ne.s32.totalorder %s281, %s297
      %p299 = scmp.eq.s32.totalorder %s37, 0
      %p300 = por %p298, %p299
      %s301 = ssub.s32 %s39, %s46
      %p302 = scmp.eq.s32.totalorder %s301, 0
      %s304 = sadd.s32 %s303, 1
      %s305 = scalar_select %p302, %s303, %s304
      %p308 = pneg %p302
      %p309 = scmp.eq.s32.totalorder %s31, 3
      %p310 = por %p308, %p309
      %p311 = scmp.ne.s32.totalorder %s303, %s306
      %p312 = scmp.eq.s32.totalorder %s31, 0
      %p313 = por %p311, %p312
      %p314 = scmp.ne.s32.totalorder %s303, %s306
      %p315 = scmp.eq.s32.totalorder %s36, 3
      %p316 = por %p314, %p315
      %p317 = scmp.ne.s32.totalorder %s306, %s307
      %p318 = scmp.eq.s32.totalorder %s36, 0
      %p319 = por %p317, %p318
      %p320 = scmp.ne.s32.totalorder %s306, %s307
      %p321 = scmp.eq.s32.totalorder %s37, 3
      %p322 = por %p320, %p321
      %p324 = scmp.ne.s32.totalorder %s307, %s323
      %p325 = scmp.eq.s32.totalorder %s37, 0
      %p326 = por %p324, %p325
      %s327 = ssub.s32 %s39, %s46
      %p328 = scmp.eq.s32.totalorder %s327, 0
      %s330 = sadd.s32 %s329, 1
      %s331 = scalar_select %p328, %s329, %s330
      %p334 = pneg %p328
      %p335 = scmp.eq.s32.totalorder %s31, 3
      %p336 = por %p334, %p335
      %p337 = scmp.ne.s32.totalorder %s329, %s332
      %p338 = scmp.eq.s32.totalorder %s31, 0
      %p339 = por %p337, %p338
      %p340 = scmp.ne.s32.totalorder %s329, %s332
      %p341 = scmp.eq.s32.totalorder %s36, 3
      %p342 = por %p340, %p341
      %p343 = scmp.ne.s32.totalorder %s332, %s333
      %p344 = scmp.eq.s32.totalorder %s36, 0
      %p345 = por %p343, %p344
      %p346 = scmp.ne.s32.totalorder %s332, %s333
      %p347 = scmp.eq.s32.totalorder %s37, 3
      %p348 = por %p346, %p347
      %p350 = scmp.ne.s32.totalorder %s333, %s349
      %p351 = scmp.eq.s32.totalorder %s37, 0
      %p352 = por %p350, %p351
      %s353 = ssub.s32 %s39, %s46
      %p354 = scmp.eq.s32.totalorder %s353, 0
      %s356 = sadd.s32 %s355, 1
      %s357 = scalar_select %p354, %s355, %s356
      %p360 = pneg %p354
      %p361 = scmp.eq.s32.totalorder %s31, 3
      %p362 = por %p360, %p361
      %p363 = scmp.ne.s32.totalorder %s355, %s358
      %p364 = scmp.eq.s32.totalorder %s31, 0
      %p365 = por %p363, %p364
      %p366 = scmp.ne.s32.totalorder %s355, %s358
      %p367 = scmp.eq.s32.totalorder %s36, 3
      %p368 = por %p366, %p367
      %p369 = scmp.ne.s32.totalorder %s358, %s359
      %p370 = scmp.eq.s32.totalorder %s36, 0
      %p371 = por %p369, %p370
      %p372 = scmp.ne.s32.totalorder %s358, %s359
      %p373 = scmp.eq.s32.totalorder %s37, 3
      %p374 = por %p372, %p373
      %p376 = scmp.ne.s32.totalorder %s359, %s375
      %p377 = scmp.eq.s32.totalorder %s37, 0
      %p378 = por %p376, %p377
      %s379 = ssub.s32 %s39, %s46
      %p380 = scmp.eq.s32.totalorder %s379, 0
      %s382 = sadd.s32 %s381, 1
      %s383 = scalar_select %p380, %s381, %s382
      %p386 = pneg %p380
      %p387 = scmp.eq.s32.totalorder %s31, 3
      %p388 = por %p386, %p387
      %p389 = scmp.ne.s32.totalorder %s381, %s384
      %p390 = scmp.eq.s32.totalorder %s31, 0
      %p391 = por %p389, %p390
      %p392 = scmp.ne.s32.totalorder %s381, %s384
      %p393 = scmp.eq.s32.totalorder %s36, 3
      %p394 = por %p392, %p393
      %p395 = scmp.ne.s32.totalorder %s384, %s385
      %p396 = scmp.eq.s32.totalorder %s36, 0
      %p397 = por %p395, %p396
      %p398 = scmp.ne.s32.totalorder %s384, %s385
      %p399 = scmp.eq.s32.totalorder %s37, 3
      %p400 = por %p398, %p399
      %p402 = scmp.ne.s32.totalorder %s385, %s401
      %p403 = scmp.eq.s32.totalorder %s37, 0
      %p404 = por %p402, %p403
      %s405 = ssub.s32 %s39, %s46
      %p406 = scmp.eq.s32.totalorder %s405, 0
      %s408 = sadd.s32 %s407, 1
      %s409 = scalar_select %p406, %s407, %s408
      %p412 = pneg %p406
      %p413 = scmp.eq.s32.totalorder %s31, 3
      %p414 = por %p412, %p413
      %p415 = scmp.ne.s32.totalorder %s407, %s410
      %p416 = scmp.eq.s32.totalorder %s31, 0
      %p417 = por %p415, %p416
      %p418 = scmp.ne.s32.totalorder %s407, %s410
      %p419 = scmp.eq.s32.totalorder %s36, 3
      %p420 = por %p418, %p419
      %p421 = scmp.ne.s32.totalorder %s410, %s411
      %p422 = scmp.eq.s32.totalorder %s36, 0
      %p423 = por %p421, %p422
      %p424 = scmp.ne.s32.totalorder %s410, %s411
      %p425 = scmp.eq.s32.totalorder %s37, 3
      %p426 = por %p424, %p425
      %p428 = scmp.ne.s32.totalorder %s411, %s427
      %p429 = scmp.eq.s32.totalorder %s37, 0
      %p430 = por %p428, %p429
      %s431 = ssub.s32 %s39, %s46
      %p432 = scmp.eq.s32.totalorder %s431, 0
      %s434 = sadd.s32 %s433, 1
      %s435 = scalar_select %p432, %s433, %s434
      %p438 = pneg %p432
      %p439 = scmp.eq.s32.totalorder %s31, 3
      %p440 = por %p438, %p439
      %p441 = scmp.ne.s32.totalorder %s433, %s436
      %p442 = scmp.eq.s32.totalorder %s31, 0
      %p443 = por %p441, %p442
      %p444 = scmp.ne.s32.totalorder %s433, %s436
      %p445 = scmp.eq.s32.totalorder %s36, 3
      %p446 = por %p444, %p445
      %p447 = scmp.ne.s32.totalorder %s436, %s437
      %p448 = scmp.eq.s32.totalorder %s36, 0
      %p449 = por %p447, %p448
      %p450 = scmp.ne.s32.totalorder %s436, %s437
      %p451 = scmp.eq.s32.totalorder %s37, 3
      %p452 = por %p450, %p451
      %p454 = scmp.ne.s32.totalorder %s437, %s453
      %p455 = scmp.eq.s32.totalorder %s37, 0
      %p456 = por %p454, %p455
      %s457 = ssub.s32 %s39, %s46
      %p458 = scmp.eq.s32.totalorder %s457, 0
      %s460 = sadd.s32 %s459, 1
      %s461 = scalar_select %p458, %s459, %s460
      %p464 = pneg %p458
      %p465 = scmp.eq.s32.totalorder %s31, 3
      %p466 = por %p464, %p465
      %p467 = scmp.ne.s32.totalorder %s459, %s462
      %p468 = scmp.eq.s32.totalorder %s31, 0
      %p469 = por %p467, %p468
      %p470 = scmp.ne.s32.totalorder %s459, %s462
      %p471 = scmp.eq.s32.totalorder %s36, 3
      %p472 = por %p470, %p471
      %p473 = scmp.ne.s32.totalorder %s462, %s463
      %p474 = scmp.eq.s32.totalorder %s36, 0
      %p475 = por %p473, %p474
      %p476 = scmp.ne.s32.totalorder %s462, %s463
      %p477 = scmp.eq.s32.totalorder %s37, 3
      %p478 = por %p476, %p477
      %p480 = scmp.ne.s32.totalorder %s463, %s479
      %p481 = scmp.eq.s32.totalorder %s37, 0
      %p482 = por %p480, %p481
      %s483 = ssub.s32 %s39, %s46
      %p484 = scmp.eq.s32.totalorder %s483, 0
      %s486 = sadd.s32 %s485, 1
      %s487 = scalar_select %p484, %s485, %s486
      %p490 = pneg %p484
      %p491 = scmp.eq.s32.totalorder %s31, 3
      %p492 = por %p490, %p491
      %p493 = scmp.ne.s32.totalorder %s485, %s488
      %p494 = scmp.eq.s32.totalorder %s31, 0
      %p495 = por %p493, %p494
      %p496 = scmp.ne.s32.totalorder %s485, %s488
      %p497 = scmp.eq.s32.totalorder %s36, 3
      %p498 = por %p496, %p497
      %p499 = scmp.ne.s32.totalorder %s488, %s489
      %p500 = scmp.eq.s32.totalorder %s36, 0
      %p501 = por %p499, %p500
      %p502 = scmp.ne.s32.totalorder %s488, %s489
      %p503 = scmp.eq.s32.totalorder %s37, 3
      %p504 = por %p502, %p503
      %p506 = scmp.ne.s32.totalorder %s489, %s505
      %p507 = scmp.eq.s32.totalorder %s37, 0
      %p508 = por %p506, %p507
      %s509 = ssub.s32 %s39, %s46
      %p510 = scmp.eq.s32.totalorder %s509, 0
      %s512 = sadd.s32 %s511, 1
      %s513 = scalar_select %p510, %s511, %s512
      %p516 = pneg %p510
      %p517 = scmp.eq.s32.totalorder %s31, 3
      %p518 = por %p516, %p517
      %p519 = scmp.ne.s32.totalorder %s511, %s514
      %p520 = scmp.eq.s32.totalorder %s31, 0
      %p521 = por %p519, %p520
      %p522 = scmp.ne.s32.totalorder %s511, %s514
      %p523 = scmp.eq.s32.totalorder %s36, 3
      %p524 = por %p522, %p523
      %p525 = scmp.ne.s32.totalorder %s514, %s515
      %p526 = scmp.eq.s32.totalorder %s36, 0
      %p527 = por %p525, %p526
      %p528 = scmp.ne.s32.totalorder %s514, %s515
      %p529 = scmp.eq.s32.totalorder %s37, 3
      %p530 = por %p528, %p529
      %p532 = scmp.ne.s32.totalorder %s515, %s531
      %p533 = scmp.eq.s32.totalorder %s37, 0
      %p534 = por %p532, %p533
      %s536 = sadd.s32 %s535, 1
      %p539 = scmp.eq.s32.totalorder %s31, 3
      %p540 = scmp.ne.s32.totalorder %s535, %s537
      %p541 = scmp.eq.s32.totalorder %s31, 0
      %p542 = por %p540, %p541
      %p543 = scmp.ne.s32.totalorder %s535, %s537
      %p544 = scmp.eq.s32.totalorder %s36, 3
      %p545 = por %p543, %p544
      %p546 = scmp.ne.s32.totalorder %s537, %s538
      %p547 = scmp.eq.s32.totalorder %s36, 0
      %p548 = por %p546, %p547
      %p549 = scmp.ne.s32.totalorder %s537, %s538
      %p550 = scmp.eq.s32.totalorder %s37, 3
      %p551 = por %p549, %p550
      %p553 = scmp.ne.s32.totalorder %s538, %s552
      %p554 = scmp.eq.s32.totalorder %s37, 0
      %p555 = por %p553, %p554
      %s557 = sadd.s32 %s556, 1
      %p560 = scmp.eq.s32.totalorder %s31, 3
      %p561 = scmp.ne.s32.totalorder %s556, %s558
      %p562 = scmp.eq.s32.totalorder %s31, 0
      %p563 = por %p561, %p562
      %p564 = scmp.ne.s32.totalorder %s556, %s558
      %p565 = scmp.eq.s32.totalorder %s36, 3
      %p566 = por %p564, %p565
      %p567 = scmp.ne.s32.totalorder %s558, %s559
      %p568 = scmp.eq.s32.totalorder %s36, 0
      %p569 = por %p567, %p568
      %p570 = scmp.ne.s32.totalorder %s558, %s559
      %p571 = scmp.eq.s32.totalorder %s37, 3
      %p572 = por %p570, %p571
      %p574 = scmp.ne.s32.totalorder %s559, %s573
      %p575 = scmp.eq.s32.totalorder %s37, 0
      %p576 = por %p574, %p575
      %s578 = sadd.s32 %s577, 1
      %p581 = scmp.eq.s32.totalorder %s31, 3
      %p582 = scmp.ne.s32.totalorder %s577, %s579
      %p583 = scmp.eq.s32.totalorder %s31, 0
      %p584 = por %p582, %p583
      %p585 = scmp.ne.s32.totalorder %s577, %s579
      %p586 = scmp.eq.s32.totalorder %s36, 3
      %p587 = por %p585, %p586
      %p588 = scmp.ne.s32.totalorder %s579, %s580
      %p589 = scmp.eq.s32.totalorder %s36, 0
      %p590 = por %p588, %p589
      %p591 = scmp.ne.s32.totalorder %s579, %s580
      %p592 = scmp.eq.s32.totalorder %s37, 3
      %p593 = por %p591, %p592
      %p595 = scmp.ne.s32.totalorder %s580, %s594
      %p596 = scmp.eq.s32.totalorder %s37, 0
      %p597 = por %p595, %p596
      %s599 = sadd.s32 %s598, 1
      %p602 = scmp.eq.s32.totalorder %s31, 3
      %p603 = scmp.ne.s32.totalorder %s598, %s600
      %p604 = scmp.eq.s32.totalorder %s31, 0
      %p605 = por %p603, %p604
      %p606 = scmp.ne.s32.totalorder %s598, %s600
      %p607 = scmp.eq.s32.totalorder %s36, 3
      %p608 = por %p606, %p607
      %p609 = scmp.ne.s32.totalorder %s600, %s601
      %p610 = scmp.eq.s32.totalorder %s36, 0
      %p611 = por %p609, %p610
      %p612 = scmp.ne.s32.totalorder %s600, %s601
      %p613 = scmp.eq.s32.totalorder %s37, 3
      %p614 = por %p612, %p613
      %p616 = scmp.ne.s32.totalorder %s601, %s615
      %p617 = scmp.eq.s32.totalorder %s37, 0
      %p618 = por %p616, %p617
      %s619 = ssub.s32 %s38, %s50
      %p620 = scmp.eq.s32.totalorder %s619, 0
      %s622 = sadd.s32 %s621, 1
      %s623 = scalar_select %p620, %s621, %s622
      %p626 = pneg %p620
      %p627 = scmp.eq.s32.totalorder %s31, 3
      %p628 = por %p626, %p627
      %p629 = scmp.ne.s32.totalorder %s621, %s624
      %p630 = scmp.eq.s32.totalorder %s31, 0
      %p631 = por %p629, %p630
      %p632 = scmp.ne.s32.totalorder %s621, %s624
      %p633 = scmp.eq.s32.totalorder %s36, 3
      %p634 = por %p632, %p633
      %p635 = scmp.ne.s32.totalorder %s624, %s625
      %p636 = scmp.eq.s32.totalorder %s36, 0
      %p637 = por %p635, %p636
      %p638 = scmp.ne.s32.totalorder %s624, %s625
      %p639 = scmp.eq.s32.totalorder %s37, 3
      %p640 = por %p638, %p639
      %p642 = scmp.ne.s32.totalorder %s625, %s641
      %p643 = scmp.eq.s32.totalorder %s37, 0
      %p644 = por %p642, %p643
      %p645 = scmp.le.s32.totalorder 1, %s31
      %p646 = scmp.lt.s32.totalorder %s31, 5
      %p647 = pnand %p645, %p646
      %p648 = pneg %p647
      // Predicated region
      $region9: #{tpu_custom_call.1} parent=5 // pred_check
        _
      $region10: #{tpu_custom_call.1} parent=5 // pred_check_branch
        %650 = sbr.rel (%p647) target = $region12
      $region11: #{tpu_custom_call.1} parent=5 // pred_region
        %s651 = ssub.s32 %s31, 1
        // Predicated region
        $region13: #{tpu_custom_call.1} parent=11 // pred_check
          %p652 = pneg %p64
        $region14: #{tpu_custom_call.1} parent=11 // pred_check_branch
          %654 = sbr.rel (%p652) target = $region16
        $region15: #{tpu_custom_call.1} parent=11 // pred_region
          %s656 = ssub.s32 128, 128
          %657 = vsyncadd [#allocation4], %s656
          %s658 = sshll.u32 [#allocation3], 4
          %s659 = int_to_ptr.vmem [resolvable:$true] %s658
          %664 = dma.hbm_to_vmem [thread:$0]  %s0, 128, %s659, [#allocation4], 64, 64, 4
        $region16: #{tpu_custom_call.1} parent=11 // pred_fallthru
          _
        // Predicated region
        $region17: #{tpu_custom_call.1} parent=11 // pred_check
          %p665 = pneg %p111
        $region18: #{tpu_custom_call.1} parent=11 // pred_check_branch
          %667 = sbr.rel (%p665) target = $region20
        $region19: #{tpu_custom_call.1} parent=11 // pred_region
          %s669 = ssub.s32 128, 128
          %670 = vsyncadd [#allocation6], %s669
          %s672 = sshll.u32 [#allocation5], 4
          %s673 = int_to_ptr.vmem [resolvable:$true] %s672
          %675 = dma.hbm_to_vmem [thread:$0]  %s2, 128, %s673, [#allocation6]
        $region20: #{tpu_custom_call.1} parent=11 // pred_fallthru
          _
        // Predicated region
        $region21: #{tpu_custom_call.1} parent=11 // pred_check
          %p676 = pneg %p548
        $region22: #{tpu_custom_call.1} parent=11 // pred_check_branch
          %678 = sbr.rel (%p676) target = $region24
        $region23: #{tpu_custom_call.1} parent=11 // pred_region
          _
        $region24: #{tpu_custom_call.1} parent=11 // pred_fallthru
          _
        // Predicated region
        $region25: #{tpu_custom_call.1} parent=11 // pred_check
          %p679 = pneg %p569
        $region26: #{tpu_custom_call.1} parent=11 // pred_check_branch
          %681 = sbr.rel (%p679) target = $region28
        $region27: #{tpu_custom_call.1} parent=11 // pred_region
          _
        $region28: #{tpu_custom_call.1} parent=11 // pred_fallthru
          _
        // Predicated region
        $region29: #{tpu_custom_call.1} parent=11 // pred_check
          %p682 = pneg %p590
        $region30: #{tpu_custom_call.1} parent=11 // pred_check_branch
          %684 = sbr.rel (%p682) target = $region32
        $region31: #{tpu_custom_call.1} parent=11 // pred_region
          _
        $region32: #{tpu_custom_call.1} parent=11 // pred_fallthru
          _
        // Predicated region
        $region33: #{tpu_custom_call.1} parent=11 // pred_check
          %p685 = pneg %p611
        $region34: #{tpu_custom_call.1} parent=11 // pred_check_branch
          %687 = sbr.rel (%p685) target = $region36
        $region35: #{tpu_custom_call.1} parent=11 // pred_region
          _
        $region36: #{tpu_custom_call.1} parent=11 // pred_fallthru
          _
      $region12: #{tpu_custom_call.1} parent=5 // pred_fallthru
        _
      %p688 = scmp.lt.s32.totalorder %s31, 4
      // Predicated region
      $region37: #{tpu_custom_call.1} parent=5 // pred_check
        %p689 = pneg %p688
      $region38: #{tpu_custom_call.1} parent=5 // pred_check_branch
        %691 = sbr.rel (%p689) target = $region40
      $region39: #{tpu_custom_call.1} parent=5 // pred_region
        // Predicated region
        $region41: #{tpu_custom_call.1} parent=39 // pred_check
          %p692 = pneg %p84
        $region42: #{tpu_custom_call.1} parent=39 // pred_check_branch
          %694 = sbr.rel (%p692) target = $region44
        $region43: #{tpu_custom_call.1} parent=39 // pred_region
          %p695 = scmp.lt.s32.totalorder %s38, 1
          %s696 = scalar_select %p695, %s38, 1
          %s697 = smul.addr %s696, 8
          %s698 = scalar_lea.vmem %s1, %s697
        $region44: #{tpu_custom_call.1} parent=39 // pred_fallthru
          _
        // Predicated region
        $region45: #{tpu_custom_call.1} parent=39 // pred_check
          %p699 = pneg %p131
        $region46: #{tpu_custom_call.1} parent=39 // pred_check_branch
          %701 = sbr.rel (%p699) target = $region48
        $region47: #{tpu_custom_call.1} parent=39 // pred_region
          %p702 = scmp.lt.s32.totalorder %s39, 1
          %s703 = scalar_select %p702, %s39, 1
          %s704 = smul.addr %s703, 4
          %s705 = smul.addr %s704, 4
          %s706 = scalar_lea.vmem %s3, %s705
        $region48: #{tpu_custom_call.1} parent=39 // pred_fallthru
          _
        // Predicated region
        $region49: #{tpu_custom_call.1} parent=39 // pred_check
          %p707 = pneg %p157
        $region50: #{tpu_custom_call.1} parent=39 // pred_check_branch
          %709 = sbr.rel (%p707) target = $region52
        $region51: #{tpu_custom_call.1} parent=39 // pred_region
          %s710 = sand.u32 %s31, 1
          %s711 = scalar_lea.sflag [#allocation4], %s710
          %s712 = sand.u32 %s147, 1
          %s713 = scalar_lea.vmem [#allocation7], %s712
          %s715 = ssub.s32 16, 16
          %716 = vsyncadd %s711, %s715
          %s717 = smul.addr %s39, 16
          %s718 = scalar_lea.hbm %s4, %s717
          %s720 = sshll.u32 %s713, 4
          %s721 = int_to_ptr.vmem [resolvable:$true] %s720
          %723 = dma.hbm_to_vmem [thread:$0]  %s718, 16, %s721, %s711
        $region52: #{tpu_custom_call.1} parent=39 // pred_fallthru
          _
        // Predicated region
        $region53: #{tpu_custom_call.1} parent=39 // pred_check
          %p724 = pneg %p183
        $region54: #{tpu_custom_call.1} parent=39 // pred_check_branch
          %726 = sbr.rel (%p724) target = $region56
        $region55: #{tpu_custom_call.1} parent=39 // pred_region
          %p727 = scmp.lt.s32.totalorder %s39, 1
          %s728 = scalar_select %p727, %s39, 1
          %s729 = smul.addr %s728, 4
          %s730 = smul.addr %s729, 4
          %s731 = scalar_lea.vmem %s5, %s730
        $region56: #{tpu_custom_call.1} parent=39 // pred_fallthru
          _
        // Predicated region
        $region57: #{tpu_custom_call.1} parent=39 // pred_check
          %p732 = pneg %p209
        $region58: #{tpu_custom_call.1} parent=39 // pred_check_branch
          %734 = sbr.rel (%p732) target = $region60
        $region59: #{tpu_custom_call.1} parent=39 // pred_region
          %s735 = sand.u32 %s31, 1
          %s736 = scalar_lea.sflag [#allocation4], %s735
          %s737 = sand.u32 %s199, 1
          %s738 = scalar_lea.vmem [#allocation8], %s737
          %s740 = ssub.s32 16, 16
          %741 = vsyncadd %s736, %s740
          %s742 = smul.addr %s39, 16
          %s743 = scalar_lea.hbm %s6, %s742
          %s745 = sshll.u32 %s738, 4
          %s746 = int_to_ptr.vmem [resolvable:$true] %s745
          %748 = dma.hbm_to_vmem [thread:$0]  %s743, 16, %s746, %s736
        $region60: #{tpu_custom_call.1} parent=39 // pred_fallthru
          _
        // Predicated region
        $region61: #{tpu_custom_call.1} parent=39 // pred_check
          %p749 = pneg %p235
        $region62: #{tpu_custom_call.1} parent=39 // pred_check_branch
          %751 = sbr.rel (%p749) target = $region64
        $region63: #{tpu_custom_call.1} parent=39 // pred_region
          %p752 = scmp.lt.s32.totalorder %s39, 1
          %s753 = scalar_select %p752, %s39, 1
          %s754 = smul.addr %s753, 4
          %s755 = smul.addr %s754, 4
          %s756 = scalar_lea.vmem %s7, %s755
        $region64: #{tpu_custom_call.1} parent=39 // pred_fallthru
          _
        // Predicated region
        $region65: #{tpu_custom_call.1} parent=39 // pred_check
          %p757 = pneg %p261
        $region66: #{tpu_custom_call.1} parent=39 // pred_check_branch
          %759 = sbr.rel (%p757) target = $region68
        $region67: #{tpu_custom_call.1} parent=39 // pred_region
          %s760 = sand.u32 %s31, 1
          %s761 = scalar_lea.sflag [#allocation4], %s760
          %s762 = sand.u32 %s251, 1
          %s763 = scalar_lea.vmem [#allocation9], %s762
          %s765 = ssub.s32 16, 16
          %766 = vsyncadd %s761, %s765
          %s767 = smul.addr %s39, 16
          %s768 = scalar_lea.hbm %s8, %s767
          %s770 = sshll.u32 %s763, 4
          %s771 = int_to_ptr.vmem [resolvable:$true] %s770
          %773 = dma.hbm_to_vmem [thread:$0]  %s768, 16, %s771, %s761
        $region68: #{tpu_custom_call.1} parent=39 // pred_fallthru
          _
        // Predicated region
        $region69: #{tpu_custom_call.1} parent=39 // pred_check
          %p774 = pneg %p287
        $region70: #{tpu_custom_call.1} parent=39 // pred_check_branch
          %776 = sbr.rel (%p774) target = $region72
        $region71: #{tpu_custom_call.1} parent=39 // pred_region
          %p777 = scmp.lt.s32.totalorder %s39, 1
          %s778 = scalar_select %p777, %s39, 1
          %s779 = smul.addr %s778, 4
          %s780 = smul.addr %s779, 4
          %s781 = scalar_lea.vmem %s9, %s780
        $region72: #{tpu_custom_call.1} parent=39 // pred_fallthru
          _
        // Predicated region
        $region73: #{tpu_custom_call.1} parent=39 // pred_check
          %p782 = pneg %p313
        $region74: #{tpu_custom_call.1} parent=39 // pred_check_branch
          %784 = sbr.rel (%p782) target = $region76
        $region75: #{tpu_custom_call.1} parent=39 // pred_region
          %s785 = sand.u32 %s31, 1
          %s786 = scalar_lea.sflag [#allocation4], %s785
          %s787 = sand.u32 %s303, 1
          %s788 = scalar_lea.vmem [#allocation10], %s787
          %s790 = ssub.s32 16, 16
          %791 = vsyncadd %s786, %s790
          %s792 = smul.addr %s39, 16
          %s793 = scalar_lea.hbm %s10, %s792
          %s795 = sshll.u32 %s788, 4
          %s796 = int_to_ptr.vmem [resolvable:$true] %s795
          %798 = dma.hbm_to_vmem [thread:$0]  %s793, 16, %s796, %s786
        $region76: #{tpu_custom_call.1} parent=39 // pred_fallthru
          _
        // Predicated region
        $region77: #{tpu_custom_call.1} parent=39 // pred_check
          %p799 = pneg %p339
        $region78: #{tpu_custom_call.1} parent=39 // pred_check_branch
          %801 = sbr.rel (%p799) target = $region80
        $region79: #{tpu_custom_call.1} parent=39 // pred_region
          %s802 = sand.u32 %s31, 1
          %s803 = scalar_lea.sflag [#allocation4], %s802
          %s804 = sand.u32 %s329, 1
          %s805 = smul.addr %s804, 16
          %s806 = scalar_lea.vmem [#allocation11], %s805
          %s808 = ssub.s32 256, 256
          %809 = vsyncadd %s803, %s808
          %s810 = smul.addr %s39, 4
          %s811 = smul.addr %s810, 64
          %s812 = scalar_lea.hbm %s11, %s811
          %s813 = sshll.u32 %s806, 4
          %s814 = int_to_ptr.vmem [resolvable:$true] %s813
          %819 = dma.hbm_to_vmem [thread:$0]  %s812, 256, %s814, %s803, 64, 64, 4
        $region80: #{tpu_custom_call.1} parent=39 // pred_fallthru
          _
        // Predicated region
        $region81: #{tpu_custom_call.1} parent=39 // pred_check
          %p820 = pneg %p365
        $region82: #{tpu_custom_call.1} parent=39 // pred_check_branch
          %822 = sbr.rel (%p820) target = $region84
        $region83: #{tpu_custom_call.1} parent=39 // pred_region
          %s823 = sand.u32 %s31, 1
          %s824 = scalar_lea.sflag [#allocation4], %s823
          %s825 = sand.u32 %s355, 1
          %s826 = scalar_lea.vmem [#allocation12], %s825
          %s828 = ssub.s32 16, 16
          %829 = vsyncadd %s824, %s828
          %s830 = smul.addr %s39, 16
          %s831 = scalar_lea.hbm %s12, %s830
          %s833 = sshll.u32 %s826, 4
          %s834 = int_to_ptr.vmem [resolvable:$true] %s833
          %836 = dma.hbm_to_vmem [thread:$0]  %s831, 16, %s834, %s824
        $region84: #{tpu_custom_call.1} parent=39 // pred_fallthru
          _
        // Predicated region
        $region85: #{tpu_custom_call.1} parent=39 // pred_check
          %p837 = pneg %p391
        $region86: #{tpu_custom_call.1} parent=39 // pred_check_branch
          %839 = sbr.rel (%p837) target = $region88
        $region87: #{tpu_custom_call.1} parent=39 // pred_region
          %p840 = scmp.lt.s32.totalorder %s39, 1
          %s841 = scalar_select %p840, %s39, 1
          %s842 = smul.addr %s841, 4
          %s843 = smul.addr %s842, 4
          %s844 = scalar_lea.vmem %s13, %s843
        $region88: #{tpu_custom_call.1} parent=39 // pred_fallthru
          _
        // Predicated region
        $region89: #{tpu_custom_call.1} parent=39 // pred_check
          %p845 = pneg %p417
        $region90: #{tpu_custom_call.1} parent=39 // pred_check_branch
          %847 = sbr.rel (%p845) target = $region92
        $region91: #{tpu_custom_call.1} parent=39 // pred_region
          %s848 = sand.u32 %s31, 1
          %s849 = scalar_lea.sflag [#allocation4], %s848
          %s850 = sand.u32 %s407, 1
          %s851 = scalar_lea.vmem [#allocation13], %s850
          %s853 = ssub.s32 16, 16
          %854 = vsyncadd %s849, %s853
          %s855 = smul.addr %s39, 16
          %s856 = scalar_lea.hbm %s14, %s855
          %s858 = sshll.u32 %s851, 4
          %s859 = int_to_ptr.vmem [resolvable:$true] %s858
          %861 = dma.hbm_to_vmem [thread:$0]  %s856, 16, %s859, %s849
        $region92: #{tpu_custom_call.1} parent=39 // pred_fallthru
          _
        // Predicated region
        $region93: #{tpu_custom_call.1} parent=39 // pred_check
          %p862 = pneg %p443
        $region94: #{tpu_custom_call.1} parent=39 // pred_check_branch
          %864 = sbr.rel (%p862) target = $region96
        $region95: #{tpu_custom_call.1} parent=39 // pred_region
          %p865 = scmp.lt.s32.totalorder %s39, 1
          %s866 = scalar_select %p865, %s39, 1
          %s867 = smul.addr %s866, 8
          %s868 = smul.addr %s867, 4
          %s869 = scalar_lea.vmem %s15, %s868
        $region96: #{tpu_custom_call.1} parent=39 // pred_fallthru
          _
        // Predicated region
        $region97: #{tpu_custom_call.1} parent=39 // pred_check
          %p870 = pneg %p469
        $region98: #{tpu_custom_call.1} parent=39 // pred_check_branch
          %872 = sbr.rel (%p870) target = $region100
        $region99: #{tpu_custom_call.1} parent=39 // pred_region
          %s873 = sand.u32 %s31, 1
          %s874 = scalar_lea.sflag [#allocation4], %s873
          %s875 = sand.u32 %s459, 1
          %s876 = scalar_lea.vmem [#allocation14], %s875
          %s878 = ssub.s32 16, 16
          %879 = vsyncadd %s874, %s878
          %s880 = smul.addr %s39, 16
          %s881 = scalar_lea.hbm %s16, %s880
          %s883 = sshll.u32 %s876, 4
          %s884 = int_to_ptr.vmem [resolvable:$true] %s883
          %886 = dma.hbm_to_vmem [thread:$0]  %s881, 16, %s884, %s874
        $region100: #{tpu_custom_call.1} parent=39 // pred_fallthru
          _
        // Predicated region
        $region101: #{tpu_custom_call.1} parent=39 // pred_check
          %p887 = pneg %p495
        $region102: #{tpu_custom_call.1} parent=39 // pred_check_branch
          %889 = sbr.rel (%p887) target = $region104
        $region103: #{tpu_custom_call.1} parent=39 // pred_region
          %p890 = scmp.lt.s32.totalorder %s39, 1
          %s891 = scalar_select %p890, %s39, 1
          %s892 = smul.addr %s891, 3
          %s893 = scalar_lea.vmem %s17, %s892
        $region104: #{tpu_custom_call.1} parent=39 // pred_fallthru
          _
        // Predicated region
        $region105: #{tpu_custom_call.1} parent=39 // pred_check
          %p894 = pneg %p521
        $region106: #{tpu_custom_call.1} parent=39 // pred_check_branch
          %896 = sbr.rel (%p894) target = $region108
        $region107: #{tpu_custom_call.1} parent=39 // pred_region
          %s897 = sand.u32 %s31, 1
          %s898 = scalar_lea.sflag [#allocation4], %s897
          %s899 = sand.u32 %s511, 1
          %s900 = smul.addr %s899, 3
          %s901 = scalar_lea.vmem [#allocation15], %s900
          %s903 = ssub.s32 48, 48
          %904 = vsyncadd %s898, %s903
          %s905 = smul.addr %s39, 3
          %s906 = smul.addr %s905, 16
          %s907 = scalar_lea.hbm %s18, %s906
          %s908 = sshll.u32 %s901, 4
          %s909 = int_to_ptr.vmem [resolvable:$true] %s908
          %914 = dma.hbm_to_vmem [thread:$0]  %s907, 48, %s909, %s898, 16, 16, 1
        $region108: #{tpu_custom_call.1} parent=39 // pred_fallthru
          _
      $region40: #{tpu_custom_call.1} parent=5 // pred_fallthru
        _
      %p915 = scmp.le.s32.totalorder 1, %s31
      %p916 = scmp.lt.s32.totalorder %s31, 5
      %p917 = pnand %p915, %p916
      %p918 = pneg %p917
      // Predicated region
      $region109: #{tpu_custom_call.1} parent=5 // pred_check
        _
      $region110: #{tpu_custom_call.1} parent=5 // pred_check_branch
        %920 = sbr.rel (%p917) target = $region112
      $region111: #{tpu_custom_call.1} parent=5 // pred_region
        %s921 = ssub.s32 %s31, 1
        // Predicated region
        $region113: #{tpu_custom_call.1} parent=111 // pred_check
          %p922 = pneg %p64
        $region114: #{tpu_custom_call.1} parent=111 // pred_check_branch
          %924 = sbr.rel (%p922) target = $region116
        $region115: #{tpu_custom_call.1} parent=111 // pred_region
          %925 = dma.done [#allocation4], 128
        $region116: #{tpu_custom_call.1} parent=111 // pred_fallthru
          _
        // Predicated region
        $region117: #{tpu_custom_call.1} parent=111 // pred_check
          %p926 = pneg %p111
        $region118: #{tpu_custom_call.1} parent=111 // pred_check_branch
          %928 = sbr.rel (%p926) target = $region120
        $region119: #{tpu_custom_call.1} parent=111 // pred_region
          %929 = dma.done [#allocation6], 128
        $region120: #{tpu_custom_call.1} parent=111 // pred_fallthru
          _
        %s930 = sand.u32 %s36, 1
        %s931 = scalar_lea.sflag [#allocation4], %s930
        %s932 = sand.u32 %s150, 1
        %s933 = scalar_lea.vmem [#allocation7], %s932
        // Predicated region
        $region121: #{tpu_custom_call.1} parent=111 // pred_check
          %p934 = pneg %p163
        $region122: #{tpu_custom_call.1} parent=111 // pred_check_branch
          %936 = sbr.rel (%p934) target = $region124
        $region123: #{tpu_custom_call.1} parent=111 // pred_region
          %937 = dma.done %s931, 16
        $region124: #{tpu_custom_call.1} parent=111 // pred_fallthru
          _
        %s938 = sand.u32 %s36, 1
        %s939 = scalar_lea.sflag [#allocation4], %s938
        %s940 = sand.u32 %s202, 1
        %s941 = scalar_lea.vmem [#allocation8], %s940
        // Predicated region
        $region125: #{tpu_custom_call.1} parent=111 // pred_check
          %p942 = pneg %p215
        $region126: #{tpu_custom_call.1} parent=111 // pred_check_branch
          %944 = sbr.rel (%p942) target = $region128
        $region127: #{tpu_custom_call.1} parent=111 // pred_region
          %945 = dma.done %s939, 16
        $region128: #{tpu_custom_call.1} parent=111 // pred_fallthru
          _
        %s946 = sand.u32 %s36, 1
        %s947 = scalar_lea.sflag [#allocation4], %s946
        %s948 = sand.u32 %s254, 1
        %s949 = scalar_lea.vmem [#allocation9], %s948
        // Predicated region
        $region129: #{tpu_custom_call.1} parent=111 // pred_check
          %p950 = pneg %p267
        $region130: #{tpu_custom_call.1} parent=111 // pred_check_branch
          %952 = sbr.rel (%p950) target = $region132
        $region131: #{tpu_custom_call.1} parent=111 // pred_region
          %953 = dma.done %s947, 16
        $region132: #{tpu_custom_call.1} parent=111 // pred_fallthru
          _
        %s954 = sand.u32 %s36, 1
        %s955 = scalar_lea.sflag [#allocation4], %s954
        %s956 = sand.u32 %s306, 1
        %s957 = scalar_lea.vmem [#allocation10], %s956
        // Predicated region
        $region133: #{tpu_custom_call.1} parent=111 // pred_check
          %p958 = pneg %p319
        $region134: #{tpu_custom_call.1} parent=111 // pred_check_branch
          %960 = sbr.rel (%p958) target = $region136
        $region135: #{tpu_custom_call.1} parent=111 // pred_region
          %961 = dma.done %s955, 16
        $region136: #{tpu_custom_call.1} parent=111 // pred_fallthru
          _
        %s962 = sand.u32 %s36, 1
        %s963 = scalar_lea.sflag [#allocation4], %s962
        %s964 = sand.u32 %s332, 1
        %s965 = smul.addr %s964, 16
        %s966 = scalar_lea.vmem [#allocation11], %s965
        // Predicated region
        $region137: #{tpu_custom_call.1} parent=111 // pred_check
          %p967 = pneg %p345
        $region138: #{tpu_custom_call.1} parent=111 // pred_check_branch
          %969 = sbr.rel (%p967) target = $region140
        $region139: #{tpu_custom_call.1} parent=111 // pred_region
          %970 = dma.done %s963, 256
        $region140: #{tpu_custom_call.1} parent=111 // pred_fallthru
          _
        %s971 = sand.u32 %s36, 1
        %s972 = scalar_lea.sflag [#allocation4], %s971
        %s973 = sand.u32 %s358, 1
        %s974 = scalar_lea.vmem [#allocation12], %s973
        // Predicated region
        $region141: #{tpu_custom_call.1} parent=111 // pred_check
          %p975 = pneg %p371
        $region142: #{tpu_custom_call.1} parent=111 // pred_check_branch
          %977 = sbr.rel (%p975) target = $region144
        $region143: #{tpu_custom_call.1} parent=111 // pred_region
          %978 = dma.done %s972, 16
        $region144: #{tpu_custom_call.1} parent=111 // pred_fallthru
          _
        %s979 = sand.u32 %s36, 1
        %s980 = scalar_lea.sflag [#allocation4], %s979
        %s981 = sand.u32 %s410, 1
        %s982 = scalar_lea.vmem [#allocation13], %s981
        // Predicated region
        $region145: #{tpu_custom_call.1} parent=111 // pred_check
          %p983 = pneg %p423
        $region146: #{tpu_custom_call.1} parent=111 // pred_check_branch
          %985 = sbr.rel (%p983) target = $region148
        $region147: #{tpu_custom_call.1} parent=111 // pred_region
          %986 = dma.done %s980, 16
        $region148: #{tpu_custom_call.1} parent=111 // pred_fallthru
          _
        %s987 = sand.u32 %s36, 1
        %s988 = scalar_lea.sflag [#allocation4], %s987
        %s989 = sand.u32 %s462, 1
        %s990 = scalar_lea.vmem [#allocation14], %s989
        // Predicated region
        $region149: #{tpu_custom_call.1} parent=111 // pred_check
          %p991 = pneg %p475
        $region150: #{tpu_custom_call.1} parent=111 // pred_check_branch
          %993 = sbr.rel (%p991) target = $region152
        $region151: #{tpu_custom_call.1} parent=111 // pred_region
          %994 = dma.done %s988, 16
        $region152: #{tpu_custom_call.1} parent=111 // pred_fallthru
          _
        %s995 = sand.u32 %s36, 1
        %s996 = scalar_lea.sflag [#allocation4], %s995
        %s997 = sand.u32 %s514, 1
        %s998 = smul.addr %s997, 3
        %s999 = scalar_lea.vmem [#allocation15], %s998
        // Predicated region
        $region153: #{tpu_custom_call.1} parent=111 // pred_check
          %p1000 = pneg %p527
        $region154: #{tpu_custom_call.1} parent=111 // pred_check_branch
          %1002 = sbr.rel (%p1000) target = $region156
        $region155: #{tpu_custom_call.1} parent=111 // pred_region
          %1003 = dma.done %s996, 48
        $region156: #{tpu_custom_call.1} parent=111 // pred_fallthru
          _
        %p1004 = pneg %p64
        %p1005 = pneg %p61
        %p1006 = scmp.lt.s32.totalorder %s40, 1
        %s1007 = scalar_select %p1006, %s40, 1
        %s1008 = smul.addr %s1007, 8
        %s1009 = scalar_lea.vmem %s1, %s1008
        %p1010 = pneg %p90
        %p1011 = pneg %p87
        %p1012 = pneg %p111
        %p1013 = pneg %p108
        %p1014 = scmp.lt.s32.totalorder %s41, 1
        %s1015 = scalar_select %p1014, %s41, 1
        %s1016 = smul.addr %s1015, 4
        %s1017 = smul.addr %s1016, 4
        %s1018 = scalar_lea.vmem %s3, %s1017
        %p1019 = pneg %p137
        %p1020 = pneg %p134
        %s1021 = sand.u32 %s36, 1
        %s1022 = scalar_lea.sflag [#allocation4], %s1021
        %s1023 = sand.u32 %s150, 1
        %s1024 = scalar_lea.vmem [#allocation7], %s1023
        %p1025 = pneg %p163
        %p1026 = pneg %p160
        %p1027 = scmp.lt.s32.totalorder %s41, 1
        %s1028 = scalar_select %p1027, %s41, 1
        %s1029 = smul.addr %s1028, 4
        %s1030 = smul.addr %s1029, 4
        %s1031 = scalar_lea.vmem %s5, %s1030
        %p1032 = pneg %p189
        %p1033 = pneg %p186
        %s1034 = sand.u32 %s36, 1
        %s1035 = scalar_lea.sflag [#allocation4], %s1034
        %s1036 = sand.u32 %s202, 1
        %s1037 = scalar_lea.vmem [#allocation8], %s1036
        %p1038 = pneg %p215
        %p1039 = pneg %p212
        %p1040 = scmp.lt.s32.totalorder %s41, 1
        %s1041 = scalar_select %p1040, %s41, 1
        %s1042 = smul.addr %s1041, 4
        %s1043 = smul.addr %s1042, 4
        %s1044 = scalar_lea.vmem %s7, %s1043
        %p1045 = pneg %p241
        %p1046 = pneg %p238
        %s1047 = sand.u32 %s36, 1
        %s1048 = scalar_lea.sflag [#allocation4], %s1047
        %s1049 = sand.u32 %s254, 1
        %s1050 = scalar_lea.vmem [#allocation9], %s1049
        %p1051 = pneg %p267
        %p1052 = pneg %p264
        %p1053 = scmp.lt.s32.totalorder %s41, 1
        %s1054 = scalar_select %p1053, %s41, 1
        %s1055 = smul.addr %s1054, 4
        %s1056 = smul.addr %s1055, 4
        %s1057 = scalar_lea.vmem %s9, %s1056
        %p1058 = pneg %p293
        %p1059 = pneg %p290
        %s1060 = sand.u32 %s36, 1
        %s1061 = scalar_lea.sflag [#allocation4], %s1060
        %s1062 = sand.u32 %s306, 1
        %s1063 = scalar_lea.vmem [#allocation10], %s1062
        %p1064 = pneg %p319
        %p1065 = pneg %p316
        %s1066 = sand.u32 %s36, 1
        %s1067 = scalar_lea.sflag [#allocation4], %s1066
        %s1068 = sand.u32 %s332, 1
        %s1069 = smul.addr %s1068, 16
        %s1070 = scalar_lea.vmem [#allocation11], %s1069
        %p1071 = pneg %p345
        %p1072 = pneg %p342
        %s1073 = sand.u32 %s36, 1
        %s1074 = scalar_lea.sflag [#allocation4], %s1073
        %s1075 = sand.u32 %s358, 1
        %s1076 = scalar_lea.vmem [#allocation12], %s1075
        %p1077 = pneg %p371
        %p1078 = pneg %p368
        %p1079 = scmp.lt.s32.totalorder %s41, 1
        %s1080 = scalar_select %p1079, %s41, 1
        %s1081 = smul.addr %s1080, 4
        %s1082 = smul.addr %s1081, 4
        %s1083 = scalar_lea.vmem %s13, %s1082
        %p1084 = pneg %p397
        %p1085 = pneg %p394
        %s1086 = sand.u32 %s36, 1
        %s1087 = scalar_lea.sflag [#allocation4], %s1086
        %s1088 = sand.u32 %s410, 1
        %s1089 = scalar_lea.vmem [#allocation13], %s1088
        %p1090 = pneg %p423
        %p1091 = pneg %p420
        %p1092 = scmp.lt.s32.totalorder %s41, 1
        %s1093 = scalar_select %p1092, %s41, 1
        %s1094 = smul.addr %s1093, 8
        %s1095 = smul.addr %s1094, 4
        %s1096 = scalar_lea.vmem %s15, %s1095
        %p1097 = pneg %p449
        %p1098 = pneg %p446
        %s1099 = sand.u32 %s36, 1
        %s1100 = scalar_lea.sflag [#allocation4], %s1099
        %s1101 = sand.u32 %s462, 1
        %s1102 = scalar_lea.vmem [#allocation14], %s1101
        %p1103 = pneg %p475
        %p1104 = pneg %p472
        %p1105 = scmp.lt.s32.totalorder %s41, 1
        %s1106 = scalar_select %p1105, %s41, 1
        %s1107 = smul.addr %s1106, 3
        %s1108 = scalar_lea.vmem %s17, %s1107
        %p1109 = pneg %p501
        %p1110 = pneg %p498
        %s1111 = sand.u32 %s36, 1
        %s1112 = scalar_lea.sflag [#allocation4], %s1111
        %s1113 = sand.u32 %s514, 1
        %s1114 = smul.addr %s1113, 3
        %s1115 = scalar_lea.vmem [#allocation15], %s1114
        %p1116 = pneg %p527
        %p1117 = pneg %p524
        %p1118 = pneg %p548
        %p1119 = pneg %p545
        %p1120 = pneg %p569
        %p1121 = pneg %p566
        %p1122 = pneg %p590
        %p1123 = pneg %p587
        %p1124 = pneg %p611
        %p1125 = pneg %p608
        %p1126 = pneg %p637
        %p1127 = pneg %p634
        %p1128 = scmp.lt.s32.totalorder %s40, 1
        %s1129 = scalar_select %p1128, %s40, 1
        %s1130 = smul.addr %s1129, 8
        %s1131 = scalar_lea.vmem %s23, %s1130
        %p1132 = scmp.lt.s32.totalorder %s40, 1
        %s1133 = scalar_select %p1132, %s40, 1
        %s1134 = smul.addr %s1133, 8
        %s1135 = scalar_lea.vmem %s1, %s1134
        %p1136 = scmp.lt.s32.totalorder %s41, 1
        %s1137 = scalar_select %p1136, %s41, 1
        %s1138 = smul.addr %s1137, 4
        %s1139 = smul.addr %s1138, 4
        %s1140 = scalar_lea.vmem %s3, %s1139
        %p1141 = scmp.lt.s32.totalorder %s41, 1
        %s1142 = scalar_select %p1141, %s41, 1
        %s1143 = smul.addr %s1142, 4
        %s1144 = smul.addr %s1143, 4
        %s1145 = scalar_lea.vmem %s5, %s1144
        %p1146 = scmp.lt.s32.totalorder %s41, 1
        %s1147 = scalar_select %p1146, %s41, 1
        %s1148 = smul.addr %s1147, 4
        %s1149 = smul.addr %s1148, 4
        %s1150 = scalar_lea.vmem %s7, %s1149
        %p1151 = scmp.lt.s32.totalorder %s41, 1
        %s1152 = scalar_select %p1151, %s41, 1
        %s1153 = smul.addr %s1152, 4
        %s1154 = smul.addr %s1153, 4
        %s1155 = scalar_lea.vmem %s9, %s1154
        %p1156 = scmp.lt.s32.totalorder %s41, 1
        %s1157 = scalar_select %p1156, %s41, 1
        %s1158 = smul.addr %s1157, 4
        %s1159 = smul.addr %s1158, 4
        %s1160 = scalar_lea.vmem %s13, %s1159
        %p1161 = scmp.lt.s32.totalorder %s41, 1
        %s1162 = scalar_select %p1161, %s41, 1
        %s1163 = smul.addr %s1162, 8
        %s1164 = smul.addr %s1163, 4
        %s1165 = scalar_lea.vmem %s15, %s1164
        %p1166 = scmp.lt.s32.totalorder %s41, 1
        %s1167 = scalar_select %p1166, %s41, 1
        %s1168 = smul.addr %s1167, 3
        %s1169 = scalar_lea.vmem %s17, %s1168
        %p1170 = scmp.lt.s32.totalorder %s40, 1
        %s1171 = scalar_select %p1170, %s40, 1
        %s1172 = smul.addr %s1171, 8
        %s1173 = scalar_lea.vmem %s23, %s1172
        %p1175 = scmp.eq.s32.totalorder %s41, 0
        // Predicated region
        $region157: #{tpu_custom_call.1} parent=111 // pred_check
          %p1176 = pneg %p1175
        $region158: #{tpu_custom_call.1} parent=111 // pred_check_branch
          %1178 = sbr.rel (%p1176) target = $region160
        $region159: #{tpu_custom_call.1} parent=111 // pred_region
          %v1179 = vld [vmem:[%s1135] sm:$0xff]
          %v1180 = vpack.c.bf16 %v1179, %v1179
          %v1181 = vld [vmem:[%s19] sm:$0x3]
          %v1182 = vld [vmem:[%s20] sm:$0x1]
          %v1184 = vlaneseq
          %v1185 = vshrl.u32 %v1184, 7
          %v1186 = vsub.s32 0, %v1185
          %v1187 = vrot.slane %v1182, %v1186
          %vm1189 = vcmask 31744
          %v1191 = vsel %vm1189, %v1180, 0
          %vm1193 = vcmask 1041408
          %v1195 = vsel %vm1193, %v1181, 0
          %1197 = vmatprep.subr.bf16.mxu0 0
          %1198 = vmatpush1.bf16.msra.mxu0 0
          %1199 = vmatprep.subr.bf16.mxu0 0
          %1200 = vmatpush1.bf16.msra.mxu0 0
          %1201 = vmatprep.subr.bf16.mxu0 0
          %1202 = vmatpush1.bf16.msra.mxu0 0
          %1203 = vmatprep.subr.bf16.mxu0 0
          %1204 = vmatpush1.bf16.msra.mxu0 0
          %1205 = vmatprep.subr.bf16.mxu0 0
          %1206 = vmatpush1.bf16.msra.mxu0 0
          %1207 = vmatprep.subr.bf16.mxu0 0
          %1208 = vmatpush1.bf16.msra.mxu0 0
          %1209 = vmatprep.subr.bf16.mxu0 0
          %1210 = vmatpush1.bf16.msra.mxu0 0
          %1211 = vmatprep.subr.bf16.mxu0 0
          %1212 = vmatpush1.bf16.msra.mxu0 %v1195
          %1213 = vmatprep.subr.bf16.mxu0 0
          %1214 = vmatpush2.bf16.msra.mxu0 0
          %1215 = vmatprep.subr.bf16.mxu0 0
          %1216 = vmatpush2.bf16.msra.mxu0 0
          %1217 = vmatprep.subr.bf16.mxu0 0
          %1218 = vmatpush2.bf16.msra.mxu0 0
          %1219 = vmatprep.subr.bf16.mxu0 0
          %1220 = vmatpush2.bf16.msra.mxu0 0
          %1221 = vmatprep.subr.bf16.mxu0 0
          %1222 = vmatpush2.bf16.msra.mxu0 0
          %1223 = vmatprep.subr.bf16.mxu0 0
          %1224 = vmatpush2.bf16.msra.mxu0 0
          %1225 = vmatprep.subr.bf16.mxu0 0
          %1226 = vmatpush2.bf16.msra.mxu0 0
          %1227 = vmatprep.subr.bf16.mxu0 0
          %1228 = vmatpush2.bf16.msra.mxu0 0
          %1229 = vmatprep.mubr.bf16.mxu0 0
          %1230 = vmatmul.mubr.bf16.gmra.mxu0 %v1191
          %v1231 = vpop.f32.mrf.mxu0
          %v1232 = vadd.f32 %v1187, %v1231
          %v1233 = vpop.f32.mrf.mxu0
          %v1234 = vpop.f32.mrf.mxu0
          %v1235 = vpop.f32.mrf.mxu0
          %1236 = vdwg.mxu0
          %vm1237 = vcmask 261120
          %1238 = vst.msk [vmem:[#allocation2] sm:$0xff] %vm1237, %v1232
        $region160: #{tpu_custom_call.1} parent=111 // pred_fallthru
          _
        %v1239 = vld [vmem:[#allocation2] sm:$0xff]
        %v1240 = vld [vmem:[%s1169] sm:$0x1]
        %v1241 = vld [vmem:[%s1169 + $0x1] sm:$0x1]
        %v1242 = vld [vmem:[%s1169 + $0x2] sm:$0x1]
        %v1243 = vld [vmem:[%s999] sm:$0x1]
        %v1244 = vld [vmem:[%s999 + $0x1] sm:$0x1]
        %v1245 = vld [vmem:[%s999 + $0x2] sm:$0x1]
        %v1246 = vld [vmem:[#allocation5] sm:$0xff]
        %v1247 = vpack.c.bf16 %v1239, %v1239
        %v1248 = vld [vmem:[%s1140] sm:$0xf]
        %v1249 = vld [vmem:[%s1140 + $0x4] sm:$0xf]
        %v1250 = vld [vmem:[%s1140 + $0x8] sm:$0xf]
        %v1251 = vld [vmem:[%s1140 + $0xc] sm:$0xf]
        %v1252 = vld [vmem:[%s933] sm:$0x1]
        %v1254 = vlaneseq
        %v1255 = vshrl.u32 %v1254, 7
        %v1256 = vsub.s32 0, %v1255
        %v1257 = vrot.slane %v1252, %v1256
        %v1263 = vunpack.c.l.b16 %v1248
        %v1264 = vunpack.c.l.b16 %v1249
        %v1265 = vunpack.c.l.b16 %v1250
        %v1266 = vunpack.c.l.b16 %v1251
        %v1267 = vpack.c.b16 %v1264, %v1263
        %v1268 = vpack.c.b16 %v1266, %v1265
        %vm1271 = vcmask 261120
        %v1273 = vsel %vm1271, %v1247, 0
        %1275 = vmatprep.subr.bf16.mxu0 0
        %1276 = vmatpush1.bf16.msra.mxu0 0
        %1277 = vmatprep.subr.bf16.mxu0 0
        %1278 = vmatpush1.bf16.msra.mxu0 0
        %1279 = vmatprep.subr.bf16.mxu0 0
        %1280 = vmatpush1.bf16.msra.mxu0 0
        %1281 = vmatprep.subr.bf16.mxu0 0
        %1282 = vmatpush1.bf16.msra.mxu0 0
        %1283 = vmatprep.subr.bf16.mxu0 0
        %1284 = vmatpush1.bf16.msra.mxu0 0
        %1285 = vmatprep.subr.bf16.mxu0 0
        %1286 = vmatpush1.bf16.msra.mxu0 0
        %1287 = vmatprep.subr.bf16.mxu0 0
        %1288 = vmatpush1.bf16.msra.mxu0 %v1268
        %1289 = vmatprep.subr.bf16.mxu0 0
        %1290 = vmatpush1.bf16.msra.mxu0 %v1267
        %1291 = vmatprep.subr.bf16.mxu0 0
        %1292 = vmatpush2.bf16.msra.mxu0 0
        %1293 = vmatprep.subr.bf16.mxu0 0
        %1294 = vmatpush2.bf16.msra.mxu0 0
        %1295 = vmatprep.subr.bf16.mxu0 0
        %1296 = vmatpush2.bf16.msra.mxu0 0
        %1297 = vmatprep.subr.bf16.mxu0 0
        %1298 = vmatpush2.bf16.msra.mxu0 0
        %1299 = vmatprep.subr.bf16.mxu0 0
        %1300 = vmatpush2.bf16.msra.mxu0 0
        %1301 = vmatprep.subr.bf16.mxu0 0
        %1302 = vmatpush2.bf16.msra.mxu0 0
        %1303 = vmatprep.subr.bf16.mxu0 0
        %1304 = vmatpush2.bf16.msra.mxu0 0
        %1305 = vmatprep.subr.bf16.mxu0 0
        %1306 = vmatpush2.bf16.msra.mxu0 0
        %1307 = vmatprep.mubr.bf16.mxu0 0
        %1308 = vmatmul.mubr.bf16.gmra.mxu0 %v1273
        %v1309 = vpop.f32.mrf.mxu0
        %v1310 = vadd.f32 %v1257, %v1309
        %v1311 = vpop.f32.mrf.mxu0
        %v1312 = vpop.f32.mrf.mxu0
        %v1313 = vpop.f32.mrf.mxu0
        %1314 = vdwg.mxu0
        %v1315 = vpack.c.bf16 %v1310, %v1310
        %1317 = vrot.lane.b32.xlu0 %v1315, 120
        %v1318 = vpop.permute.xlu0 %1317
        %1319 = vrot.lane.b32.xlu0 %v1315, 112
        %v1320 = vpop.permute.xlu0 %1319
        %1321 = vrot.lane.b32.xlu0 %v1315, 104
        %v1322 = vpop.permute.xlu0 %1321
        %1323 = vrot.lane.b32.xlu0 %v1315, 96
        %v1324 = vpop.permute.xlu0 %1323
        %vm1325 = vcmask 64512
        %v1327 = vsel %vm1325, %v1315, 0
        %v1330 = vsel %vm1325, %v1324, 0
        %1332 = vmatprep.subr.bf16.mxu0 0
        %1333 = vmatpush1.bf16.xpose.msra.mxu0 0
        %1334 = vmatprep.subr.bf16.mxu0 0
        %1335 = vmatpush1.bf16.xpose.msra.mxu0 0
        %1336 = vmatprep.subr.bf16.mxu0 0
        %1337 = vmatpush1.bf16.xpose.msra.mxu0 0
        %1338 = vmatprep.subr.bf16.mxu0 0
        %1339 = vmatpush1.bf16.xpose.msra.mxu0 0
        %1340 = vmatprep.subr.bf16.mxu0 0
        %1341 = vmatpush1.bf16.xpose.msra.mxu0 0
        %1342 = vmatprep.subr.bf16.mxu0 0
        %1343 = vmatpush1.bf16.xpose.msra.mxu0 0
        %1344 = vmatprep.subr.bf16.mxu0 0
        %1345 = vmatpush1.bf16.xpose.msra.mxu0 0
        %1346 = vmatprep.subr.bf16.mxu0 0
        %1347 = vmatpush1.bf16.xpose.msra.mxu0 %v1330
        %1348 = vmatprep.subr.bf16.mxu0 0
        %1349 = vmatpush2.bf16.xpose.msra.mxu0 0
        %1350 = vmatprep.subr.bf16.mxu0 0
        %1351 = vmatpush2.bf16.xpose.msra.mxu0 0
        %1352 = vmatprep.subr.bf16.mxu0 0
        %1353 = vmatpush2.bf16.xpose.msra.mxu0 0
        %1354 = vmatprep.subr.bf16.mxu0 0
        %1355 = vmatpush2.bf16.xpose.msra.mxu0 0
        %1356 = vmatprep.subr.bf16.mxu0 0
        %1357 = vmatpush2.bf16.xpose.msra.mxu0 0
        %1358 = vmatprep.subr.bf16.mxu0 0
        %1359 = vmatpush2.bf16.xpose.msra.mxu0 0
        %1360 = vmatprep.subr.bf16.mxu0 0
        %1361 = vmatpush2.bf16.xpose.msra.mxu0 0
        %1362 = vmatprep.subr.bf16.mxu0 0
        %1363 = vmatpush2.bf16.xpose.msra.mxu0 0
        %1364 = vmatprep.mubr.bf16.mxu0 0
        %1365 = vmatmul.mubr.bf16.gmra.mxu0 %v1327
        %v1366 = vpop.f32.mrf.mxu0
        %v1367 = vadd.f32 %v1246, %v1366
        %v1368 = vpop.f32.mrf.mxu0
        %v1369 = vpop.f32.mrf.mxu0
        %v1370 = vpop.f32.mrf.mxu0
        %1371 = vdwg.mxu0
        %1372 = vrot.lane.b32.xlu0 %v1318, 96
        %v1373 = vpop.permute.xlu0 %1372
        %v1375 = vsel %vm1325, %v1318, 0
        %v1378 = vsel %vm1325, %v1373, 0
        %1380 = vmatprep.subr.bf16.mxu0 0
        %1381 = vmatpush1.bf16.xpose.msra.mxu0 0
        %1382 = vmatprep.subr.bf16.mxu0 0
        %1383 = vmatpush1.bf16.xpose.msra.mxu0 0
        %1384 = vmatprep.subr.bf16.mxu0 0
        %1385 = vmatpush1.bf16.xpose.msra.mxu0 0
        %1386 = vmatprep.subr.bf16.mxu0 0
        %1387 = vmatpush1.bf16.xpose.msra.mxu0 0
        %1388 = vmatprep.subr.bf16.mxu0 0
        %1389 = vmatpush1.bf16.xpose.msra.mxu0 0
        %1390 = vmatprep.subr.bf16.mxu0 0
        %1391 = vmatpush1.bf16.xpose.msra.mxu0 0
        %1392 = vmatprep.subr.bf16.mxu0 0
        %1393 = vmatpush1.bf16.xpose.msra.mxu0 0
        %1394 = vmatprep.subr.bf16.mxu0 0
        %1395 = vmatpush1.bf16.xpose.msra.mxu0 %v1378
        %1396 = vmatprep.subr.bf16.mxu0 0
        %1397 = vmatpush2.bf16.xpose.msra.mxu0 0
        %1398 = vmatprep.subr.bf16.mxu0 0
        %1399 = vmatpush2.bf16.xpose.msra.mxu0 0
        %1400 = vmatprep.subr.bf16.mxu0 0
        %1401 = vmatpush2.bf16.xpose.msra.mxu0 0
        %1402 = vmatprep.subr.bf16.mxu0 0
        %1403 = vmatpush2.bf16.xpose.msra.mxu0 0
        %1404 = vmatprep.subr.bf16.mxu0 0
        %1405 = vmatpush2.bf16.xpose.msra.mxu0 0
        %1406 = vmatprep.subr.bf16.mxu0 0
        %1407 = vmatpush2.bf16.xpose.msra.mxu0 0
        %1408 = vmatprep.subr.bf16.mxu0 0
        %1409 = vmatpush2.bf16.xpose.msra.mxu0 0
        %1410 = vmatprep.subr.bf16.mxu0 0
        %1411 = vmatpush2.bf16.xpose.msra.mxu0 0
        %1412 = vmatprep.mubr.bf16.mxu0 0
        %1413 = vmatmul.mubr.bf16.gmra.mxu0 %v1375
        %v1414 = vpop.f32.mrf.mxu0
        %v1415 = vadd.f32 %v1246, %v1414
        %v1416 = vpop.f32.mrf.mxu0
        %v1417 = vpop.f32.mrf.mxu0
        %v1418 = vpop.f32.mrf.mxu0
        %1419 = vdwg.mxu0
        %1420 = vrot.lane.b32.xlu0 %v1320, 96
        %v1421 = vpop.permute.xlu0 %1420
        %v1423 = vsel %vm1325, %v1320, 0
        %v1426 = vsel %vm1325, %v1421, 0
        %1428 = vmatprep.subr.bf16.mxu0 0
        %1429 = vmatpush1.bf16.xpose.msra.mxu0 0
        %1430 = vmatprep.subr.bf16.mxu0 0
        %1431 = vmatpush1.bf16.xpose.msra.mxu0 0
        %1432 = vmatprep.subr.bf16.mxu0 0
        %1433 = vmatpush1.bf16.xpose.msra.mxu0 0
        %1434 = vmatprep.subr.bf16.mxu0 0
        %1435 = vmatpush1.bf16.xpose.msra.mxu0 0
        %1436 = vmatprep.subr.bf16.mxu0 0
        %1437 = vmatpush1.bf16.xpose.msra.mxu0 0
        %1438 = vmatprep.subr.bf16.mxu0 0
        %1439 = vmatpush1.bf16.xpose.msra.mxu0 0
        %1440 = vmatprep.subr.bf16.mxu0 0
        %1441 = vmatpush1.bf16.xpose.msra.mxu0 0
        %1442 = vmatprep.subr.bf16.mxu0 0
        %1443 = vmatpush1.bf16.xpose.msra.mxu0 %v1426
        %1444 = vmatprep.subr.bf16.mxu0 0
        %1445 = vmatpush2.bf16.xpose.msra.mxu0 0
        %1446 = vmatprep.subr.bf16.mxu0 0
        %1447 = vmatpush2.bf16.xpose.msra.mxu0 0
        %1448 = vmatprep.subr.bf16.mxu0 0
        %1449 = vmatpush2.bf16.xpose.msra.mxu0 0
        %1450 = vmatprep.subr.bf16.mxu0 0
        %1451 = vmatpush2.bf16.xpose.msra.mxu0 0
        %1452 = vmatprep.subr.bf16.mxu0 0
        %1453 = vmatpush2.bf16.xpose.msra.mxu0 0
        %1454 = vmatprep.subr.bf16.mxu0 0
        %1455 = vmatpush2.bf16.xpose.msra.mxu0 0
        %1456 = vmatprep.subr.bf16.mxu0 0
        %1457 = vmatpush2.bf16.xpose.msra.mxu0 0
        %1458 = vmatprep.subr.bf16.mxu0 0
        %1459 = vmatpush2.bf16.xpose.msra.mxu0 0
        %1460 = vmatprep.mubr.bf16.mxu0 0
        %1461 = vmatmul.mubr.bf16.gmra.mxu0 %v1423
        %v1462 = vpop.f32.mrf.mxu0
        %v1463 = vadd.f32 %v1246, %v1462
        %v1464 = vpop.f32.mrf.mxu0
        %v1465 = vpop.f32.mrf.mxu0
        %v1466 = vpop.f32.mrf.mxu0
        %1467 = vdwg.mxu0
        %1468 = vrot.lane.b32.xlu0 %v1322, 96
        %v1469 = vpop.permute.xlu0 %1468
        %v1471 = vsel %vm1325, %v1322, 0
        %v1474 = vsel %vm1325, %v1469, 0
        %1476 = vmatprep.subr.bf16.mxu0 0
        %1477 = vmatpush1.bf16.xpose.msra.mxu0 0
        %1478 = vmatprep.subr.bf16.mxu0 0
        %1479 = vmatpush1.bf16.xpose.msra.mxu0 0
        %1480 = vmatprep.subr.bf16.mxu0 0
        %1481 = vmatpush1.bf16.xpose.msra.mxu0 0
        %1482 = vmatprep.subr.bf16.mxu0 0
        %1483 = vmatpush1.bf16.xpose.msra.mxu0 0
        %1484 = vmatprep.subr.bf16.mxu0 0
        %1485 = vmatpush1.bf16.xpose.msra.mxu0 0
        %1486 = vmatprep.subr.bf16.mxu0 0
        %1487 = vmatpush1.bf16.xpose.msra.mxu0 0
        %1488 = vmatprep.subr.bf16.mxu0 0
        %1489 = vmatpush1.bf16.xpose.msra.mxu0 0
        %1490 = vmatprep.subr.bf16.mxu0 0
        %1491 = vmatpush1.bf16.xpose.msra.mxu0 %v1474
        %1492 = vmatprep.subr.bf16.mxu0 0
        %1493 = vmatpush2.bf16.xpose.msra.mxu0 0
        %1494 = vmatprep.subr.bf16.mxu0 0
        %1495 = vmatpush2.bf16.xpose.msra.mxu0 0
        %1496 = vmatprep.subr.bf16.mxu0 0
        %1497 = vmatpush2.bf16.xpose.msra.mxu0 0
        %1498 = vmatprep.subr.bf16.mxu0 0
        %1499 = vmatpush2.bf16.xpose.msra.mxu0 0
        %1500 = vmatprep.subr.bf16.mxu0 0
        %1501 = vmatpush2.bf16.xpose.msra.mxu0 0
        %1502 = vmatprep.subr.bf16.mxu0 0
        %1503 = vmatpush2.bf16.xpose.msra.mxu0 0
        %1504 = vmatprep.subr.bf16.mxu0 0
        %1505 = vmatpush2.bf16.xpose.msra.mxu0 0
        %1506 = vmatprep.subr.bf16.mxu0 0
        %1507 = vmatpush2.bf16.xpose.msra.mxu0 0
        %1508 = vmatprep.mubr.bf16.mxu0 0
        %1509 = vmatmul.mubr.bf16.gmra.mxu0 %v1471
        %v1510 = vpop.f32.mrf.mxu0
        %v1511 = vadd.f32 %v1246, %v1510
        %v1512 = vpop.f32.mrf.mxu0
        %v1513 = vpop.f32.mrf.mxu0
        %v1514 = vpop.f32.mrf.mxu0
        %1515 = vdwg.mxu0
        %v1516 = vsel %vm1325, %v1367, -inf
        %1517 = vmax.xlane.f32.xlu0 %v1516
        %v1518 = vpop.xlane.xlu0 %1517
        %v1519 = vsel %vm1325, %v1415, -inf
        %1520 = vmax.xlane.f32.xlu0 %v1519
        %v1521 = vpop.xlane.xlu0 %1520
        %v1522 = vsel %vm1325, %v1463, -inf
        %1523 = vmax.xlane.f32.xlu0 %v1522
        %v1524 = vpop.xlane.xlu0 %1523
        %v1525 = vsel %vm1325, %v1511, -inf
        %1526 = vmax.xlane.f32.xlu0 %v1525
        %v1527 = vpop.xlane.xlu0 %1526
        %v1528 = vsub.f32 %v1367, %v1518
        %v1529 = vsub.f32 %v1415, %v1521
        %v1530 = vsub.f32 %v1463, %v1524
        %v1531 = vsub.f32 %v1511, %v1527
        %v1532 = vmul.f32 %v1528, 1.442695
        %v1533 = vpow.pop %v1532
        %v1534 = vmul.f32 %v1529, 1.442695
        %v1535 = vpow.pop %v1534
        %v1536 = vmul.f32 %v1530, 1.442695
        %v1537 = vpow.pop %v1536
        %v1538 = vmul.f32 %v1531, 1.442695
        %v1539 = vpow.pop %v1538
        %v1540 = vsel %vm1325, %v1533, 0.0
        %1541 = vadd.xlane.f32.xlu0 %v1540
        %v1542 = vpop.xlane.xlu0 %1541
        %v1543 = vsel %vm1325, %v1535, 0.0
        %1544 = vadd.xlane.f32.xlu0 %v1543
        %v1545 = vpop.xlane.xlu0 %1544
        %v1546 = vsel %vm1325, %v1537, 0.0
        %1547 = vadd.xlane.f32.xlu0 %v1546
        %v1548 = vpop.xlane.xlu0 %1547
        %v1549 = vsel %vm1325, %v1539, 0.0
        %1550 = vadd.xlane.f32.xlu0 %v1549
        %v1551 = vpop.xlane.xlu0 %1550
        %v1552 = vrcp.pop %v1542
        %v1553 = vrcp.pop %v1545
        %v1554 = vrcp.pop %v1548
        %v1555 = vrcp.pop %v1551
        %v1556 = vmul.f32 %v1533, %v1552
        %v1557 = vmul.f32 %v1535, %v1553
        %v1558 = vmul.f32 %v1537, %v1554
        %v1559 = vmul.f32 %v1539, %v1555
        %v1560 = vpack.c.bf16 %v1556, %v1556
        %v1561 = vpack.c.bf16 %v1557, %v1557
        %v1562 = vpack.c.bf16 %v1558, %v1558
        %v1563 = vpack.c.bf16 %v1559, %v1559
        %1564 = vrot.lane.b32.xlu0 %v1315, 64
        %v1565 = vpop.permute.xlu0 %1564
        %v1567 = vsel %vm1325, %v1560, 0
        %vm1569 = vcmask 1043456
        %v1571 = vsel %vm1569, %v1565, 0
        %1573 = vmatprep.subr.bf16.mxu0 0
        %1574 = vmatpush1.bf16.msra.mxu0 0
        %1575 = vmatprep.subr.bf16.mxu0 0
        %1576 = vmatpush1.bf16.msra.mxu0 0
        %1577 = vmatprep.subr.bf16.mxu0 0
        %1578 = vmatpush1.bf16.msra.mxu0 0
        %1579 = vmatprep.subr.bf16.mxu0 0
        %1580 = vmatpush1.bf16.msra.mxu0 0
        %1581 = vmatprep.subr.bf16.mxu0 0
        %1582 = vmatpush1.bf16.msra.mxu0 0
        %1583 = vmatprep.subr.bf16.mxu0 0
        %1584 = vmatpush1.bf16.msra.mxu0 0
        %1585 = vmatprep.subr.bf16.mxu0 0
        %1586 = vmatpush1.bf16.msra.mxu0 0
        %1587 = vmatprep.subr.bf16.mxu0 0
        %1588 = vmatpush1.bf16.msra.mxu0 %v1571
        %1589 = vmatprep.subr.bf16.mxu0 0
        %1590 = vmatpush2.bf16.msra.mxu0 0
        %1591 = vmatprep.subr.bf16.mxu0 0
        %1592 = vmatpush2.bf16.msra.mxu0 0
        %1593 = vmatprep.subr.bf16.mxu0 0
        %1594 = vmatpush2.bf16.msra.mxu0 0
        %1595 = vmatprep.subr.bf16.mxu0 0
        %1596 = vmatpush2.bf16.msra.mxu0 0
        %1597 = vmatprep.subr.bf16.mxu0 0
        %1598 = vmatpush2.bf16.msra.mxu0 0
        %1599 = vmatprep.subr.bf16.mxu0 0
        %1600 = vmatpush2.bf16.msra.mxu0 0
        %1601 = vmatprep.subr.bf16.mxu0 0
        %1602 = vmatpush2.bf16.msra.mxu0 0
        %1603 = vmatprep.subr.bf16.mxu0 0
        %1604 = vmatpush2.bf16.msra.mxu0 0
        %1605 = vmatprep.mubr.bf16.mxu0 0
        %1606 = vmatmul.mubr.bf16.gmra.mxu0 %v1567
        %v1607 = vpop.f32.mrf.mxu0
        %v1608 = vadd.f32 0.0, %v1607
        %v1609 = vpop.f32.mrf.mxu0
        %v1610 = vpop.f32.mrf.mxu0
        %v1611 = vpop.f32.mrf.mxu0
        %1612 = vdwg.mxu0
        %1613 = vrot.lane.b32.xlu0 %v1318, 64
        %v1614 = vpop.permute.xlu0 %1613
        %v1616 = vsel %vm1325, %v1561, 0
        %v1619 = vsel %vm1569, %v1614, 0
        %1621 = vmatprep.subr.bf16.mxu0 0
        %1622 = vmatpush1.bf16.msra.mxu0 0
        %1623 = vmatprep.subr.bf16.mxu0 0
        %1624 = vmatpush1.bf16.msra.mxu0 0
        %1625 = vmatprep.subr.bf16.mxu0 0
        %1626 = vmatpush1.bf16.msra.mxu0 0
        %1627 = vmatprep.subr.bf16.mxu0 0
        %1628 = vmatpush1.bf16.msra.mxu0 0
        %1629 = vmatprep.subr.bf16.mxu0 0
        %1630 = vmatpush1.bf16.msra.mxu0 0
        %1631 = vmatprep.subr.bf16.mxu0 0
        %1632 = vmatpush1.bf16.msra.mxu0 0
        %1633 = vmatprep.subr.bf16.mxu0 0
        %1634 = vmatpush1.bf16.msra.mxu0 0
        %1635 = vmatprep.subr.bf16.mxu0 0
        %1636 = vmatpush1.bf16.msra.mxu0 %v1619
        %1637 = vmatprep.subr.bf16.mxu0 0
        %1638 = vmatpush2.bf16.msra.mxu0 0
        %1639 = vmatprep.subr.bf16.mxu0 0
        %1640 = vmatpush2.bf16.msra.mxu0 0
        %1641 = vmatprep.subr.bf16.mxu0 0
        %1642 = vmatpush2.bf16.msra.mxu0 0
        %1643 = vmatprep.subr.bf16.mxu0 0
        %1644 = vmatpush2.bf16.msra.mxu0 0
        %1645 = vmatprep.subr.bf16.mxu0 0
        %1646 = vmatpush2.bf16.msra.mxu0 0
        %1647 = vmatprep.subr.bf16.mxu0 0
        %1648 = vmatpush2.bf16.msra.mxu0 0
        %1649 = vmatprep.subr.bf16.mxu0 0
        %1650 = vmatpush2.bf16.msra.mxu0 0
        %1651 = vmatprep.subr.bf16.mxu0 0
        %1652 = vmatpush2.bf16.msra.mxu0 0
        %1653 = vmatprep.mubr.bf16.mxu0 0
        %1654 = vmatmul.mubr.bf16.gmra.mxu0 %v1616
        %v1655 = vpop.f32.mrf.mxu0
        %v1656 = vadd.f32 0.0, %v1655
        %v1657 = vpop.f32.mrf.mxu0
        %v1658 = vpop.f32.mrf.mxu0
        %v1659 = vpop.f32.mrf.mxu0
        %1660 = vdwg.mxu0
        %1661 = vrot.lane.b32.xlu0 %v1320, 64
        %v1662 = vpop.permute.xlu0 %1661
        %v1664 = vsel %vm1325, %v1562, 0
        %v1667 = vsel %vm1569, %v1662, 0
        %1669 = vmatprep.subr.bf16.mxu0 0
        %1670 = vmatpush1.bf16.msra.mxu0 0
        %1671 = vmatprep.subr.bf16.mxu0 0
        %1672 = vmatpush1.bf16.msra.mxu0 0
        %1673 = vmatprep.subr.bf16.mxu0 0
        %1674 = vmatpush1.bf16.msra.mxu0 0
        %1675 = vmatprep.subr.bf16.mxu0 0
        %1676 = vmatpush1.bf16.msra.mxu0 0
        %1677 = vmatprep.subr.bf16.mxu0 0
        %1678 = vmatpush1.bf16.msra.mxu0 0
        %1679 = vmatprep.subr.bf16.mxu0 0
        %1680 = vmatpush1.bf16.msra.mxu0 0
        %1681 = vmatprep.subr.bf16.mxu0 0
        %1682 = vmatpush1.bf16.msra.mxu0 0
        %1683 = vmatprep.subr.bf16.mxu0 0
        %1684 = vmatpush1.bf16.msra.mxu0 %v1667
        %1685 = vmatprep.subr.bf16.mxu0 0
        %1686 = vmatpush2.bf16.msra.mxu0 0
        %1687 = vmatprep.subr.bf16.mxu0 0
        %1688 = vmatpush2.bf16.msra.mxu0 0
        %1689 = vmatprep.subr.bf16.mxu0 0
        %1690 = vmatpush2.bf16.msra.mxu0 0
        %1691 = vmatprep.subr.bf16.mxu0 0
        %1692 = vmatpush2.bf16.msra.mxu0 0
        %1693 = vmatprep.subr.bf16.mxu0 0
        %1694 = vmatpush2.bf16.msra.mxu0 0
        %1695 = vmatprep.subr.bf16.mxu0 0
        %1696 = vmatpush2.bf16.msra.mxu0 0
        %1697 = vmatprep.subr.bf16.mxu0 0
        %1698 = vmatpush2.bf16.msra.mxu0 0
        %1699 = vmatprep.subr.bf16.mxu0 0
        %1700 = vmatpush2.bf16.msra.mxu0 0
        %1701 = vmatprep.mubr.bf16.mxu0 0
        %1702 = vmatmul.mubr.bf16.gmra.mxu0 %v1664
        %v1703 = vpop.f32.mrf.mxu0
        %v1704 = vadd.f32 0.0, %v1703
        %v1705 = vpop.f32.mrf.mxu0
        %v1706 = vpop.f32.mrf.mxu0
        %v1707 = vpop.f32.mrf.mxu0
        %1708 = vdwg.mxu0
        %1709 = vrot.lane.b32.xlu0 %v1322, 64
        %v1710 = vpop.permute.xlu0 %1709
        %v1712 = vsel %vm1325, %v1563, 0
        %v1715 = vsel %vm1569, %v1710, 0
        %1717 = vmatprep.subr.bf16.mxu0 0
        %1718 = vmatpush1.bf16.msra.mxu0 0
        %1719 = vmatprep.subr.bf16.mxu0 0
        %1720 = vmatpush1.bf16.msra.mxu0 0
        %1721 = vmatprep.subr.bf16.mxu0 0
        %1722 = vmatpush1.bf16.msra.mxu0 0
        %1723 = vmatprep.subr.bf16.mxu0 0
        %1724 = vmatpush1.bf16.msra.mxu0 0
        %1725 = vmatprep.subr.bf16.mxu0 0
        %1726 = vmatpush1.bf16.msra.mxu0 0
        %1727 = vmatprep.subr.bf16.mxu0 0
        %1728 = vmatpush1.bf16.msra.mxu0 0
        %1729 = vmatprep.subr.bf16.mxu0 0
        %1730 = vmatpush1.bf16.msra.mxu0 0
        %1731 = vmatprep.subr.bf16.mxu0 0
        %1732 = vmatpush1.bf16.msra.mxu0 %v1715
        %1733 = vmatprep.subr.bf16.mxu0 0
        %1734 = vmatpush2.bf16.msra.mxu0 0
        %1735 = vmatprep.subr.bf16.mxu0 0
        %1736 = vmatpush2.bf16.msra.mxu0 0
        %1737 = vmatprep.subr.bf16.mxu0 0
        %1738 = vmatpush2.bf16.msra.mxu0 0
        %1739 = vmatprep.subr.bf16.mxu0 0
        %1740 = vmatpush2.bf16.msra.mxu0 0
        %1741 = vmatprep.subr.bf16.mxu0 0
        %1742 = vmatpush2.bf16.msra.mxu0 0
        %1743 = vmatprep.subr.bf16.mxu0 0
        %1744 = vmatpush2.bf16.msra.mxu0 0
        %1745 = vmatprep.subr.bf16.mxu0 0
        %1746 = vmatpush2.bf16.msra.mxu0 0
        %1747 = vmatprep.subr.bf16.mxu0 0
        %1748 = vmatpush2.bf16.msra.mxu0 0
        %1749 = vmatprep.mubr.bf16.mxu0 0
        %1750 = vmatmul.mubr.bf16.gmra.mxu0 %v1712
        %v1751 = vpop.f32.mrf.mxu0
        %v1752 = vadd.f32 0.0, %v1751
        %v1753 = vpop.f32.mrf.mxu0
        %v1754 = vpop.f32.mrf.mxu0
        %v1755 = vpop.f32.mrf.mxu0
        %1756 = vdwg.mxu0
        %1758 = vrot.lane.b32.xlu0 %v1656, 8
        %v1759 = vpop.permute.xlu0 %1758
        %1762 = vrot.lane.b32.xlu0 %v1704, 16
        %v1763 = vpop.permute.xlu0 %1762
        %1766 = vrot.lane.b32.xlu0 %v1752, 24
        %v1767 = vpop.permute.xlu0 %1766
        %v1769 = vsel %vm1325, %v1608, %v1759
        %vm1770 = vcmask 130048
        %v1771 = vsel %vm1770, %v1769, %v1763
        %vm1772 = vcmask 195584
        %v1773 = vsel %vm1772, %v1771, %v1767
        %v1774 = vpack.c.bf16 %v1773, %v1773
        %v1775 = vld [vmem:[%s1145] sm:$0xf]
        %v1776 = vld [vmem:[%s1145 + $0x4] sm:$0xf]
        %v1777 = vld [vmem:[%s1145 + $0x8] sm:$0xf]
        %v1778 = vld [vmem:[%s1145 + $0xc] sm:$0xf]
        %v1779 = vld [vmem:[%s941] sm:$0x1]
        %v1781 = vlaneseq
        %v1782 = vshrl.u32 %v1781, 7
        %v1783 = vsub.s32 0, %v1782
        %v1784 = vrot.slane %v1779, %v1783
        %v1790 = vunpack.c.l.b16 %v1775
        %v1791 = vunpack.c.l.b16 %v1776
        %v1792 = vunpack.c.l.b16 %v1777
        %v1793 = vunpack.c.l.b16 %v1778
        %v1794 = vpack.c.b16 %v1791, %v1790
        %v1795 = vpack.c.b16 %v1793, %v1792
        %v1799 = vsel %vm1271, %v1774, 0
        %1801 = vmatprep.subr.bf16.mxu0 0
        %1802 = vmatpush1.bf16.msra.mxu0 0
        %1803 = vmatprep.subr.bf16.mxu0 0
        %1804 = vmatpush1.bf16.msra.mxu0 0
        %1805 = vmatprep.subr.bf16.mxu0 0
        %1806 = vmatpush1.bf16.msra.mxu0 0
        %1807 = vmatprep.subr.bf16.mxu0 0
        %1808 = vmatpush1.bf16.msra.mxu0 0
        %1809 = vmatprep.subr.bf16.mxu0 0
        %1810 = vmatpush1.bf16.msra.mxu0 0
        %1811 = vmatprep.subr.bf16.mxu0 0
        %1812 = vmatpush1.bf16.msra.mxu0 0
        %1813 = vmatprep.subr.bf16.mxu0 0
        %1814 = vmatpush1.bf16.msra.mxu0 %v1795
        %1815 = vmatprep.subr.bf16.mxu0 0
        %1816 = vmatpush1.bf16.msra.mxu0 %v1794
        %1817 = vmatprep.subr.bf16.mxu0 0
        %1818 = vmatpush2.bf16.msra.mxu0 0
        %1819 = vmatprep.subr.bf16.mxu0 0
        %1820 = vmatpush2.bf16.msra.mxu0 0
        %1821 = vmatprep.subr.bf16.mxu0 0
        %1822 = vmatpush2.bf16.msra.mxu0 0
        %1823 = vmatprep.subr.bf16.mxu0 0
        %1824 = vmatpush2.bf16.msra.mxu0 0
        %1825 = vmatprep.subr.bf16.mxu0 0
        %1826 = vmatpush2.bf16.msra.mxu0 0
        %1827 = vmatprep.subr.bf16.mxu0 0
        %1828 = vmatpush2.bf16.msra.mxu0 0
        %1829 = vmatprep.subr.bf16.mxu0 0
        %1830 = vmatpush2.bf16.msra.mxu0 0
        %1831 = vmatprep.subr.bf16.mxu0 0
        %1832 = vmatpush2.bf16.msra.mxu0 0
        %1833 = vmatprep.mubr.bf16.mxu0 0
        %1834 = vmatmul.mubr.bf16.gmra.mxu0 %v1799
        %v1835 = vpop.f32.mrf.mxu0
        %v1836 = vadd.f32 %v1784, %v1835
        %v1837 = vpop.f32.mrf.mxu0
        %v1838 = vpop.f32.mrf.mxu0
        %v1839 = vpop.f32.mrf.mxu0
        %1840 = vdwg.mxu0
        %v1841 = vadd.f32 %v1239, %v1836
        %v1842 = vsel %vm1271, %v1841, 0.0
        %1843 = vadd.xlane.f32.xlu0 %v1842
        %v1844 = vpop.xlane.xlu0 %1843
        %v1845 = vrcp.pop 32.0
        %v1846 = vmul.f32 %v1844, %v1845
        %v1847 = vsub.f32 %v1841, %v1846
        %v1848 = vmul.f32 %v1847, %v1847
        %v1849 = vsel %vm1271, %v1848, 0.0
        %1850 = vadd.xlane.f32.xlu0 %v1849
        %v1851 = vpop.xlane.xlu0 %1850
        %v1852 = vmul.f32 %v1851, %v1845
        %v1853 = vadd.f32 %v1852, 1e-05
        %v1854 = vrsqrt.pop %v1853
        %v1855 = vmul.f32 %v1847, %v1854
        %v1857 = vlaneseq
        %v1858 = vshrl.u32 %v1857, 7
        %v1859 = vsub.s32 0, %v1858
        %v1860 = vrot.slane %v1240, %v1859
        %v1862 = vmul.f32 %v1855, %v1860
        %v1864 = vlaneseq
        %v1865 = vshrl.u32 %v1864, 7
        %v1866 = vsub.s32 0, %v1865
        %v1867 = vrot.slane %v1243, %v1866
        %v1869 = vadd.f32 %v1862, %v1867
        %v1870 = vpack.c.bf16 %v1869, %v1869
        %v1871 = vld [vmem:[%s1150] sm:$0xf]
        %v1872 = vld [vmem:[%s1150 + $0x4] sm:$0xf]
        %v1873 = vld [vmem:[%s1150 + $0x8] sm:$0xf]
        %v1874 = vld [vmem:[%s1150 + $0xc] sm:$0xf]
        %v1875 = vld [vmem:[%s949] sm:$0x1]
        %v1877 = vlaneseq
        %v1878 = vshrl.u32 %v1877, 7
        %v1879 = vsub.s32 0, %v1878
        %v1880 = vrot.slane %v1875, %v1879
        %v1886 = vunpack.c.l.b16 %v1871
        %v1887 = vunpack.c.l.b16 %v1872
        %v1888 = vunpack.c.l.b16 %v1873
        %v1889 = vunpack.c.l.b16 %v1874
        %v1890 = vpack.c.b16 %v1887, %v1886
        %v1891 = vpack.c.b16 %v1889, %v1888
        %v1895 = vsel %vm1271, %v1870, 0
        %1897 = vmatprep.subr.bf16.mxu0 0
        %1898 = vmatpush1.bf16.msra.mxu0 0
        %1899 = vmatprep.subr.bf16.mxu0 0
        %1900 = vmatpush1.bf16.msra.mxu0 0
        %1901 = vmatprep.subr.bf16.mxu0 0
        %1902 = vmatpush1.bf16.msra.mxu0 0
        %1903 = vmatprep.subr.bf16.mxu0 0
        %1904 = vmatpush1.bf16.msra.mxu0 0
        %1905 = vmatprep.subr.bf16.mxu0 0
        %1906 = vmatpush1.bf16.msra.mxu0 0
        %1907 = vmatprep.subr.bf16.mxu0 0
        %1908 = vmatpush1.bf16.msra.mxu0 0
        %1909 = vmatprep.subr.bf16.mxu0 0
        %1910 = vmatpush1.bf16.msra.mxu0 %v1891
        %1911 = vmatprep.subr.bf16.mxu0 0
        %1912 = vmatpush1.bf16.msra.mxu0 %v1890
        %1913 = vmatprep.subr.bf16.mxu0 0
        %1914 = vmatpush2.bf16.msra.mxu0 0
        %1915 = vmatprep.subr.bf16.mxu0 0
        %1916 = vmatpush2.bf16.msra.mxu0 0
        %1917 = vmatprep.subr.bf16.mxu0 0
        %1918 = vmatpush2.bf16.msra.mxu0 0
        %1919 = vmatprep.subr.bf16.mxu0 0
        %1920 = vmatpush2.bf16.msra.mxu0 0
        %1921 = vmatprep.subr.bf16.mxu0 0
        %1922 = vmatpush2.bf16.msra.mxu0 0
        %1923 = vmatprep.subr.bf16.mxu0 0
        %1924 = vmatpush2.bf16.msra.mxu0 0
        %1925 = vmatprep.subr.bf16.mxu0 0
        %1926 = vmatpush2.bf16.msra.mxu0 0
        %1927 = vmatprep.subr.bf16.mxu0 0
        %1928 = vmatpush2.bf16.msra.mxu0 0
        %1929 = vmatprep.mubr.bf16.mxu0 0
        %1930 = vmatmul.mubr.bf16.gmra.mxu0 %v1895
        %v1931 = vpop.f32.mrf.mxu0
        %v1932 = vadd.f32 %v1880, %v1931
        %v1933 = vpop.f32.mrf.mxu0
        %v1934 = vpop.f32.mrf.mxu0
        %v1935 = vpop.f32.mrf.mxu0
        %1936 = vdwg.mxu0
        %v1937 = vld [vmem:[#allocation3] sm:$0xf]
        %v1938 = vld [vmem:[#allocation3 + $0x4] sm:$0xf]
        %v1939 = vld [vmem:[%s1155] sm:$0xf]
        %v1940 = vld [vmem:[%s1155 + $0x4] sm:$0xf]
        %v1941 = vld [vmem:[%s1155 + $0x8] sm:$0xf]
        %v1942 = vld [vmem:[%s1155 + $0xc] sm:$0xf]
        %v1943 = vld [vmem:[%s957] sm:$0x1]
        %v1945 = vlaneseq
        %v1946 = vshrl.u32 %v1945, 7
        %v1947 = vsub.s32 0, %v1946
        %v1948 = vrot.slane %v1943, %v1947
        %v1952 = vunpack.c.l.b16 %v1937
        %v1953 = vunpack.c.l.b16 %v1938
        %v1954 = vpack.c.b16 %v1953, %v1952
        %v1959 = vunpack.c.l.b16 %v1939
        %v1960 = vunpack.c.l.b16 %v1940
        %v1961 = vunpack.c.l.b16 %v1941
        %v1962 = vunpack.c.l.b16 %v1942
        %v1963 = vpack.c.b16 %v1960, %v1959
        %v1964 = vpack.c.b16 %v1962, %v1961
        %v1968 = vsel %vm1271, %v1954, 0
        %1970 = vmatprep.subr.bf16.mxu0 0
        %1971 = vmatpush1.bf16.msra.mxu0 0
        %1972 = vmatprep.subr.bf16.mxu0 0
        %1973 = vmatpush1.bf16.msra.mxu0 0
        %1974 = vmatprep.subr.bf16.mxu0 0
        %1975 = vmatpush1.bf16.msra.mxu0 0
        %1976 = vmatprep.subr.bf16.mxu0 0
        %1977 = vmatpush1.bf16.msra.mxu0 0
        %1978 = vmatprep.subr.bf16.mxu0 0
        %1979 = vmatpush1.bf16.msra.mxu0 0
        %1980 = vmatprep.subr.bf16.mxu0 0
        %1981 = vmatpush1.bf16.msra.mxu0 0
        %1982 = vmatprep.subr.bf16.mxu0 0
        %1983 = vmatpush1.bf16.msra.mxu0 %v1964
        %1984 = vmatprep.subr.bf16.mxu0 0
        %1985 = vmatpush1.bf16.msra.mxu0 %v1963
        %1986 = vmatprep.subr.bf16.mxu0 0
        %1987 = vmatpush2.bf16.msra.mxu0 0
        %1988 = vmatprep.subr.bf16.mxu0 0
        %1989 = vmatpush2.bf16.msra.mxu0 0
        %1990 = vmatprep.subr.bf16.mxu0 0
        %1991 = vmatpush2.bf16.msra.mxu0 0
        %1992 = vmatprep.subr.bf16.mxu0 0
        %1993 = vmatpush2.bf16.msra.mxu0 0
        %1994 = vmatprep.subr.bf16.mxu0 0
        %1995 = vmatpush2.bf16.msra.mxu0 0
        %1996 = vmatprep.subr.bf16.mxu0 0
        %1997 = vmatpush2.bf16.msra.mxu0 0
        %1998 = vmatprep.subr.bf16.mxu0 0
        %1999 = vmatpush2.bf16.msra.mxu0 0
        %2000 = vmatprep.subr.bf16.mxu0 0
        %2001 = vmatpush2.bf16.msra.mxu0 0
        %2002 = vmatprep.mubr.bf16.mxu0 0
        %2003 = vmatmul.mubr.bf16.gmra.mxu0 %v1968
        %v2004 = vpop.f32.mrf.mxu0
        %v2005 = vadd.f32 %v1948, %v2004
        %v2006 = vpop.f32.mrf.mxu0
        %v2007 = vpop.f32.mrf.mxu0
        %v2008 = vadd.f32 %v1948, %v2007
        %v2009 = vpop.f32.mrf.mxu0
        %2010 = vdwg.mxu0
        %v2011 = vpack.c.bf16 %v2008, %v2005
        %v2012 = vpack.c.bf16 %v1932, %v1932
        %2014 = vrot.lane.b32.xlu0 %v2012, 120
        %v2015 = vpop.permute.xlu0 %2014
        %2016 = vrot.lane.b32.xlu0 %v2012, 112
        %v2017 = vpop.permute.xlu0 %2016
        %2018 = vrot.lane.b32.xlu0 %v2012, 104
        %v2019 = vpop.permute.xlu0 %2018
        %2021 = vrot.lane.b32.xlu0 %v2011, 120
        %v2022 = vpop.permute.xlu0 %2021
        %2023 = vrot.lane.b32.xlu0 %v2011, 112
        %v2024 = vpop.permute.xlu0 %2023
        %2025 = vrot.lane.b32.xlu0 %v2011, 104
        %v2026 = vpop.permute.xlu0 %2025
        %v2028 = vsel %vm1325, %v2012, 0
        %v2031 = vsel %vm1325, %v2011, 0
        %2033 = vmatprep.subr.bf16.mxu0 0
        %2034 = vmatpush1.bf16.xpose.msra.mxu0 0
        %2035 = vmatprep.subr.bf16.mxu0 0
        %2036 = vmatpush1.bf16.xpose.msra.mxu0 0
        %2037 = vmatprep.subr.bf16.mxu0 0
        %2038 = vmatpush1.bf16.xpose.msra.mxu0 0
        %2039 = vmatprep.subr.bf16.mxu0 0
        %2040 = vmatpush1.bf16.xpose.msra.mxu0 0
        %2041 = vmatprep.subr.bf16.mxu0 0
        %2042 = vmatpush1.bf16.xpose.msra.mxu0 0
        %2043 = vmatprep.subr.bf16.mxu0 0
        %2044 = vmatpush1.bf16.xpose.msra.mxu0 0
        %2045 = vmatprep.subr.bf16.mxu0 0
        %2046 = vmatpush1.bf16.xpose.msra.mxu0 0
        %2047 = vmatprep.subr.bf16.mxu0 0
        %2048 = vmatpush1.bf16.xpose.msra.mxu0 %v2031
        %2049 = vmatprep.subr.bf16.mxu0 0
        %2050 = vmatpush2.bf16.xpose.msra.mxu0 0
        %2051 = vmatprep.subr.bf16.mxu0 0
        %2052 = vmatpush2.bf16.xpose.msra.mxu0 0
        %2053 = vmatprep.subr.bf16.mxu0 0
        %2054 = vmatpush2.bf16.xpose.msra.mxu0 0
        %2055 = vmatprep.subr.bf16.mxu0 0
        %2056 = vmatpush2.bf16.xpose.msra.mxu0 0
        %2057 = vmatprep.subr.bf16.mxu0 0
        %2058 = vmatpush2.bf16.xpose.msra.mxu0 0
        %2059 = vmatprep.subr.bf16.mxu0 0
        %2060 = vmatpush2.bf16.xpose.msra.mxu0 0
        %2061 = vmatprep.subr.bf16.mxu0 0
        %2062 = vmatpush2.bf16.xpose.msra.mxu0 0
        %2063 = vmatprep.subr.bf16.mxu0 0
        %2064 = vmatpush2.bf16.xpose.msra.mxu0 0
        %2065 = vmatprep.mubr.bf16.mxu0 0
        %2066 = vmatmul.mubr.bf16.gmra.mxu0 %v2028
        %v2067 = vpop.f32.mrf.mxu0
        %v2068 = vadd.f32 0.0, %v2067
        %v2069 = vpop.f32.mrf.mxu0
        %v2070 = vpop.f32.mrf.mxu0
        %v2071 = vpop.f32.mrf.mxu0
        %2072 = vdwg.mxu0
        %v2074 = vsel %vm1325, %v2015, 0
        %v2077 = vsel %vm1325, %v2022, 0
        %2079 = vmatprep.subr.bf16.mxu0 0
        %2080 = vmatpush1.bf16.xpose.msra.mxu0 0
        %2081 = vmatprep.subr.bf16.mxu0 0
        %2082 = vmatpush1.bf16.xpose.msra.mxu0 0
        %2083 = vmatprep.subr.bf16.mxu0 0
        %2084 = vmatpush1.bf16.xpose.msra.mxu0 0
        %2085 = vmatprep.subr.bf16.mxu0 0
        %2086 = vmatpush1.bf16.xpose.msra.mxu0 0
        %2087 = vmatprep.subr.bf16.mxu0 0
        %2088 = vmatpush1.bf16.xpose.msra.mxu0 0
        %2089 = vmatprep.subr.bf16.mxu0 0
        %2090 = vmatpush1.bf16.xpose.msra.mxu0 0
        %2091 = vmatprep.subr.bf16.mxu0 0
        %2092 = vmatpush1.bf16.xpose.msra.mxu0 0
        %2093 = vmatprep.subr.bf16.mxu0 0
        %2094 = vmatpush1.bf16.xpose.msra.mxu0 %v2077
        %2095 = vmatprep.subr.bf16.mxu0 0
        %2096 = vmatpush2.bf16.xpose.msra.mxu0 0
        %2097 = vmatprep.subr.bf16.mxu0 0
        %2098 = vmatpush2.bf16.xpose.msra.mxu0 0
        %2099 = vmatprep.subr.bf16.mxu0 0
        %2100 = vmatpush2.bf16.xpose.msra.mxu0 0
        %2101 = vmatprep.subr.bf16.mxu0 0
        %2102 = vmatpush2.bf16.xpose.msra.mxu0 0
        %2103 = vmatprep.subr.bf16.mxu0 0
        %2104 = vmatpush2.bf16.xpose.msra.mxu0 0
        %2105 = vmatprep.subr.bf16.mxu0 0
        %2106 = vmatpush2.bf16.xpose.msra.mxu0 0
        %2107 = vmatprep.subr.bf16.mxu0 0
        %2108 = vmatpush2.bf16.xpose.msra.mxu0 0
        %2109 = vmatprep.subr.bf16.mxu0 0
        %2110 = vmatpush2.bf16.xpose.msra.mxu0 0
        %2111 = vmatprep.mubr.bf16.mxu0 0
        %2112 = vmatmul.mubr.bf16.gmra.mxu0 %v2074
        %v2113 = vpop.f32.mrf.mxu0
        %v2114 = vadd.f32 0.0, %v2113
        %v2115 = vpop.f32.mrf.mxu0
        %v2116 = vpop.f32.mrf.mxu0
        %v2117 = vpop.f32.mrf.mxu0
        %2118 = vdwg.mxu0
        %v2120 = vsel %vm1325, %v2017, 0
        %v2123 = vsel %vm1325, %v2024, 0
        %2125 = vmatprep.subr.bf16.mxu0 0
        %2126 = vmatpush1.bf16.xpose.msra.mxu0 0
        %2127 = vmatprep.subr.bf16.mxu0 0
        %2128 = vmatpush1.bf16.xpose.msra.mxu0 0
        %2129 = vmatprep.subr.bf16.mxu0 0
        %2130 = vmatpush1.bf16.xpose.msra.mxu0 0
        %2131 = vmatprep.subr.bf16.mxu0 0
        %2132 = vmatpush1.bf16.xpose.msra.mxu0 0
        %2133 = vmatprep.subr.bf16.mxu0 0
        %2134 = vmatpush1.bf16.xpose.msra.mxu0 0
        %2135 = vmatprep.subr.bf16.mxu0 0
        %2136 = vmatpush1.bf16.xpose.msra.mxu0 0
        %2137 = vmatprep.subr.bf16.mxu0 0
        %2138 = vmatpush1.bf16.xpose.msra.mxu0 0
        %2139 = vmatprep.subr.bf16.mxu0 0
        %2140 = vmatpush1.bf16.xpose.msra.mxu0 %v2123
        %2141 = vmatprep.subr.bf16.mxu0 0
        %2142 = vmatpush2.bf16.xpose.msra.mxu0 0
        %2143 = vmatprep.subr.bf16.mxu0 0
        %2144 = vmatpush2.bf16.xpose.msra.mxu0 0
        %2145 = vmatprep.subr.bf16.mxu0 0
        %2146 = vmatpush2.bf16.xpose.msra.mxu0 0
        %2147 = vmatprep.subr.bf16.mxu0 0
        %2148 = vmatpush2.bf16.xpose.msra.mxu0 0
        %2149 = vmatprep.subr.bf16.mxu0 0
        %2150 = vmatpush2.bf16.xpose.msra.mxu0 0
        %2151 = vmatprep.subr.bf16.mxu0 0
        %2152 = vmatpush2.bf16.xpose.msra.mxu0 0
        %2153 = vmatprep.subr.bf16.mxu0 0
        %2154 = vmatpush2.bf16.xpose.msra.mxu0 0
        %2155 = vmatprep.subr.bf16.mxu0 0
        %2156 = vmatpush2.bf16.xpose.msra.mxu0 0
        %2157 = vmatprep.mubr.bf16.mxu0 0
        %2158 = vmatmul.mubr.bf16.gmra.mxu0 %v2120
        %v2159 = vpop.f32.mrf.mxu0
        %v2160 = vadd.f32 0.0, %v2159
        %v2161 = vpop.f32.mrf.mxu0
        %v2162 = vpop.f32.mrf.mxu0
        %v2163 = vpop.f32.mrf.mxu0
        %2164 = vdwg.mxu0
        %v2166 = vsel %vm1325, %v2019, 0
        %v2169 = vsel %vm1325, %v2026, 0
        %2171 = vmatprep.subr.bf16.mxu0 0
        %2172 = vmatpush1.bf16.xpose.msra.mxu0 0
        %2173 = vmatprep.subr.bf16.mxu0 0
        %2174 = vmatpush1.bf16.xpose.msra.mxu0 0
        %2175 = vmatprep.subr.bf16.mxu0 0
        %2176 = vmatpush1.bf16.xpose.msra.mxu0 0
        %2177 = vmatprep.subr.bf16.mxu0 0
        %2178 = vmatpush1.bf16.xpose.msra.mxu0 0
        %2179 = vmatprep.subr.bf16.mxu0 0
        %2180 = vmatpush1.bf16.xpose.msra.mxu0 0
        %2181 = vmatprep.subr.bf16.mxu0 0
        %2182 = vmatpush1.bf16.xpose.msra.mxu0 0
        %2183 = vmatprep.subr.bf16.mxu0 0
        %2184 = vmatpush1.bf16.xpose.msra.mxu0 0
        %2185 = vmatprep.subr.bf16.mxu0 0
        %2186 = vmatpush1.bf16.xpose.msra.mxu0 %v2169
        %2187 = vmatprep.subr.bf16.mxu0 0
        %2188 = vmatpush2.bf16.xpose.msra.mxu0 0
        %2189 = vmatprep.subr.bf16.mxu0 0
        %2190 = vmatpush2.bf16.xpose.msra.mxu0 0
        %2191 = vmatprep.subr.bf16.mxu0 0
        %2192 = vmatpush2.bf16.xpose.msra.mxu0 0
        %2193 = vmatprep.subr.bf16.mxu0 0
        %2194 = vmatpush2.bf16.xpose.msra.mxu0 0
        %2195 = vmatprep.subr.bf16.mxu0 0
        %2196 = vmatpush2.bf16.xpose.msra.mxu0 0
        %2197 = vmatprep.subr.bf16.mxu0 0
        %2198 = vmatpush2.bf16.xpose.msra.mxu0 0
        %2199 = vmatprep.subr.bf16.mxu0 0
        %2200 = vmatpush2.bf16.xpose.msra.mxu0 0
        %2201 = vmatprep.subr.bf16.mxu0 0
        %2202 = vmatpush2.bf16.xpose.msra.mxu0 0
        %2203 = vmatprep.mubr.bf16.mxu0 0
        %2204 = vmatmul.mubr.bf16.gmra.mxu0 %v2166
        %v2205 = vpop.f32.mrf.mxu0
        %v2206 = vadd.f32 0.0, %v2205
        %v2207 = vpop.f32.mrf.mxu0
        %v2208 = vpop.f32.mrf.mxu0
        %v2209 = vpop.f32.mrf.mxu0
        %2210 = vdwg.mxu0
        %v2211 = vsel %vm1770, %v2068, -inf
        %2212 = vmax.xlane.f32.xlu0 %v2211
        %v2213 = vpop.xlane.xlu0 %2212
        %v2214 = vsel %vm1770, %v2114, -inf
        %2215 = vmax.xlane.f32.xlu0 %v2214
        %v2216 = vpop.xlane.xlu0 %2215
        %v2217 = vsel %vm1770, %v2160, -inf
        %2218 = vmax.xlane.f32.xlu0 %v2217
        %v2219 = vpop.xlane.xlu0 %2218
        %v2220 = vsel %vm1770, %v2206, -inf
        %2221 = vmax.xlane.f32.xlu0 %v2220
        %v2222 = vpop.xlane.xlu0 %2221
        %v2223 = vsub.f32 %v2068, %v2213
        %v2224 = vsub.f32 %v2114, %v2216
        %v2225 = vsub.f32 %v2160, %v2219
        %v2226 = vsub.f32 %v2206, %v2222
        %v2227 = vmul.f32 %v2223, 1.442695
        %v2228 = vpow.pop %v2227
        %v2229 = vmul.f32 %v2224, 1.442695
        %v2230 = vpow.pop %v2229
        %v2231 = vmul.f32 %v2225, 1.442695
        %v2232 = vpow.pop %v2231
        %v2233 = vmul.f32 %v2226, 1.442695
        %v2234 = vpow.pop %v2233
        %v2235 = vsel %vm1770, %v2228, 0.0
        %2236 = vadd.xlane.f32.xlu0 %v2235
        %v2237 = vpop.xlane.xlu0 %2236
        %v2238 = vsel %vm1770, %v2230, 0.0
        %2239 = vadd.xlane.f32.xlu0 %v2238
        %v2240 = vpop.xlane.xlu0 %2239
        %v2241 = vsel %vm1770, %v2232, 0.0
        %2242 = vadd.xlane.f32.xlu0 %v2241
        %v2243 = vpop.xlane.xlu0 %2242
        %v2244 = vsel %vm1770, %v2234, 0.0
        %2245 = vadd.xlane.f32.xlu0 %v2244
        %v2246 = vpop.xlane.xlu0 %2245
        %v2247 = vrcp.pop %v2237
        %v2248 = vrcp.pop %v2240
        %v2249 = vrcp.pop %v2243
        %v2250 = vrcp.pop %v2246
        %v2251 = vmul.f32 %v2228, %v2247
        %v2252 = vmul.f32 %v2230, %v2248
        %v2253 = vmul.f32 %v2232, %v2249
        %v2254 = vmul.f32 %v2234, %v2250
        %v2255 = vpack.c.bf16 %v2251, %v2251
        %v2256 = vpack.c.bf16 %v2252, %v2252
        %v2257 = vpack.c.bf16 %v2253, %v2253
        %v2258 = vpack.c.bf16 %v2254, %v2254
        %2259 = vrot.lane.b32.xlu0 %v2011, 96
        %v2260 = vpop.permute.xlu0 %2259
        %v2263 = vsel %vm1770, %v2255, 0
        %2265 = vmatprep.subr.bf16.mxu0 0
        %2266 = vmatpush1.bf16.msra.mxu0 0
        %2267 = vmatprep.subr.bf16.mxu0 0
        %2268 = vmatpush1.bf16.msra.mxu0 0
        %2269 = vmatprep.subr.bf16.mxu0 0
        %2270 = vmatpush1.bf16.msra.mxu0 0
        %2271 = vmatprep.subr.bf16.mxu0 0
        %2272 = vmatpush1.bf16.msra.mxu0 0
        %2273 = vmatprep.subr.bf16.mxu0 0
        %2274 = vmatpush1.bf16.msra.mxu0 0
        %2275 = vmatprep.subr.bf16.mxu0 0
        %2276 = vmatpush1.bf16.msra.mxu0 0
        %2277 = vmatprep.subr.bf16.mxu0 0
        %2278 = vmatpush1.bf16.msra.mxu0 0
        %2279 = vmatprep.subr.bf16.mxu0 0
        %2280 = vmatpush1.bf16.msra.mxu0 %v2260
        %2281 = vmatprep.subr.bf16.mxu0 0
        %2282 = vmatpush2.bf16.msra.mxu0 0
        %2283 = vmatprep.subr.bf16.mxu0 0
        %2284 = vmatpush2.bf16.msra.mxu0 0
        %2285 = vmatprep.subr.bf16.mxu0 0
        %2286 = vmatpush2.bf16.msra.mxu0 0
        %2287 = vmatprep.subr.bf16.mxu0 0
        %2288 = vmatpush2.bf16.msra.mxu0 0
        %2289 = vmatprep.subr.bf16.mxu0 0
        %2290 = vmatpush2.bf16.msra.mxu0 0
        %2291 = vmatprep.subr.bf16.mxu0 0
        %2292 = vmatpush2.bf16.msra.mxu0 0
        %2293 = vmatprep.subr.bf16.mxu0 0
        %2294 = vmatpush2.bf16.msra.mxu0 0
        %2295 = vmatprep.subr.bf16.mxu0 0
        %2296 = vmatpush2.bf16.msra.mxu0 0
        %2297 = vmatprep.mubr.bf16.mxu0 0
        %2298 = vmatmul.mubr.bf16.gmra.mxu0 %v2263
        %v2299 = vpop.f32.mrf.mxu0
        %v2300 = vadd.f32 0.0, %v2299
        %v2301 = vpop.f32.mrf.mxu0
        %v2302 = vpop.f32.mrf.mxu0
        %v2303 = vpop.f32.mrf.mxu0
        %2304 = vdwg.mxu0
        %2305 = vrot.lane.b32.xlu0 %v2022, 96
        %v2306 = vpop.permute.xlu0 %2305
        %v2309 = vsel %vm1770, %v2256, 0
        %2311 = vmatprep.subr.bf16.mxu0 0
        %2312 = vmatpush1.bf16.msra.mxu0 0
        %2313 = vmatprep.subr.bf16.mxu0 0
        %2314 = vmatpush1.bf16.msra.mxu0 0
        %2315 = vmatprep.subr.bf16.mxu0 0
        %2316 = vmatpush1.bf16.msra.mxu0 0
        %2317 = vmatprep.subr.bf16.mxu0 0
        %2318 = vmatpush1.bf16.msra.mxu0 0
        %2319 = vmatprep.subr.bf16.mxu0 0
        %2320 = vmatpush1.bf16.msra.mxu0 0
        %2321 = vmatprep.subr.bf16.mxu0 0
        %2322 = vmatpush1.bf16.msra.mxu0 0
        %2323 = vmatprep.subr.bf16.mxu0 0
        %2324 = vmatpush1.bf16.msra.mxu0 0
        %2325 = vmatprep.subr.bf16.mxu0 0
        %2326 = vmatpush1.bf16.msra.mxu0 %v2306
        %2327 = vmatprep.subr.bf16.mxu0 0
        %2328 = vmatpush2.bf16.msra.mxu0 0
        %2329 = vmatprep.subr.bf16.mxu0 0
        %2330 = vmatpush2.bf16.msra.mxu0 0
        %2331 = vmatprep.subr.bf16.mxu0 0
        %2332 = vmatpush2.bf16.msra.mxu0 0
        %2333 = vmatprep.subr.bf16.mxu0 0
        %2334 = vmatpush2.bf16.msra.mxu0 0
        %2335 = vmatprep.subr.bf16.mxu0 0
        %2336 = vmatpush2.bf16.msra.mxu0 0
        %2337 = vmatprep.subr.bf16.mxu0 0
        %2338 = vmatpush2.bf16.msra.mxu0 0
        %2339 = vmatprep.subr.bf16.mxu0 0
        %2340 = vmatpush2.bf16.msra.mxu0 0
        %2341 = vmatprep.subr.bf16.mxu0 0
        %2342 = vmatpush2.bf16.msra.mxu0 0
        %2343 = vmatprep.mubr.bf16.mxu0 0
        %2344 = vmatmul.mubr.bf16.gmra.mxu0 %v2309
        %v2345 = vpop.f32.mrf.mxu0
        %v2346 = vadd.f32 0.0, %v2345
        %v2347 = vpop.f32.mrf.mxu0
        %v2348 = vpop.f32.mrf.mxu0
        %v2349 = vpop.f32.mrf.mxu0
        %2350 = vdwg.mxu0
        %2351 = vrot.lane.b32.xlu0 %v2024, 96
        %v2352 = vpop.permute.xlu0 %2351
        %v2355 = vsel %vm1770, %v2257, 0
        %2357 = vmatprep.subr.bf16.mxu0 0
        %2358 = vmatpush1.bf16.msra.mxu0 0
        %2359 = vmatprep.subr.bf16.mxu0 0
        %2360 = vmatpush1.bf16.msra.mxu0 0
        %2361 = vmatprep.subr.bf16.mxu0 0
        %2362 = vmatpush1.bf16.msra.mxu0 0
        %2363 = vmatprep.subr.bf16.mxu0 0
        %2364 = vmatpush1.bf16.msra.mxu0 0
        %2365 = vmatprep.subr.bf16.mxu0 0
        %2366 = vmatpush1.bf16.msra.mxu0 0
        %2367 = vmatprep.subr.bf16.mxu0 0
        %2368 = vmatpush1.bf16.msra.mxu0 0
        %2369 = vmatprep.subr.bf16.mxu0 0
        %2370 = vmatpush1.bf16.msra.mxu0 0
        %2371 = vmatprep.subr.bf16.mxu0 0
        %2372 = vmatpush1.bf16.msra.mxu0 %v2352
        %2373 = vmatprep.subr.bf16.mxu0 0
        %2374 = vmatpush2.bf16.msra.mxu0 0
        %2375 = vmatprep.subr.bf16.mxu0 0
        %2376 = vmatpush2.bf16.msra.mxu0 0
        %2377 = vmatprep.subr.bf16.mxu0 0
        %2378 = vmatpush2.bf16.msra.mxu0 0
        %2379 = vmatprep.subr.bf16.mxu0 0
        %2380 = vmatpush2.bf16.msra.mxu0 0
        %2381 = vmatprep.subr.bf16.mxu0 0
        %2382 = vmatpush2.bf16.msra.mxu0 0
        %2383 = vmatprep.subr.bf16.mxu0 0
        %2384 = vmatpush2.bf16.msra.mxu0 0
        %2385 = vmatprep.subr.bf16.mxu0 0
        %2386 = vmatpush2.bf16.msra.mxu0 0
        %2387 = vmatprep.subr.bf16.mxu0 0
        %2388 = vmatpush2.bf16.msra.mxu0 0
        %2389 = vmatprep.mubr.bf16.mxu0 0
        %2390 = vmatmul.mubr.bf16.gmra.mxu0 %v2355
        %v2391 = vpop.f32.mrf.mxu0
        %v2392 = vadd.f32 0.0, %v2391
        %v2393 = vpop.f32.mrf.mxu0
        %v2394 = vpop.f32.mrf.mxu0
        %v2395 = vpop.f32.mrf.mxu0
        %2396 = vdwg.mxu0
        %2397 = vrot.lane.b32.xlu0 %v2026, 96
        %v2398 = vpop.permute.xlu0 %2397
        %v2401 = vsel %vm1770, %v2258, 0
        %2403 = vmatprep.subr.bf16.mxu0 0
        %2404 = vmatpush1.bf16.msra.mxu0 0
        %2405 = vmatprep.subr.bf16.mxu0 0
        %2406 = vmatpush1.bf16.msra.mxu0 0
        %2407 = vmatprep.subr.bf16.mxu0 0
        %2408 = vmatpush1.bf16.msra.mxu0 0
        %2409 = vmatprep.subr.bf16.mxu0 0
        %2410 = vmatpush1.bf16.msra.mxu0 0
        %2411 = vmatprep.subr.bf16.mxu0 0
        %2412 = vmatpush1.bf16.msra.mxu0 0
        %2413 = vmatprep.subr.bf16.mxu0 0
        %2414 = vmatpush1.bf16.msra.mxu0 0
        %2415 = vmatprep.subr.bf16.mxu0 0
        %2416 = vmatpush1.bf16.msra.mxu0 0
        %2417 = vmatprep.subr.bf16.mxu0 0
        %2418 = vmatpush1.bf16.msra.mxu0 %v2398
        %2419 = vmatprep.subr.bf16.mxu0 0
        %2420 = vmatpush2.bf16.msra.mxu0 0
        %2421 = vmatprep.subr.bf16.mxu0 0
        %2422 = vmatpush2.bf16.msra.mxu0 0
        %2423 = vmatprep.subr.bf16.mxu0 0
        %2424 = vmatpush2.bf16.msra.mxu0 0
        %2425 = vmatprep.subr.bf16.mxu0 0
        %2426 = vmatpush2.bf16.msra.mxu0 0
        %2427 = vmatprep.subr.bf16.mxu0 0
        %2428 = vmatpush2.bf16.msra.mxu0 0
        %2429 = vmatprep.subr.bf16.mxu0 0
        %2430 = vmatpush2.bf16.msra.mxu0 0
        %2431 = vmatprep.subr.bf16.mxu0 0
        %2432 = vmatpush2.bf16.msra.mxu0 0
        %2433 = vmatprep.subr.bf16.mxu0 0
        %2434 = vmatpush2.bf16.msra.mxu0 0
        %2435 = vmatprep.mubr.bf16.mxu0 0
        %2436 = vmatmul.mubr.bf16.gmra.mxu0 %v2401
        %v2437 = vpop.f32.mrf.mxu0
        %v2438 = vadd.f32 0.0, %v2437
        %v2439 = vpop.f32.mrf.mxu0
        %v2440 = vpop.f32.mrf.mxu0
        %v2441 = vpop.f32.mrf.mxu0
        %2442 = vdwg.mxu0
        %2444 = vrot.lane.b32.xlu0 %v2346, 8
        %v2445 = vpop.permute.xlu0 %2444
        %2448 = vrot.lane.b32.xlu0 %v2392, 16
        %v2449 = vpop.permute.xlu0 %2448
        %2452 = vrot.lane.b32.xlu0 %v2438, 24
        %v2453 = vpop.permute.xlu0 %2452
        %v2455 = vsel %vm1325, %v2300, %v2445
        %v2456 = vsel %vm1770, %v2455, %v2449
        %v2457 = vsel %vm1772, %v2456, %v2453
        %v2458 = vpack.c.bf16 %v2457, %v2457
        %v2459 = vld [vmem:[%s966] sm:$0xf]
        %v2460 = vld [vmem:[%s966 + $0x4] sm:$0xf]
        %v2461 = vld [vmem:[%s966 + $0x8] sm:$0xf]
        %v2462 = vld [vmem:[%s966 + $0xc] sm:$0xf]
        %v2463 = vld [vmem:[%s974] sm:$0x1]
        %v2465 = vlaneseq
        %v2466 = vshrl.u32 %v2465, 7
        %v2467 = vsub.s32 0, %v2466
        %v2468 = vrot.slane %v2463, %v2467
        %v2474 = vunpack.c.l.b16 %v2459
        %v2475 = vunpack.c.l.b16 %v2460
        %v2476 = vunpack.c.l.b16 %v2461
        %v2477 = vunpack.c.l.b16 %v2462
        %v2478 = vpack.c.b16 %v2475, %v2474
        %v2479 = vpack.c.b16 %v2477, %v2476
        %v2483 = vsel %vm1271, %v2458, 0
        %2485 = vmatprep.subr.bf16.mxu0 0
        %2486 = vmatpush1.bf16.msra.mxu0 0
        %2487 = vmatprep.subr.bf16.mxu0 0
        %2488 = vmatpush1.bf16.msra.mxu0 0
        %2489 = vmatprep.subr.bf16.mxu0 0
        %2490 = vmatpush1.bf16.msra.mxu0 0
        %2491 = vmatprep.subr.bf16.mxu0 0
        %2492 = vmatpush1.bf16.msra.mxu0 0
        %2493 = vmatprep.subr.bf16.mxu0 0
        %2494 = vmatpush1.bf16.msra.mxu0 0
        %2495 = vmatprep.subr.bf16.mxu0 0
        %2496 = vmatpush1.bf16.msra.mxu0 0
        %2497 = vmatprep.subr.bf16.mxu0 0
        %2498 = vmatpush1.bf16.msra.mxu0 %v2479
        %2499 = vmatprep.subr.bf16.mxu0 0
        %2500 = vmatpush1.bf16.msra.mxu0 %v2478
        %2501 = vmatprep.subr.bf16.mxu0 0
        %2502 = vmatpush2.bf16.msra.mxu0 0
        %2503 = vmatprep.subr.bf16.mxu0 0
        %2504 = vmatpush2.bf16.msra.mxu0 0
        %2505 = vmatprep.subr.bf16.mxu0 0
        %2506 = vmatpush2.bf16.msra.mxu0 0
        %2507 = vmatprep.subr.bf16.mxu0 0
        %2508 = vmatpush2.bf16.msra.mxu0 0
        %2509 = vmatprep.subr.bf16.mxu0 0
        %2510 = vmatpush2.bf16.msra.mxu0 0
        %2511 = vmatprep.subr.bf16.mxu0 0
        %2512 = vmatpush2.bf16.msra.mxu0 0
        %2513 = vmatprep.subr.bf16.mxu0 0
        %2514 = vmatpush2.bf16.msra.mxu0 0
        %2515 = vmatprep.subr.bf16.mxu0 0
        %2516 = vmatpush2.bf16.msra.mxu0 0
        %2517 = vmatprep.mubr.bf16.mxu0 0
        %2518 = vmatmul.mubr.bf16.gmra.mxu0 %v2483
        %v2519 = vpop.f32.mrf.mxu0
        %v2520 = vadd.f32 %v2468, %v2519
        %v2521 = vpop.f32.mrf.mxu0
        %v2522 = vpop.f32.mrf.mxu0
        %v2523 = vpop.f32.mrf.mxu0
        %2524 = vdwg.mxu0
        %v2525 = vadd.f32 %v1869, %v2520
        %v2526 = vsel %vm1271, %v2525, 0.0
        %2527 = vadd.xlane.f32.xlu0 %v2526
        %v2528 = vpop.xlane.xlu0 %2527
        %v2529 = vmul.f32 %v2528, %v1845
        %v2530 = vsub.f32 %v2525, %v2529
        %v2531 = vmul.f32 %v2530, %v2530
        %v2532 = vsel %vm1271, %v2531, 0.0
        %2533 = vadd.xlane.f32.xlu0 %v2532
        %v2534 = vpop.xlane.xlu0 %2533
        %v2535 = vmul.f32 %v2534, %v1845
        %v2536 = vadd.f32 %v2535, 1e-05
        %v2537 = vrsqrt.pop %v2536
        %v2538 = vmul.f32 %v2530, %v2537
        %v2540 = vlaneseq
        %v2541 = vshrl.u32 %v2540, 7
        %v2542 = vsub.s32 0, %v2541
        %v2543 = vrot.slane %v1241, %v2542
        %v2545 = vmul.f32 %v2538, %v2543
        %v2547 = vlaneseq
        %v2548 = vshrl.u32 %v2547, 7
        %v2549 = vsub.s32 0, %v2548
        %v2550 = vrot.slane %v1244, %v2549
        %v2552 = vadd.f32 %v2545, %v2550
        %v2553 = vpack.c.bf16 %v2552, %v2552
        %v2554 = vld [vmem:[%s1160] sm:$0xf]
        %v2555 = vld [vmem:[%s1160 + $0x4] sm:$0xf]
        %v2556 = vld [vmem:[%s1160 + $0x8] sm:$0xf]
        %v2557 = vld [vmem:[%s1160 + $0xc] sm:$0xf]
        %v2558 = vld [vmem:[%s982] sm:$0x1]
        %v2560 = vlaneseq
        %v2561 = vshrl.u32 %v2560, 7
        %v2562 = vsub.s32 0, %v2561
        %v2563 = vrot.slane %v2558, %v2562
        %v2569 = vunpack.c.l.b16 %v2554
        %v2570 = vunpack.c.l.b16 %v2555
        %v2571 = vunpack.c.l.b16 %v2556
        %v2572 = vunpack.c.l.b16 %v2557
        %v2573 = vpack.c.b16 %v2570, %v2569
        %v2574 = vpack.c.b16 %v2572, %v2571
        %v2578 = vsel %vm1271, %v2553, 0
        %2580 = vmatprep.subr.bf16.mxu0 0
        %2581 = vmatpush1.bf16.msra.mxu0 0
        %2582 = vmatprep.subr.bf16.mxu0 0
        %2583 = vmatpush1.bf16.msra.mxu0 0
        %2584 = vmatprep.subr.bf16.mxu0 0
        %2585 = vmatpush1.bf16.msra.mxu0 0
        %2586 = vmatprep.subr.bf16.mxu0 0
        %2587 = vmatpush1.bf16.msra.mxu0 0
        %2588 = vmatprep.subr.bf16.mxu0 0
        %2589 = vmatpush1.bf16.msra.mxu0 0
        %2590 = vmatprep.subr.bf16.mxu0 0
        %2591 = vmatpush1.bf16.msra.mxu0 0
        %2592 = vmatprep.subr.bf16.mxu0 0
        %2593 = vmatpush1.bf16.msra.mxu0 %v2574
        %2594 = vmatprep.subr.bf16.mxu0 0
        %2595 = vmatpush1.bf16.msra.mxu0 %v2573
        %2596 = vmatprep.subr.bf16.mxu0 0
        %2597 = vmatpush2.bf16.msra.mxu0 0
        %2598 = vmatprep.subr.bf16.mxu0 0
        %2599 = vmatpush2.bf16.msra.mxu0 0
        %2600 = vmatprep.subr.bf16.mxu0 0
        %2601 = vmatpush2.bf16.msra.mxu0 0
        %2602 = vmatprep.subr.bf16.mxu0 0
        %2603 = vmatpush2.bf16.msra.mxu0 0
        %2604 = vmatprep.subr.bf16.mxu0 0
        %2605 = vmatpush2.bf16.msra.mxu0 0
        %2606 = vmatprep.subr.bf16.mxu0 0
        %2607 = vmatpush2.bf16.msra.mxu0 0
        %2608 = vmatprep.subr.bf16.mxu0 0
        %2609 = vmatpush2.bf16.msra.mxu0 0
        %2610 = vmatprep.subr.bf16.mxu0 0
        %2611 = vmatpush2.bf16.msra.mxu0 0
        %2612 = vmatprep.mubr.bf16.mxu0 0
        %2613 = vmatmul.mubr.bf16.gmra.mxu0 %v2578
        %v2614 = vpop.f32.mrf.mxu0
        %v2615 = vadd.f32 %v2563, %v2614
        %v2616 = vpop.f32.mrf.mxu0
        %v2617 = vpop.f32.mrf.mxu0
        %v2618 = vpop.f32.mrf.mxu0
        %2619 = vdwg.mxu0
        %v2620 = vmax.f32 %v2615, 0.0
        %v2621 = vpack.c.bf16 %v2620, %v2620
        %v2622 = vld [vmem:[%s1165] sm:$0xf]
        %v2623 = vld [vmem:[%s1165 + $0x4] sm:$0xf]
        %v2624 = vld [vmem:[%s1165 + $0x8] sm:$0xf]
        %v2625 = vld [vmem:[%s1165 + $0xc] sm:$0xf]
        %v2626 = vld [vmem:[%s1165 + $0x10] sm:$0xf]
        %v2627 = vld [vmem:[%s1165 + $0x14] sm:$0xf]
        %v2628 = vld [vmem:[%s1165 + $0x18] sm:$0xf]
        %v2629 = vld [vmem:[%s1165 + $0x1c] sm:$0xf]
        %v2630 = vld [vmem:[%s990] sm:$0x1]
        %v2632 = vlaneseq
        %v2633 = vshrl.u32 %v2632, 7
        %v2634 = vsub.s32 0, %v2633
        %v2635 = vrot.slane %v2630, %v2634
        %v2645 = vunpack.c.l.b16 %v2622
        %v2646 = vunpack.c.l.b16 %v2623
        %v2647 = vunpack.c.l.b16 %v2624
        %v2648 = vunpack.c.l.b16 %v2625
        %v2649 = vunpack.c.l.b16 %v2626
        %v2650 = vunpack.c.l.b16 %v2627
        %v2651 = vunpack.c.l.b16 %v2628
        %v2652 = vunpack.c.l.b16 %v2629
        %v2653 = vpack.c.b16 %v2646, %v2645
        %v2654 = vpack.c.b16 %v2648, %v2647
        %v2655 = vpack.c.b16 %v2650, %v2649
        %v2656 = vpack.c.b16 %v2652, %v2651
        %vm2661 = vcmask 523264
        %v2663 = vsel %vm2661, %v2621, 0
        %2665 = vmatprep.subr.bf16.mxu0 0
        %2666 = vmatpush1.bf16.msra.mxu0 0
        %2667 = vmatprep.subr.bf16.mxu0 0
        %2668 = vmatpush1.bf16.msra.mxu0 0
        %2669 = vmatprep.subr.bf16.mxu0 0
        %2670 = vmatpush1.bf16.msra.mxu0 0
        %2671 = vmatprep.subr.bf16.mxu0 0
        %2672 = vmatpush1.bf16.msra.mxu0 0
        %2673 = vmatprep.subr.bf16.mxu0 0
        %2674 = vmatpush1.bf16.msra.mxu0 %v2656
        %2675 = vmatprep.subr.bf16.mxu0 0
        %2676 = vmatpush1.bf16.msra.mxu0 %v2655
        %2677 = vmatprep.subr.bf16.mxu0 0
        %2678 = vmatpush1.bf16.msra.mxu0 %v2654
        %2679 = vmatprep.subr.bf16.mxu0 0
        %2680 = vmatpush1.bf16.msra.mxu0 %v2653
        %2681 = vmatprep.subr.bf16.mxu0 0
        %2682 = vmatpush2.bf16.msra.mxu0 0
        %2683 = vmatprep.subr.bf16.mxu0 0
        %2684 = vmatpush2.bf16.msra.mxu0 0
        %2685 = vmatprep.subr.bf16.mxu0 0
        %2686 = vmatpush2.bf16.msra.mxu0 0
        %2687 = vmatprep.subr.bf16.mxu0 0
        %2688 = vmatpush2.bf16.msra.mxu0 0
        %2689 = vmatprep.subr.bf16.mxu0 0
        %2690 = vmatpush2.bf16.msra.mxu0 0
        %2691 = vmatprep.subr.bf16.mxu0 0
        %2692 = vmatpush2.bf16.msra.mxu0 0
        %2693 = vmatprep.subr.bf16.mxu0 0
        %2694 = vmatpush2.bf16.msra.mxu0 0
        %2695 = vmatprep.subr.bf16.mxu0 0
        %2696 = vmatpush2.bf16.msra.mxu0 0
        %2697 = vmatprep.mubr.bf16.mxu0 0
        %2698 = vmatmul.mubr.bf16.gmra.mxu0 %v2663
        %v2699 = vpop.f32.mrf.mxu0
        %v2700 = vadd.f32 %v2635, %v2699
        %v2701 = vpop.f32.mrf.mxu0
        %v2702 = vpop.f32.mrf.mxu0
        %v2703 = vpop.f32.mrf.mxu0
        %2704 = vdwg.mxu0
        %v2705 = vadd.f32 %v2552, %v2700
        %v2706 = vsel %vm1271, %v2705, 0.0
        %2707 = vadd.xlane.f32.xlu0 %v2706
        %v2708 = vpop.xlane.xlu0 %2707
        %v2709 = vmul.f32 %v2708, %v1845
        %v2710 = vsub.f32 %v2705, %v2709
        %v2711 = vmul.f32 %v2710, %v2710
        %v2712 = vsel %vm1271, %v2711, 0.0
        %2713 = vadd.xlane.f32.xlu0 %v2712
        %v2714 = vpop.xlane.xlu0 %2713
        %v2715 = vmul.f32 %v2714, %v1845
        %v2716 = vadd.f32 %v2715, 1e-05
        %v2717 = vrsqrt.pop %v2716
        %v2718 = vmul.f32 %v2710, %v2717
        %v2720 = vlaneseq
        %v2721 = vshrl.u32 %v2720, 7
        %v2722 = vsub.s32 0, %v2721
        %v2723 = vrot.slane %v1242, %v2722
        %v2725 = vmul.f32 %v2718, %v2723
        %v2727 = vlaneseq
        %v2728 = vshrl.u32 %v2727, 7
        %v2729 = vsub.s32 0, %v2728
        %v2730 = vrot.slane %v1245, %v2729
        %v2732 = vadd.f32 %v2725, %v2730
        %2733 = vst.msk [vmem:[#allocation2] sm:$0xff] %vm1271, %v2732
        %p2734 = scmp.eq.s32.totalorder %s41, 1
        // Predicated region
        $region161: #{tpu_custom_call.1} parent=111 // pred_check
          %p2735 = pneg %p2734
        $region162: #{tpu_custom_call.1} parent=111 // pred_check_branch
          %2737 = sbr.rel (%p2735) target = $region164
        $region163: #{tpu_custom_call.1} parent=111 // pred_region
          %v2738 = vpack.c.bf16 %v2732, %v2732
          %v2739 = vld [vmem:[%s21] sm:$0xf]
          %v2740 = vld [vmem:[%s21 + $0x4] sm:$0xf]
          %v2741 = vld [vmem:[%s21 + $0x8] sm:$0xf]
          %v2742 = vld [vmem:[%s21 + $0xc] sm:$0xf]
          %v2743 = vld [vmem:[%s22] sm:$0x1]
          %v2745 = vlaneseq
          %v2746 = vshrl.u32 %v2745, 7
          %v2747 = vsub.s32 0, %v2746
          %v2748 = vrot.slane %v2743, %v2747
          %v2754 = vunpack.c.l.b16 %v2739
          %v2755 = vunpack.c.l.b16 %v2740
          %v2756 = vunpack.c.l.b16 %v2741
          %v2757 = vunpack.c.l.b16 %v2742
          %v2758 = vpack.c.b16 %v2755, %v2754
          %v2759 = vpack.c.b16 %v2757, %v2756
          %v2763 = vsel %vm1271, %v2738, 0
          %2765 = vmatprep.subr.bf16.mxu0 0
          %2766 = vmatpush1.bf16.msra.mxu0 0
          %2767 = vmatprep.subr.bf16.mxu0 0
          %2768 = vmatpush1.bf16.msra.mxu0 0
          %2769 = vmatprep.subr.bf16.mxu0 0
          %2770 = vmatpush1.bf16.msra.mxu0 0
          %2771 = vmatprep.subr.bf16.mxu0 0
          %2772 = vmatpush1.bf16.msra.mxu0 0
          %2773 = vmatprep.subr.bf16.mxu0 0
          %2774 = vmatpush1.bf16.msra.mxu0 0
          %2775 = vmatprep.subr.bf16.mxu0 0
          %2776 = vmatpush1.bf16.msra.mxu0 0
          %2777 = vmatprep.subr.bf16.mxu0 0
          %2778 = vmatpush1.bf16.msra.mxu0 %v2759
          %2779 = vmatprep.subr.bf16.mxu0 0
          %2780 = vmatpush1.bf16.msra.mxu0 %v2758
          %2781 = vmatprep.subr.bf16.mxu0 0
          %2782 = vmatpush2.bf16.msra.mxu0 0
          %2783 = vmatprep.subr.bf16.mxu0 0
          %2784 = vmatpush2.bf16.msra.mxu0 0
          %2785 = vmatprep.subr.bf16.mxu0 0
          %2786 = vmatpush2.bf16.msra.mxu0 0
          %2787 = vmatprep.subr.bf16.mxu0 0
          %2788 = vmatpush2.bf16.msra.mxu0 0
          %2789 = vmatprep.subr.bf16.mxu0 0
          %2790 = vmatpush2.bf16.msra.mxu0 0
          %2791 = vmatprep.subr.bf16.mxu0 0
          %2792 = vmatpush2.bf16.msra.mxu0 0
          %2793 = vmatprep.subr.bf16.mxu0 0
          %2794 = vmatpush2.bf16.msra.mxu0 0
          %2795 = vmatprep.subr.bf16.mxu0 0
          %2796 = vmatpush2.bf16.msra.mxu0 0
          %2797 = vmatprep.mubr.bf16.mxu0 0
          %2798 = vmatmul.mubr.bf16.gmra.mxu0 %v2763
          %v2799 = vpop.f32.mrf.mxu0
          %v2800 = vadd.f32 %v2748, %v2799
          %v2801 = vpop.f32.mrf.mxu0
          %v2802 = vpop.f32.mrf.mxu0
          %v2803 = vpop.f32.mrf.mxu0
          %2804 = vdwg.mxu0
          %vm2805 = vcmask 31744
          %2806 = vst.msk [vmem:[%s1173] sm:$0xff] %vm2805, %v2800
        $region164: #{tpu_custom_call.1} parent=111 // pred_fallthru
          _
        %p2807 = scmp.lt.s32.totalorder %s40, 1
        %s2808 = scalar_select %p2807, %s40, 1
        %s2809 = smul.addr %s2808, 8
        %s2810 = scalar_lea.vmem %s23, %s2809
        // Predicated region
        $region165: #{tpu_custom_call.1} parent=111 // pred_check
          %p2811 = pneg %p634
        $region166: #{tpu_custom_call.1} parent=111 // pred_check_branch
          %2813 = sbr.rel (%p2811) target = $region168
        $region167: #{tpu_custom_call.1} parent=111 // pred_region
          _
        $region168: #{tpu_custom_call.1} parent=111 // pred_fallthru
          _
      $region112: #{tpu_custom_call.1} parent=5 // pred_fallthru
        _
      %p2814 = scmp.le.s32.totalorder 2, %s31
      // Predicated region
      $region169: #{tpu_custom_call.1} parent=5 // pred_check
        %p2815 = pneg %p2814
      $region170: #{tpu_custom_call.1} parent=5 // pred_check_branch
        %2817 = sbr.rel (%p2815) target = $region172
      $region171: #{tpu_custom_call.1} parent=5 // pred_region
        %s2818 = ssub.s32 %s31, 2
        // Predicated region
        $region173: #{tpu_custom_call.1} parent=171 // pred_check
          %p2819 = pneg %p640
        $region174: #{tpu_custom_call.1} parent=171 // pred_check_branch
          %2821 = sbr.rel (%p2819) target = $region176
        $region175: #{tpu_custom_call.1} parent=171 // pred_region
          %p2822 = scmp.lt.s32.totalorder %s42, 1
          %s2823 = scalar_select %p2822, %s42, 1
          %s2824 = smul.addr %s2823, 8
          %s2825 = scalar_lea.vmem %s23, %s2824
        $region176: #{tpu_custom_call.1} parent=171 // pred_fallthru
          _
      $region172: #{tpu_custom_call.1} parent=5 // pred_fallthru
        _
    $region6: #{tpu_custom_call.1} parent=1 // loop_footer
      %s35 = sadd.s32 1, %s31
    $region7: #{tpu_custom_call.1} parent=1 // loop_footer_branch
      %30 = sbr.rel target = $region3
    $region8: #{tpu_custom_call.1} parent=1 // loop_exit
      _
    %2826 = vsyncpa [#allocation4], 1
    %s2827 = scalar_lea.sflag [#allocation4], 1
    %2828 = vsyncpa %s2827, 1
    %2829 = vsyncpa [#allocation6], 1

</llo_original>
